<compile_context>
chip_gen: v5e
topology: v5e:2x2
jax: 0.10.0
libtpu: 0.0.40
codegen_flags: <defaults>
</compile_context>

<pallas_src>
import functools

import jax
import jax.numpy as jnp
from jax.experimental import pallas as pl
from jax.experimental.pallas import tpu as pltpu


# ----------------------------- kernel helpers ------------------------------

def _layernorm(x, fast, eps=1e-5):
    """torch.nn.LayerNorm over the last dim (biased variance, eps inside sqrt).
    The affine (gamma/beta) is folded into the following Linear in the wrapper."""
    mu = jnp.mean(x, axis=-1, keepdims=True)
    if fast:
        # Two independent reductions -> shorter XLU dependency chain.
        var = jnp.mean(x * x, axis=-1, keepdims=True) - mu * mu
    else:
        var = jnp.mean((x - mu) ** 2, axis=-1, keepdims=True)
    return (x - mu) * jax.lax.rsqrt(var + eps)


def _silu(x, fast):
    if fast:
        # exp on the EUP; divide replaced by the approximate EUP reciprocal.
        return x * pl.reciprocal(1.0 + jnp.exp(-x), approx=True)
    return x * jax.nn.sigmoid(x)


# --------------------------------- kernel ----------------------------------

def branch_kernel(num_blocks, mm_dtype, fast, precision,
                  z_ref, wp_ref, w1_ref, w2_ref, wo_ref, bvec_ref, bo_ref,
                  out_ref):
    def mm(a, b):
        return jnp.dot(a.astype(mm_dtype), b, precision=precision,
                       preferred_element_type=jnp.float32)

    # input projection: (TB, L) @ (L, H) + (1, H)
    h = mm(z_ref[...], wp_ref[...]) + bvec_ref[0:1, :]

    # residual blocks (num_blocks is static -> unrolled at trace time);
    # LN affines are pre-folded into w1/b1 and w2/b2.
    for i in range(num_blocks):
        t = _layernorm(h, fast)
        t = mm(t, w1_ref[i]) + bvec_ref[1 + i:2 + i, :]
        t = _silu(t, fast)
        t = _layernorm(t, fast)
        t = mm(t, w2_ref[i]) + bvec_ref[1 + num_blocks + i:2 + num_blocks + i, :]
        h = _silu(h + t, fast)

    # output projection at the true O (lane-masked vst, but no HBM round trip).
    out_ref[...] = (mm(h, wo_ref[...]) + bo_ref[...]).astype(out_ref.dtype)


# -------------------------------- wrapper -----------------------------------

_TILE_MAX = 1024  # 64-512 KB of I/O + ~4 MB f32 activations: fits every gen.


def _pick_tile_b(B):
    """Single grid step whenever the batch fits in one tile (grid is a
    sequential loop on 1-TC v5e/v6e, so splitting small batches only adds
    per-step overhead); large batches stream in 1024-row tiles, which v7x's
    two TensorCores pick up via dimension_semantics=("parallel",)."""
    if B <= _TILE_MAX:
        return max(8, ((B + 7) // 8) * 8)
    return _TILE_MAX


def enhanced_branch_network(z, params, *, tile_b=None, mm_dtype=jnp.bfloat16,
                            approx=None):
    """z: (B, latent_dim) float32. Returns (B, output_dim) float32."""
    B, L = z.shape
    H = params["wp"].shape[1]
    O = params["wo"].shape[1]
    nb = params["w1"].shape[0]

    if tile_b is None:
        tile_b = _pick_tile_b(B)
    exact_mm = jnp.dtype(mm_dtype) == jnp.dtype(jnp.float32)
    if approx is None:
        approx = not exact_mm            # keep the f32 path numerically exact
    precision = jax.lax.Precision.HIGHEST if exact_mm else None
    hp = jax.lax.Precision.HIGHEST

    # ---- fold LayerNorm affine into the following Linear (one-time, tiny) ----
    # LN(x) @ W + b == norm(x) @ (g[:,None] * W) + (beta @ W + b)
    w1f = params["ln1_g"][:, :, None] * params["w1"]
    b1f = jnp.einsum("bh,bho->bo", params["ln1_b"], params["w1"],
                     precision=hp) + params["b1"]
    w2f = params["ln2_g"][:, :, None] * params["w2"]
    b2f = jnp.einsum("bh,bho->bo", params["ln2_b"], params["w2"],
                     precision=hp) + params["b2"]

    # Weights in mm_dtype (bf16 by default) for the MXU; accumulation stays f32.
    wp = params["wp"].astype(mm_dtype)
    w1 = w1f.astype(mm_dtype)
    w2 = w2f.astype(mm_dtype)
    wo = params["wo"].astype(mm_dtype)

    # Stack all (·, H) per-feature vectors into one operand (fewer tiny DMAs):
    # row 0 = bp, rows 1..nb = folded b1, rows nb+1..2nb = folded b2.
    bvec = jnp.concatenate(
        [params["bp"].reshape(1, H), b1f, b2f], axis=0).astype(jnp.float32)
    bo = params["bo"].reshape(1, O).astype(jnp.float32)

    grid = (pl.cdiv(B, tile_b),)

    grid_spec = pltpu.PrefetchScalarGridSpec(
        num_scalar_prefetch=0,
        grid=grid,
        in_specs=[
            pl.BlockSpec((tile_b, L), lambda i: (i, 0)),        # z
            pl.BlockSpec((L, H), lambda i: (0, 0)),             # wp
            pl.BlockSpec((nb, H, H), lambda i: (0, 0, 0)),      # w1 (folded)
            pl.BlockSpec((nb, H, H), lambda i: (0, 0, 0)),      # w2 (folded)
            pl.BlockSpec((H, O), lambda i: (0, 0)),             # wo (true O)
            pl.BlockSpec((1 + 2 * nb, H), lambda i: (0, 0)),    # stacked biases
            pl.BlockSpec((1, O), lambda i: (0, 0)),             # bo
        ],
        out_specs=pl.BlockSpec((tile_b, O), lambda i: (i, 0)),
    )

    # VMEM budget: real footprint (2x params for buffering, double-buffered
    # I/O tiles, ~8 live f32 activation buffers) + ~8 MiB headroom.
    nbytes = lambda a: a.size * a.dtype.itemsize
    param_bytes = sum(nbytes(a) for a in (wp, w1, w2, wo, bvec, bo))
    io_bytes = 2 * tile_b * (L + O) * 4
    act_bytes = 8 * tile_b * H * 4
    vmem_limit = int(min(60 << 20,
                         2 * param_bytes + io_bytes + act_bytes + (8 << 20)))

    out = pl.pallas_call(
        functools.partial(branch_kernel, nb, mm_dtype, approx, precision),
        out_shape=jax.ShapeDtypeStruct((B, O), jnp.float32),
        grid_spec=grid_spec,
        compiler_params=pltpu.CompilerParams(
            dimension_semantics=("parallel",),
            vmem_limit_bytes=vmem_limit,
        ),
    )(z, wp, w1, w2, wo, bvec, bo)

    return out


# ------------------------- reference (pure JAX) ------------------------------

def reference(z, p):
    """Unfolded, exact formulation matching the PyTorch module."""
    hp = jax.lax.Precision.HIGHEST

    def ln(x, g, b, eps=1e-5):
        mu = jnp.mean(x, axis=-1, keepdims=True)
        var = jnp.mean((x - mu) ** 2, axis=-1, keepdims=True)
        return (x - mu) * jax.lax.rsqrt(var + eps) * g + b

    silu = lambda x: x * jax.nn.sigmoid(x)

    h = jnp.dot(z, p["wp"], precision=hp) + p["bp"]
    for i in range(p["w1"].shape[0]):
        t = ln(h, p["ln1_g"][i], p["ln1_b"][i])
        t = jnp.dot(t, p["w1"][i], precision=hp) + p["b1"][i]
        t = silu(t)
        t = ln(t, p["ln2_g"][i], p["ln2_b"][i])
        t = jnp.dot(t, p["w2"][i], precision=hp) + p["b2"][i]
        h = silu(h + t)
    return jnp.dot(h, p["wo"], precision=hp) + p["bo"]


# ------------------------------ param init ----------------------------------

def init_params(key, latent_dim, hidden_dim, output_dim, num_blocks):
    ks = jax.random.split(key, 12)
    sc = 0.05
    # LayerNorm params: torch default is gamma=1, beta=0; perturb slightly so
    # the wrapper-side affine folding is actually exercised by the test.
    return {
        "wp": sc * jax.random.normal(ks[0], (latent_dim, hidden_dim), jnp.float32),
        "bp": sc * jax.random.normal(ks[1], (hidden_dim,), jnp.float32),
        "w1": sc * jax.random.normal(ks[2], (num_blocks, hidden_dim, hidden_dim), jnp.float32),
        "b1": sc * jax.random.normal(ks[3], (num_blocks, hidden_dim), jnp.float32),
        "w2": sc * jax.random.normal(ks[4], (num_blocks, hidden_dim, hidden_dim), jnp.float32),
        "b2": sc * jax.random.normal(ks[5], (num_blocks, hidden_dim), jnp.float32),
        "wo": sc * jax.random.normal(ks[6], (hidden_dim, output_dim), jnp.float32),
        "bo": sc * jax.random.normal(ks[7], (output_dim,), jnp.float32),
        "ln1_g": 1.0 + 0.1 * jax.random.normal(ks[8], (num_blocks, hidden_dim), jnp.float32),
        "ln1_b": 0.05 * jax.random.normal(ks[9], (num_blocks, hidden_dim), jnp.float32),
        "ln2_g": 1.0 + 0.1 * jax.random.normal(ks[10], (num_blocks, hidden_dim), jnp.float32),
        "ln2_b": 0.05 * jax.random.normal(ks[11], (num_blocks, hidden_dim), jnp.float32),
    }


# --------------------------------- main --------------------------------------

if __name__ == "__main__":
    latent_dim, hidden_dim, output_dim, num_blocks = 16, 128, 32, 3
    batch = 16

    key = jax.random.PRNGKey(0)
    kz, kp = jax.random.split(key)
    z = jax.random.normal(kz, (batch, latent_dim), jnp.float32)
    params = init_params(kp, latent_dim, hidden_dim, output_dim, num_blocks)

    ref = reference(z, params)

    # Exact f32 path (f32 MXU, exact LN/SiLU): tight tolerance (differences
    # come only from the LN-affine fold reassociation).
    out_f32 = jax.block_until_ready(
        enhanced_branch_network(z, params, mm_dtype=jnp.float32))
    assert out_f32.shape == (batch, output_dim)
    assert jnp.allclose(out_f32, ref, atol=1e-4, rtol=1e-4), "f32 mismatch vs reference"

    # Default bf16-matmul path (f32 accumulation, approx SiLU/LN): looser tol.
    out_bf16 = jax.block_until_ready(enhanced_branch_network(z, params))
    assert out_bf16.shape == (batch, output_dim)
    assert jnp.allclose(out_bf16, ref, atol=4e-2, rtol=4e-2), "bf16 mismatch vs reference"

    # Non-multiple-of-8 batch: exercises the ragged last tile (no wrapper pad).
    z_odd = z[:10]
    out_odd = jax.block_until_ready(
        enhanced_branch_network(z_odd, params, mm_dtype=jnp.float32))
    assert out_odd.shape == (10, output_dim)
    assert jnp.allclose(out_odd, ref[:10], atol=1e-4, rtol=1e-4), "ragged-batch mismatch"

    print("KERNEL_OK")
</pallas_src>

<mosaic_0001>
module attributes {stable_mosaic.version = 11 : i64} {
  func.func @branch_kernel(%arg0: i32, %arg1: memref<16x16xf32, #tpu.memory_space<vmem>>, %arg2: memref<16x128xf32, #tpu.memory_space<vmem>>, %arg3: memref<3x128x128xf32, #tpu.memory_space<vmem>>, %arg4: memref<3x128x128xf32, #tpu.memory_space<vmem>>, %arg5: memref<128x32xf32, #tpu.memory_space<vmem>>, %arg6: memref<7x128xf32, #tpu.memory_space<vmem>>, %arg7: memref<1x32xf32, #tpu.memory_space<vmem>>, %arg8: memref<16x32xf32, #tpu.memory_space<vmem>>) attributes {dimension_semantics = [#tpu.dimension_semantics<parallel>], iteration_bounds = array<i64: 1>, scalar_prefetch = 0 : i64, scratch_operands = 0 : i64, tpu.core_type = #tpu.core_type<tc>, window_params = [{transform_indices = @transform_0, window_bounds = array<i64: 16, 16>}, {pipeline_mode = #tpu.pipeline_mode<synchronous>, transform_indices = @transform_1, window_bounds = array<i64: 16, 128>}, {pipeline_mode = #tpu.pipeline_mode<synchronous>, transform_indices = @transform_2, window_bounds = array<i64: 3, 128, 128>}, {pipeline_mode = #tpu.pipeline_mode<synchronous>, transform_indices = @transform_3, window_bounds = array<i64: 3, 128, 128>}, {pipeline_mode = #tpu.pipeline_mode<synchronous>, transform_indices = @transform_4, window_bounds = array<i64: 128, 32>}, {pipeline_mode = #tpu.pipeline_mode<synchronous>, transform_indices = @transform_5, window_bounds = array<i64: 7, 128>}, {pipeline_mode = #tpu.pipeline_mode<synchronous>, transform_indices = @transform_6, window_bounds = array<i64: 1, 32>}, {transform_indices = @transform_7, window_bounds = array<i64: 16, 32>}]} {
    %c0 = arith.constant 0 : index
    %c0_0 = arith.constant 0 : index
    %0 = vector.load %arg1[%c0, %c0_0] : memref<16x16xf32, #tpu.memory_space<vmem>>, vector<16x16xf32>
    %c0_1 = arith.constant 0 : index
    %c0_2 = arith.constant 0 : index
    %1 = vector.load %arg2[%c0_1, %c0_2] : memref<16x128xf32, #tpu.memory_space<vmem>>, vector<16x128xf32>
    %cst = arith.constant dense<0.000000e+00> : vector<16x128xf32>
    %2 = tpu.matmul %0, %1, %cst {dimension_numbers = #tpu.dot_dimension_numbers<[1], [0], [0], [1], [0, 0, 1, 1], [], []>, precision = #tpu.contract_precision<fp32>} : vector<16x16xf32>, vector<16x128xf32>, vector<16x128xf32> -> vector<16x128xf32>
    %c0_3 = arith.constant 0 : index
    %c0_4 = arith.constant 0 : index
    %3 = vector.load %arg6[%c0_3, %c0_4] : memref<7x128xf32, #tpu.memory_space<vmem>>, vector<1x128xf32>
    %4 = vector.broadcast %3 : vector<1x128xf32> to vector<16x128xf32>
    %5 = arith.addf %2, %4 : vector<16x128xf32>
    %cst_5 = arith.constant dense<0.000000e+00> : vector<16xf32>
    %6 = vector.multi_reduction <add>, %5, %cst_5 [1] : vector<16x128xf32> to vector<16xf32>
    %7 = vector.shape_cast %6 : vector<16xf32> to vector<16x1xf32>
    %cst_6 = arith.constant 1.280000e+02 : f32
    %8 = vector.broadcast %cst_6 : f32 to vector<16x1xf32>
    %9 = arith.divf %7, %8 : vector<16x1xf32>
    %10 = vector.broadcast %9 : vector<16x1xf32> to vector<16x128xf32>
    %11 = arith.subf %5, %10 : vector<16x128xf32>
    %12 = arith.mulf %11, %11 : vector<16x128xf32>
    %cst_7 = arith.constant dense<0.000000e+00> : vector<16xf32>
    %13 = vector.multi_reduction <add>, %12, %cst_7 [1] : vector<16x128xf32> to vector<16xf32>
    %14 = vector.shape_cast %13 : vector<16xf32> to vector<16x1xf32>
    %cst_8 = arith.constant 1.280000e+02 : f32
    %15 = vector.broadcast %cst_8 : f32 to vector<16x1xf32>
    %16 = arith.divf %14, %15 : vector<16x1xf32>
    %17 = vector.broadcast %9 : vector<16x1xf32> to vector<16x128xf32>
    %18 = arith.subf %5, %17 : vector<16x128xf32>
    %cst_9 = arith.constant 9.99999974E-6 : f32
    %19 = vector.broadcast %cst_9 : f32 to vector<16x1xf32>
    %20 = arith.addf %16, %19 : vector<16x1xf32>
    %21 = math.rsqrt %20 : vector<16x1xf32>
    %22 = vector.broadcast %21 : vector<16x1xf32> to vector<16x128xf32>
    %23 = arith.mulf %18, %22 : vector<16x128xf32>
    %c0_10 = arith.constant 0 : index
    %c0_11 = arith.constant 0 : index
    %c0_12 = arith.constant 0 : index
    %24 = vector.load %arg3[%c0_10, %c0_11, %c0_12] : memref<3x128x128xf32, #tpu.memory_space<vmem>>, vector<1x128x128xf32>
    %25 = vector.shape_cast %24 : vector<1x128x128xf32> to vector<128x128xf32>
    %cst_13 = arith.constant dense<0.000000e+00> : vector<16x128xf32>
    %26 = tpu.matmul %23, %25, %cst_13 {dimension_numbers = #tpu.dot_dimension_numbers<[1], [0], [0], [1], [0, 0, 1, 1], [], []>, precision = #tpu.contract_precision<fp32>} : vector<16x128xf32>, vector<128x128xf32>, vector<16x128xf32> -> vector<16x128xf32>
    %c1 = arith.constant 1 : index
    %c0_14 = arith.constant 0 : index
    %27 = vector.load %arg6[%c1, %c0_14] : memref<7x128xf32, #tpu.memory_space<vmem>>, vector<1x128xf32>
    %28 = vector.broadcast %27 : vector<1x128xf32> to vector<16x128xf32>
    %29 = arith.addf %26, %28 : vector<16x128xf32>
    %30 = arith.negf %29 : vector<16x128xf32>
    %31 = math.exp %30 : vector<16x128xf32>
    %cst_15 = arith.constant 1.000000e+00 : f32
    %32 = vector.broadcast %cst_15 : f32 to vector<16x128xf32>
    %33 = arith.addf %32, %31 : vector<16x128xf32>
    %34 = arith.divf %32, %33 : vector<16x128xf32>
    %35 = arith.mulf %29, %34 : vector<16x128xf32>
    %cst_16 = arith.constant dense<0.000000e+00> : vector<16xf32>
    %36 = vector.multi_reduction <add>, %35, %cst_16 [1] : vector<16x128xf32> to vector<16xf32>
    %37 = vector.shape_cast %36 : vector<16xf32> to vector<16x1xf32>
    %cst_17 = arith.constant 1.280000e+02 : f32
    %38 = vector.broadcast %cst_17 : f32 to vector<16x1xf32>
    %39 = arith.divf %37, %38 : vector<16x1xf32>
    %40 = vector.broadcast %39 : vector<16x1xf32> to vector<16x128xf32>
    %41 = arith.subf %35, %40 : vector<16x128xf32>
    %42 = arith.mulf %41, %41 : vector<16x128xf32>
    %cst_18 = arith.constant dense<0.000000e+00> : vector<16xf32>
    %43 = vector.multi_reduction <add>, %42, %cst_18 [1] : vector<16x128xf32> to vector<16xf32>
    %44 = vector.shape_cast %43 : vector<16xf32> to vector<16x1xf32>
    %cst_19 = arith.constant 1.280000e+02 : f32
    %45 = vector.broadcast %cst_19 : f32 to vector<16x1xf32>
    %46 = arith.divf %44, %45 : vector<16x1xf32>
    %47 = vector.broadcast %39 : vector<16x1xf32> to vector<16x128xf32>
    %48 = arith.subf %35, %47 : vector<16x128xf32>
    %cst_20 = arith.constant 9.99999974E-6 : f32
    %49 = vector.broadcast %cst_20 : f32 to vector<16x1xf32>
    %50 = arith.addf %46, %49 : vector<16x1xf32>
    %51 = math.rsqrt %50 : vector<16x1xf32>
    %52 = vector.broadcast %51 : vector<16x1xf32> to vector<16x128xf32>
    %53 = arith.mulf %48, %52 : vector<16x128xf32>
    %c0_21 = arith.constant 0 : index
    %c0_22 = arith.constant 0 : index
    %c0_23 = arith.constant 0 : index
    %54 = vector.load %arg4[%c0_21, %c0_22, %c0_23] : memref<3x128x128xf32, #tpu.memory_space<vmem>>, vector<1x128x128xf32>
    %55 = vector.shape_cast %54 : vector<1x128x128xf32> to vector<128x128xf32>
    %cst_24 = arith.constant dense<0.000000e+00> : vector<16x128xf32>
    %56 = tpu.matmul %53, %55, %cst_24 {dimension_numbers = #tpu.dot_dimension_numbers<[1], [0], [0], [1], [0, 0, 1, 1], [], []>, precision = #tpu.contract_precision<fp32>} : vector<16x128xf32>, vector<128x128xf32>, vector<16x128xf32> -> vector<16x128xf32>
    %c4 = arith.constant 4 : index
    %c0_25 = arith.constant 0 : index
    %57 = vector.load %arg6[%c4, %c0_25] : memref<7x128xf32, #tpu.memory_space<vmem>>, vector<1x128xf32>
    %58 = vector.broadcast %57 : vector<1x128xf32> to vector<16x128xf32>
    %59 = arith.addf %56, %58 : vector<16x128xf32>
    %60 = arith.addf %5, %59 : vector<16x128xf32>
    %61 = arith.negf %60 : vector<16x128xf32>
    %62 = math.exp %61 : vector<16x128xf32>
    %cst_26 = arith.constant 1.000000e+00 : f32
    %63 = vector.broadcast %cst_26 : f32 to vector<16x128xf32>
    %64 = arith.addf %63, %62 : vector<16x128xf32>
    %65 = arith.divf %63, %64 : vector<16x128xf32>
    %66 = arith.mulf %60, %65 : vector<16x128xf32>
    %cst_27 = arith.constant dense<0.000000e+00> : vector<16xf32>
    %67 = vector.multi_reduction <add>, %66, %cst_27 [1] : vector<16x128xf32> to vector<16xf32>
    %68 = vector.shape_cast %67 : vector<16xf32> to vector<16x1xf32>
    %cst_28 = arith.constant 1.280000e+02 : f32
    %69 = vector.broadcast %cst_28 : f32 to vector<16x1xf32>
    %70 = arith.divf %68, %69 : vector<16x1xf32>
    %71 = vector.broadcast %70 : vector<16x1xf32> to vector<16x128xf32>
    %72 = arith.subf %66, %71 : vector<16x128xf32>
    %73 = arith.mulf %72, %72 : vector<16x128xf32>
    %cst_29 = arith.constant dense<0.000000e+00> : vector<16xf32>
    %74 = vector.multi_reduction <add>, %73, %cst_29 [1] : vector<16x128xf32> to vector<16xf32>
    %75 = vector.shape_cast %74 : vector<16xf32> to vector<16x1xf32>
    %cst_30 = arith.constant 1.280000e+02 : f32
    %76 = vector.broadcast %cst_30 : f32 to vector<16x1xf32>
    %77 = arith.divf %75, %76 : vector<16x1xf32>
    %78 = vector.broadcast %70 : vector<16x1xf32> to vector<16x128xf32>
    %79 = arith.subf %66, %78 : vector<16x128xf32>
    %cst_31 = arith.constant 9.99999974E-6 : f32
    %80 = vector.broadcast %cst_31 : f32 to vector<16x1xf32>
    %81 = arith.addf %77, %80 : vector<16x1xf32>
    %82 = math.rsqrt %81 : vector<16x1xf32>
    %83 = vector.broadcast %82 : vector<16x1xf32> to vector<16x128xf32>
    %84 = arith.mulf %79, %83 : vector<16x128xf32>
    %c1_32 = arith.constant 1 : index
    %c0_33 = arith.constant 0 : index
    %c0_34 = arith.constant 0 : index
    %85 = vector.load %arg3[%c1_32, %c0_33, %c0_34] : memref<3x128x128xf32, #tpu.memory_space<vmem>>, vector<1x128x128xf32>
    %86 = vector.shape_cast %85 : vector<1x128x128xf32> to vector<128x128xf32>
    %cst_35 = arith.constant dense<0.000000e+00> : vector<16x128xf32>
    %87 = tpu.matmul %84, %86, %cst_35 {dimension_numbers = #tpu.dot_dimension_numbers<[1], [0], [0], [1], [0, 0, 1, 1], [], []>, precision = #tpu.contract_precision<fp32>} : vector<16x128xf32>, vector<128x128xf32>, vector<16x128xf32> -> vector<16x128xf32>
    %c2 = arith.constant 2 : index
    %c0_36 = arith.constant 0 : index
    %88 = vector.load %arg6[%c2, %c0_36] : memref<7x128xf32, #tpu.memory_space<vmem>>, vector<1x128xf32>
    %89 = vector.broadcast %88 : vector<1x128xf32> to vector<16x128xf32>
    %90 = arith.addf %87, %89 : vector<16x128xf32>
    %91 = arith.negf %90 : vector<16x128xf32>
    %92 = math.exp %91 : vector<16x128xf32>
    %cst_37 = arith.constant 1.000000e+00 : f32
    %93 = vector.broadcast %cst_37 : f32 to vector<16x128xf32>
    %94 = arith.addf %93, %92 : vector<16x128xf32>
    %95 = arith.divf %93, %94 : vector<16x128xf32>
    %96 = arith.mulf %90, %95 : vector<16x128xf32>
    %cst_38 = arith.constant dense<0.000000e+00> : vector<16xf32>
    %97 = vector.multi_reduction <add>, %96, %cst_38 [1] : vector<16x128xf32> to vector<16xf32>
    %98 = vector.shape_cast %97 : vector<16xf32> to vector<16x1xf32>
    %cst_39 = arith.constant 1.280000e+02 : f32
    %99 = vector.broadcast %cst_39 : f32 to vector<16x1xf32>
    %100 = arith.divf %98, %99 : vector<16x1xf32>
    %101 = vector.broadcast %100 : vector<16x1xf32> to vector<16x128xf32>
    %102 = arith.subf %96, %101 : vector<16x128xf32>
    %103 = arith.mulf %102, %102 : vector<16x128xf32>
    %cst_40 = arith.constant dense<0.000000e+00> : vector<16xf32>
    %104 = vector.multi_reduction <add>, %103, %cst_40 [1] : vector<16x128xf32> to vector<16xf32>
    %105 = vector.shape_cast %104 : vector<16xf32> to vector<16x1xf32>
    %cst_41 = arith.constant 1.280000e+02 : f32
    %106 = vector.broadcast %cst_41 : f32 to vector<16x1xf32>
    %107 = arith.divf %105, %106 : vector<16x1xf32>
    %108 = vector.broadcast %100 : vector<16x1xf32> to vector<16x128xf32>
    %109 = arith.subf %96, %108 : vector<16x128xf32>
    %cst_42 = arith.constant 9.99999974E-6 : f32
    %110 = vector.broadcast %cst_42 : f32 to vector<16x1xf32>
    %111 = arith.addf %107, %110 : vector<16x1xf32>
    %112 = math.rsqrt %111 : vector<16x1xf32>
    %113 = vector.broadcast %112 : vector<16x1xf32> to vector<16x128xf32>
    %114 = arith.mulf %109, %113 : vector<16x128xf32>
    %c1_43 = arith.constant 1 : index
    %c0_44 = arith.constant 0 : index
    %c0_45 = arith.constant 0 : index
    %115 = vector.load %arg4[%c1_43, %c0_44, %c0_45] : memref<3x128x128xf32, #tpu.memory_space<vmem>>, vector<1x128x128xf32>
    %116 = vector.shape_cast %115 : vector<1x128x128xf32> to vector<128x128xf32>
    %cst_46 = arith.constant dense<0.000000e+00> : vector<16x128xf32>
    %117 = tpu.matmul %114, %116, %cst_46 {dimension_numbers = #tpu.dot_dimension_numbers<[1], [0], [0], [1], [0, 0, 1, 1], [], []>, precision = #tpu.contract_precision<fp32>} : vector<16x128xf32>, vector<128x128xf32>, vector<16x128xf32> -> vector<16x128xf32>
    %c5 = arith.constant 5 : index
    %c0_47 = arith.constant 0 : index
    %118 = vector.load %arg6[%c5, %c0_47] : memref<7x128xf32, #tpu.memory_space<vmem>>, vector<1x128xf32>
    %119 = vector.broadcast %118 : vector<1x128xf32> to vector<16x128xf32>
    %120 = arith.addf %117, %119 : vector<16x128xf32>
    %121 = arith.addf %66, %120 : vector<16x128xf32>
    %122 = arith.negf %121 : vector<16x128xf32>
    %123 = math.exp %122 : vector<16x128xf32>
    %cst_48 = arith.constant 1.000000e+00 : f32
    %124 = vector.broadcast %cst_48 : f32 to vector<16x128xf32>
    %125 = arith.addf %124, %123 : vector<16x128xf32>
    %126 = arith.divf %124, %125 : vector<16x128xf32>
    %127 = arith.mulf %121, %126 : vector<16x128xf32>
    %cst_49 = arith.constant dense<0.000000e+00> : vector<16xf32>
    %128 = vector.multi_reduction <add>, %127, %cst_49 [1] : vector<16x128xf32> to vector<16xf32>
    %129 = vector.shape_cast %128 : vector<16xf32> to vector<16x1xf32>
    %cst_50 = arith.constant 1.280000e+02 : f32
    %130 = vector.broadcast %cst_50 : f32 to vector<16x1xf32>
    %131 = arith.divf %129, %130 : vector<16x1xf32>
    %132 = vector.broadcast %131 : vector<16x1xf32> to vector<16x128xf32>
    %133 = arith.subf %127, %132 : vector<16x128xf32>
    %134 = arith.mulf %133, %133 : vector<16x128xf32>
    %cst_51 = arith.constant dense<0.000000e+00> : vector<16xf32>
    %135 = vector.multi_reduction <add>, %134, %cst_51 [1] : vector<16x128xf32> to vector<16xf32>
    %136 = vector.shape_cast %135 : vector<16xf32> to vector<16x1xf32>
    %cst_52 = arith.constant 1.280000e+02 : f32
    %137 = vector.broadcast %cst_52 : f32 to vector<16x1xf32>
    %138 = arith.divf %136, %137 : vector<16x1xf32>
    %139 = vector.broadcast %131 : vector<16x1xf32> to vector<16x128xf32>
    %140 = arith.subf %127, %139 : vector<16x128xf32>
    %cst_53 = arith.constant 9.99999974E-6 : f32
    %141 = vector.broadcast %cst_53 : f32 to vector<16x1xf32>
    %142 = arith.addf %138, %141 : vector<16x1xf32>
    %143 = math.rsqrt %142 : vector<16x1xf32>
    %144 = vector.broadcast %143 : vector<16x1xf32> to vector<16x128xf32>
    %145 = arith.mulf %140, %144 : vector<16x128xf32>
    %c2_54 = arith.constant 2 : index
    %c0_55 = arith.constant 0 : index
    %c0_56 = arith.constant 0 : index
    %146 = vector.load %arg3[%c2_54, %c0_55, %c0_56] : memref<3x128x128xf32, #tpu.memory_space<vmem>>, vector<1x128x128xf32>
    %147 = vector.shape_cast %146 : vector<1x128x128xf32> to vector<128x128xf32>
    %cst_57 = arith.constant dense<0.000000e+00> : vector<16x128xf32>
    %148 = tpu.matmul %145, %147, %cst_57 {dimension_numbers = #tpu.dot_dimension_numbers<[1], [0], [0], [1], [0, 0, 1, 1], [], []>, precision = #tpu.contract_precision<fp32>} : vector<16x128xf32>, vector<128x128xf32>, vector<16x128xf32> -> vector<16x128xf32>
    %c3 = arith.constant 3 : index
    %c0_58 = arith.constant 0 : index
    %149 = vector.load %arg6[%c3, %c0_58] : memref<7x128xf32, #tpu.memory_space<vmem>>, vector<1x128xf32>
    %150 = vector.broadcast %149 : vector<1x128xf32> to vector<16x128xf32>
    %151 = arith.addf %148, %150 : vector<16x128xf32>
    %152 = arith.negf %151 : vector<16x128xf32>
    %153 = math.exp %152 : vector<16x128xf32>
    %cst_59 = arith.constant 1.000000e+00 : f32
    %154 = vector.broadcast %cst_59 : f32 to vector<16x128xf32>
    %155 = arith.addf %154, %153 : vector<16x128xf32>
    %156 = arith.divf %154, %155 : vector<16x128xf32>
    %157 = arith.mulf %151, %156 : vector<16x128xf32>
    %cst_60 = arith.constant dense<0.000000e+00> : vector<16xf32>
    %158 = vector.multi_reduction <add>, %157, %cst_60 [1] : vector<16x128xf32> to vector<16xf32>
    %159 = vector.shape_cast %158 : vector<16xf32> to vector<16x1xf32>
    %cst_61 = arith.constant 1.280000e+02 : f32
    %160 = vector.broadcast %cst_61 : f32 to vector<16x1xf32>
    %161 = arith.divf %159, %160 : vector<16x1xf32>
    %162 = vector.broadcast %161 : vector<16x1xf32> to vector<16x128xf32>
    %163 = arith.subf %157, %162 : vector<16x128xf32>
    %164 = arith.mulf %163, %163 : vector<16x128xf32>
    %cst_62 = arith.constant dense<0.000000e+00> : vector<16xf32>
    %165 = vector.multi_reduction <add>, %164, %cst_62 [1] : vector<16x128xf32> to vector<16xf32>
    %166 = vector.shape_cast %165 : vector<16xf32> to vector<16x1xf32>
    %cst_63 = arith.constant 1.280000e+02 : f32
    %167 = vector.broadcast %cst_63 : f32 to vector<16x1xf32>
    %168 = arith.divf %166, %167 : vector<16x1xf32>
    %169 = vector.broadcast %161 : vector<16x1xf32> to vector<16x128xf32>
    %170 = arith.subf %157, %169 : vector<16x128xf32>
    %cst_64 = arith.constant 9.99999974E-6 : f32
    %171 = vector.broadcast %cst_64 : f32 to vector<16x1xf32>
    %172 = arith.addf %168, %171 : vector<16x1xf32>
    %173 = math.rsqrt %172 : vector<16x1xf32>
    %174 = vector.broadcast %173 : vector<16x1xf32> to vector<16x128xf32>
    %175 = arith.mulf %170, %174 : vector<16x128xf32>
    %c2_65 = arith.constant 2 : index
    %c0_66 = arith.constant 0 : index
    %c0_67 = arith.constant 0 : index
    %176 = vector.load %arg4[%c2_65, %c0_66, %c0_67] : memref<3x128x128xf32, #tpu.memory_space<vmem>>, vector<1x128x128xf32>
    %177 = vector.shape_cast %176 : vector<1x128x128xf32> to vector<128x128xf32>
    %cst_68 = arith.constant dense<0.000000e+00> : vector<16x128xf32>
    %178 = tpu.matmul %175, %177, %cst_68 {dimension_numbers = #tpu.dot_dimension_numbers<[1], [0], [0], [1], [0, 0, 1, 1], [], []>, precision = #tpu.contract_precision<fp32>} : vector<16x128xf32>, vector<128x128xf32>, vector<16x128xf32> -> vector<16x128xf32>
    %c6 = arith.constant 6 : index
    %c0_69 = arith.constant 0 : index
    %179 = vector.load %arg6[%c6, %c0_69] : memref<7x128xf32, #tpu.memory_space<vmem>>, vector<1x128xf32>
    %180 = vector.broadcast %179 : vector<1x128xf32> to vector<16x128xf32>
    %181 = arith.addf %178, %180 : vector<16x128xf32>
    %182 = arith.addf %127, %181 : vector<16x128xf32>
    %183 = arith.negf %182 : vector<16x128xf32>
    %184 = math.exp %183 : vector<16x128xf32>
    %cst_70 = arith.constant 1.000000e+00 : f32
    %185 = vector.broadcast %cst_70 : f32 to vector<16x128xf32>
    %186 = arith.addf %185, %184 : vector<16x128xf32>
    %187 = arith.divf %185, %186 : vector<16x128xf32>
    %188 = arith.mulf %182, %187 : vector<16x128xf32>
    %c0_71 = arith.constant 0 : index
    %c0_72 = arith.constant 0 : index
    %189 = vector.load %arg5[%c0_71, %c0_72] : memref<128x32xf32, #tpu.memory_space<vmem>>, vector<128x32xf32>
    %cst_73 = arith.constant dense<0.000000e+00> : vector<16x32xf32>
    %190 = tpu.matmul %188, %189, %cst_73 {dimension_numbers = #tpu.dot_dimension_numbers<[1], [0], [0], [1], [0, 0, 1, 1], [], []>, precision = #tpu.contract_precision<fp32>} : vector<16x128xf32>, vector<128x32xf32>, vector<16x32xf32> -> vector<16x32xf32>
    %c0_74 = arith.constant 0 : index
    %c0_75 = arith.constant 0 : index
    %191 = vector.load %arg7[%c0_74, %c0_75] : memref<1x32xf32, #tpu.memory_space<vmem>>, vector<1x32xf32>
    %192 = vector.broadcast %191 : vector<1x32xf32> to vector<16x32xf32>
    %193 = arith.addf %190, %192 : vector<16x32xf32>
    %c0_76 = arith.constant 0 : index
    %c0_77 = arith.constant 0 : index
    %194 = vector.load %arg8[%c0_76, %c0_77] : memref<16x32xf32, #tpu.memory_space<vmem>>, vector<16x32xf32>
    tpu.vector_store %arg8[%c0_76, %c0_77], %193 {strides = array<i32>} : memref<16x32xf32, #tpu.memory_space<vmem>>, vector<16x32xf32>,
    return
  }
  func.func @transform_0(%arg0: i32) -> (i32, i32) {
    %c0_i32 = arith.constant 0 : i32
    %c0_i32_0 = arith.constant 0 : i32
    return %arg0, %c0_i32 : i32, i32
  }
  func.func @transform_1(%arg0: i32) -> (i32, i32) {
    %c0_i32 = arith.constant 0 : i32
    %c0_i32_0 = arith.constant 0 : i32
    %c0_i32_1 = arith.constant 0 : i32
    return %c0_i32, %c0_i32_0 : i32, i32
  }
  func.func @transform_2(%arg0: i32) -> (i32, i32, i32) {
    %c0_i32 = arith.constant 0 : i32
    %c0_i32_0 = arith.constant 0 : i32
    %c0_i32_1 = arith.constant 0 : i32
    %c0_i32_2 = arith.constant 0 : i32
    return %c0_i32, %c0_i32_0, %c0_i32_1 : i32, i32, i32
  }
  func.func @transform_3(%arg0: i32) -> (i32, i32, i32) {
    %c0_i32 = arith.constant 0 : i32
    %c0_i32_0 = arith.constant 0 : i32
    %c0_i32_1 = arith.constant 0 : i32
    %c0_i32_2 = arith.constant 0 : i32
    return %c0_i32, %c0_i32_0, %c0_i32_1 : i32, i32, i32
  }
  func.func @transform_4(%arg0: i32) -> (i32, i32) {
    %c0_i32 = arith.constant 0 : i32
    %c0_i32_0 = arith.constant 0 : i32
    %c0_i32_1 = arith.constant 0 : i32
    return %c0_i32, %c0_i32_0 : i32, i32
  }
  func.func @transform_5(%arg0: i32) -> (i32, i32) {
    %c0_i32 = arith.constant 0 : i32
    %c0_i32_0 = arith.constant 0 : i32
    %c0_i32_1 = arith.constant 0 : i32
    return %c0_i32, %c0_i32_0 : i32, i32
  }
  func.func @transform_6(%arg0: i32) -> (i32, i32) {
    %c0_i32 = arith.constant 0 : i32
    %c0_i32_0 = arith.constant 0 : i32
    %c0_i32_1 = arith.constant 0 : i32
    return %c0_i32, %c0_i32_0 : i32, i32
  }
  func.func @transform_7(%arg0: i32) -> (i32, i32) {
    %c0_i32 = arith.constant 0 : i32
    %c0_i32_0 = arith.constant 0 : i32
    return %arg0, %c0_i32 : i32, i32
  }
}

</mosaic_0001>

<llo_original>
// kernel: tpu_custom_call.1
$region0: #{tpu_custom_call.1}
  #allocation0 [shape = 'u32[]', space=smem, size = 0x4, offset = 0x4, fixed_abs, tag = 'smem constant byte address 0x4 - core index']
  #allocation1 [shape = 'u32[72,128]{1,0:T(1,128)}', space=vmem, size = 0x9000, scoped, tag = 'internal scratch']
  %s0 = inlined_call_operand.vmem [shape: f32[16,16], index: 0, kind: input, shape index: {}]
  %s1 = inlined_call_operand.vmem [shape: f32[16,128], index: 1, kind: input, shape index: {}]
  %s2 = inlined_call_operand.hbm [shape: f32[3,128,128], index: 2, kind: input, shape index: {}]
  %s3 = inlined_call_operand.hbm [shape: f32[3,128,128], index: 3, kind: input, shape index: {}]
  %s4 = inlined_call_operand.vmem [shape: f32[128,32], index: 4, kind: input, shape index: {}]
  %s5 = inlined_call_operand.vmem [shape: f32[7,128], index: 5, kind: input, shape index: {}]
  %s6 = inlined_call_operand.vmem [shape: f32[1,32], index: 6, kind: input, shape index: {}]
  %s7 = inlined_call_operand.hbm [shape: f32[16,32], index: 7, kind: output, shape index: {}]
  %s8 = sld [smem:[#allocation0]]
  $region46: #{tpu_custom_call.1} parent=0
    _
  %s10 = ssub.s32 1, %s8
  %s11 = scalar_select 0, %s10, %s8
  $region1: #{tpu_custom_call.1} parent=0
    #allocation2 [shape = 'u8[196608]{0}', space=vmem, size = 0x30000, scoped, tag = 'input window, operand 2, single buffered']
    #allocation3 [shape = 's32[1]{0}', space=sflag, size = 0x4, scoped, tag = 'scoped memory for tpu_custom_call.1']
    #allocation4 [shape = 's32[1]{0}', space=sflag, size = 0x4, scoped, tag = 'scoped memory for tpu_custom_call.1']
    #allocation5 [shape = 'u8[196608]{0}', space=vmem, size = 0x30000, scoped, tag = 'input window, operand 3, single buffered']
    #allocation6 [shape = 's32[1]{0}', space=sflag, size = 0x4, scoped, tag = 'scoped memory for tpu_custom_call.1']
    #allocation7 [shape = 'u8[8192]{0}', space=vmem, size = 0x2000, scoped, tag = 'output window, operand 0, single buffered']
    %12 = vsyncpa [#allocation3], 0
    %13 = vsyncpa [#allocation6], 0
    %14 = vsyncpa [#allocation4], 0
    // Predicated region
    $region2: #{tpu_custom_call.1} parent=1 // pred_check
      _
    $region3: #{tpu_custom_call.1} parent=1 // pred_check_branch
      %16 = sbr.rel (0) target = $region5
    $region4: #{tpu_custom_call.1} parent=1 // pred_region
      _
    $region5: #{tpu_custom_call.1} parent=1 // pred_fallthru
      _
    // Predicated region
    $region6: #{tpu_custom_call.1} parent=1 // pred_check
      _
    $region7: #{tpu_custom_call.1} parent=1 // pred_check_branch
      %18 = sbr.rel (0) target = $region9
    $region8: #{tpu_custom_call.1} parent=1 // pred_region
      _
    $region9: #{tpu_custom_call.1} parent=1 // pred_fallthru
      _
    // Predicated region
    $region10: #{tpu_custom_call.1} parent=1 // pred_check
      _
    $region11: #{tpu_custom_call.1} parent=1 // pred_check_branch
      %20 = sbr.rel (0) target = $region13
    $region12: #{tpu_custom_call.1} parent=1 // pred_region
      %22 = vsyncadd [#allocation3], 0
      %s23 = sshll.u32 %s2, 4
      %s24 = int_to_ptr.hbm [resolvable:$true] %s23
      %s25 = sshll.u32 [#allocation2], 4
      %s26 = int_to_ptr.vmem [resolvable:$true] %s25
      %31 = dma.hbm_to_vmem [thread:$0]  %s24, 6144, %s26, [#allocation3], 128, 128, 8
    $region13: #{tpu_custom_call.1} parent=1 // pred_fallthru
      _
    // Predicated region
    $region14: #{tpu_custom_call.1} parent=1 // pred_check
      _
    $region15: #{tpu_custom_call.1} parent=1 // pred_check_branch
      %33 = sbr.rel (0) target = $region17
    $region16: #{tpu_custom_call.1} parent=1 // pred_region
      %35 = vsyncadd [#allocation6], 0
      %s36 = sshll.u32 %s3, 4
      %s37 = int_to_ptr.hbm [resolvable:$true] %s36
      %s38 = sshll.u32 [#allocation5], 4
      %s39 = int_to_ptr.vmem [resolvable:$true] %s38
      %44 = dma.hbm_to_vmem [thread:$0]  %s37, 6144, %s39, [#allocation6], 128, 128, 8
    $region17: #{tpu_custom_call.1} parent=1 // pred_fallthru
      _
    // Predicated region
    $region18: #{tpu_custom_call.1} parent=1 // pred_check
      _
    $region19: #{tpu_custom_call.1} parent=1 // pred_check_branch
      %46 = sbr.rel (0) target = $region21
    $region20: #{tpu_custom_call.1} parent=1 // pred_region
      _
    $region21: #{tpu_custom_call.1} parent=1 // pred_fallthru
      _
    // Predicated region
    $region22: #{tpu_custom_call.1} parent=1 // pred_check
      _
    $region23: #{tpu_custom_call.1} parent=1 // pred_check_branch
      %48 = sbr.rel (0) target = $region25
    $region24: #{tpu_custom_call.1} parent=1 // pred_region
      _
    $region25: #{tpu_custom_call.1} parent=1 // pred_fallthru
      _
    // Predicated region
    $region26: #{tpu_custom_call.1} parent=1 // pred_check
      _
    $region27: #{tpu_custom_call.1} parent=1 // pred_check_branch
      %50 = sbr.rel (0) target = $region29
    $region28: #{tpu_custom_call.1} parent=1 // pred_region
      _
    $region29: #{tpu_custom_call.1} parent=1 // pred_fallthru
      _
    // Predicated region
    $region30: #{tpu_custom_call.1} parent=1 // pred_check
      _
    $region31: #{tpu_custom_call.1} parent=1 // pred_check_branch
      %52 = sbr.rel (0) target = $region33
    $region32: #{tpu_custom_call.1} parent=1 // pred_region
      %54 = dma.done [#allocation3], 6144
    $region33: #{tpu_custom_call.1} parent=1 // pred_fallthru
      _
    // Predicated region
    $region34: #{tpu_custom_call.1} parent=1 // pred_check
      _
    $region35: #{tpu_custom_call.1} parent=1 // pred_check_branch
      %56 = sbr.rel (0) target = $region37
    $region36: #{tpu_custom_call.1} parent=1 // pred_region
      %58 = dma.done [#allocation6], 6144
    $region37: #{tpu_custom_call.1} parent=1 // pred_fallthru
      _
    %v59 = vld [vmem:[%s0] sm:$0xff]
    %v60 = vld [vmem:[%s0 + $0x8] sm:$0xff]
    %v61 = vld [vmem:[%s1] sm:$0xff]
    %v62 = vld [vmem:[%s1 + $0x8] sm:$0xff]
    %v63 = vld [vmem:[%s5] sm:$0x1]
    %v64 = vperm.slane %v63, 0
    %vm65 = vcmask 130048
    %v67 = vsel %vm65, %v59, 0
    %v70 = vsel %vm65, %v60, 0
    %72 = vmatpush.msra.mxu0 0.0
    %73 = vmatpush.msra.mxu0 0.0
    %74 = vmatpush.msra.mxu0 0.0
    %75 = vmatpush.msra.mxu0 0.0
    %76 = vmatpush.msra.mxu0 0.0
    %77 = vmatpush.msra.mxu0 0.0
    %78 = vmatpush.msra.mxu0 0.0
    %79 = vmatpush.msra.mxu0 0.0
    %80 = vmatpush.msra.mxu0 0.0
    %81 = vmatpush.msra.mxu0 0.0
    %82 = vmatpush.msra.mxu0 0.0
    %83 = vmatpush.msra.mxu0 0.0
    %84 = vmatpush.msra.mxu0 0.0
    %85 = vmatpush.msra.mxu0 0.0
    %v86 = vand.u32 %v62, 4294901760
    %87 = vmatpush.msra.mxu0 %v86
    %v88 = vand.u32 %v61, 4294901760
    %89 = vmatpush.msra.mxu0 %v88
    %v90 = vand.u32 %v67, 4294901760
    %v91 = vsub.f32 %v67, %v90
    %v92 = vand.u32 %v91, 4294901760
    %v93 = vsub.f32 %v91, %v92
    %v94 = vand.u32 %v93, 4294901760
    %95 = vmatmul.f32.gmra.mxu0 %v94
    %v96 = vpop.f32.mrf.mxu0
    %v97 = vadd.f32 %v64, %v96
    %v98 = vand.u32 %v70, 4294901760
    %v99 = vsub.f32 %v70, %v98
    %v100 = vand.u32 %v99, 4294901760
    %v101 = vsub.f32 %v99, %v100
    %v102 = vand.u32 %v101, 4294901760
    %103 = vmatmul.f32.gmra.mxu0 %v102
    %v104 = vpop.f32.mrf.mxu0
    %v105 = vadd.f32 %v64, %v104
    %106 = vdwg.mxu0
    %107 = vmatpush.msra.mxu0 0.0
    %108 = vmatpush.msra.mxu0 0.0
    %109 = vmatpush.msra.mxu0 0.0
    %110 = vmatpush.msra.mxu0 0.0
    %111 = vmatpush.msra.mxu0 0.0
    %112 = vmatpush.msra.mxu0 0.0
    %113 = vmatpush.msra.mxu0 0.0
    %114 = vmatpush.msra.mxu0 0.0
    %115 = vmatpush.msra.mxu0 0.0
    %116 = vmatpush.msra.mxu0 0.0
    %117 = vmatpush.msra.mxu0 0.0
    %118 = vmatpush.msra.mxu0 0.0
    %119 = vmatpush.msra.mxu0 0.0
    %120 = vmatpush.msra.mxu0 0.0
    %v121 = vand.u32 %v62, 4294901760
    %v122 = vsub.f32 %v62, %v121
    %v123 = vand.u32 %v122, 4294901760
    %v124 = vsub.f32 %v122, %v123
    %v125 = vand.u32 %v124, 4294901760
    %126 = vmatpush.msra.mxu0 %v125
    %v127 = vand.u32 %v61, 4294901760
    %v128 = vsub.f32 %v61, %v127
    %v129 = vand.u32 %v128, 4294901760
    %v130 = vsub.f32 %v128, %v129
    %v131 = vand.u32 %v130, 4294901760
    %132 = vmatpush.msra.mxu0 %v131
    %v133 = vand.u32 %v67, 4294901760
    %134 = vmatmul.f32.gmra.mxu0 %v133
    %v135 = vpop.f32.mrf.mxu0
    %v136 = vadd.f32 %v97, %v135
    %v137 = vand.u32 %v70, 4294901760
    %138 = vmatmul.f32.gmra.mxu0 %v137
    %v139 = vpop.f32.mrf.mxu0
    %v140 = vadd.f32 %v105, %v139
    %141 = vdwg.mxu0
    %142 = vmatpush.msra.mxu0 0.0
    %143 = vmatpush.msra.mxu0 0.0
    %144 = vmatpush.msra.mxu0 0.0
    %145 = vmatpush.msra.mxu0 0.0
    %146 = vmatpush.msra.mxu0 0.0
    %147 = vmatpush.msra.mxu0 0.0
    %148 = vmatpush.msra.mxu0 0.0
    %149 = vmatpush.msra.mxu0 0.0
    %150 = vmatpush.msra.mxu0 0.0
    %151 = vmatpush.msra.mxu0 0.0
    %152 = vmatpush.msra.mxu0 0.0
    %153 = vmatpush.msra.mxu0 0.0
    %154 = vmatpush.msra.mxu0 0.0
    %155 = vmatpush.msra.mxu0 0.0
    %v156 = vand.u32 %v62, 4294901760
    %v157 = vsub.f32 %v62, %v156
    %158 = vmatpush.msra.mxu0 %v157
    %v159 = vand.u32 %v61, 4294901760
    %v160 = vsub.f32 %v61, %v159
    %161 = vmatpush.msra.mxu0 %v160
    %v162 = vand.u32 %v67, 4294901760
    %v163 = vsub.f32 %v67, %v162
    %164 = vmatmul.f32.gmra.mxu0 %v163
    %v165 = vpop.f32.mrf.mxu0
    %v166 = vadd.f32 %v136, %v165
    %v167 = vand.u32 %v70, 4294901760
    %v168 = vsub.f32 %v70, %v167
    %169 = vmatmul.f32.gmra.mxu0 %v168
    %v170 = vpop.f32.mrf.mxu0
    %v171 = vadd.f32 %v140, %v170
    %172 = vdwg.mxu0
    %173 = vmatpush.msra.mxu0 0.0
    %174 = vmatpush.msra.mxu0 0.0
    %175 = vmatpush.msra.mxu0 0.0
    %176 = vmatpush.msra.mxu0 0.0
    %177 = vmatpush.msra.mxu0 0.0
    %178 = vmatpush.msra.mxu0 0.0
    %179 = vmatpush.msra.mxu0 0.0
    %180 = vmatpush.msra.mxu0 0.0
    %181 = vmatpush.msra.mxu0 0.0
    %182 = vmatpush.msra.mxu0 0.0
    %183 = vmatpush.msra.mxu0 0.0
    %184 = vmatpush.msra.mxu0 0.0
    %185 = vmatpush.msra.mxu0 0.0
    %186 = vmatpush.msra.mxu0 0.0
    %v187 = vand.u32 %v62, 4294901760
    %188 = vmatpush.msra.mxu0 %v187
    %v189 = vand.u32 %v61, 4294901760
    %190 = vmatpush.msra.mxu0 %v189
    %v191 = vand.u32 %v67, 4294901760
    %v192 = vsub.f32 %v67, %v191
    %v193 = vand.u32 %v192, 4294901760
    %194 = vmatmul.f32.gmra.mxu0 %v193
    %v195 = vpop.f32.mrf.mxu0
    %v196 = vadd.f32 %v166, %v195
    %v197 = vand.u32 %v70, 4294901760
    %v198 = vsub.f32 %v70, %v197
    %v199 = vand.u32 %v198, 4294901760
    %200 = vmatmul.f32.gmra.mxu0 %v199
    %v201 = vpop.f32.mrf.mxu0
    %v202 = vadd.f32 %v171, %v201
    %203 = vdwg.mxu0
    %204 = vmatpush.msra.mxu0 0.0
    %205 = vmatpush.msra.mxu0 0.0
    %206 = vmatpush.msra.mxu0 0.0
    %207 = vmatpush.msra.mxu0 0.0
    %208 = vmatpush.msra.mxu0 0.0
    %209 = vmatpush.msra.mxu0 0.0
    %210 = vmatpush.msra.mxu0 0.0
    %211 = vmatpush.msra.mxu0 0.0
    %212 = vmatpush.msra.mxu0 0.0
    %213 = vmatpush.msra.mxu0 0.0
    %214 = vmatpush.msra.mxu0 0.0
    %215 = vmatpush.msra.mxu0 0.0
    %216 = vmatpush.msra.mxu0 0.0
    %217 = vmatpush.msra.mxu0 0.0
    %v218 = vand.u32 %v62, 4294901760
    %v219 = vsub.f32 %v62, %v218
    %v220 = vand.u32 %v219, 4294901760
    %221 = vmatpush.msra.mxu0 %v220
    %v222 = vand.u32 %v61, 4294901760
    %v223 = vsub.f32 %v61, %v222
    %v224 = vand.u32 %v223, 4294901760
    %225 = vmatpush.msra.mxu0 %v224
    %v226 = vand.u32 %v67, 4294901760
    %227 = vmatmul.f32.gmra.mxu0 %v226
    %v228 = vpop.f32.mrf.mxu0
    %v229 = vadd.f32 %v196, %v228
    %v230 = vand.u32 %v70, 4294901760
    %231 = vmatmul.f32.gmra.mxu0 %v230
    %v232 = vpop.f32.mrf.mxu0
    %v233 = vadd.f32 %v202, %v232
    %234 = vdwg.mxu0
    %235 = vmatpush.msra.mxu0 0.0
    %236 = vmatpush.msra.mxu0 0.0
    %237 = vmatpush.msra.mxu0 0.0
    %238 = vmatpush.msra.mxu0 0.0
    %239 = vmatpush.msra.mxu0 0.0
    %240 = vmatpush.msra.mxu0 0.0
    %241 = vmatpush.msra.mxu0 0.0
    %242 = vmatpush.msra.mxu0 0.0
    %243 = vmatpush.msra.mxu0 0.0
    %244 = vmatpush.msra.mxu0 0.0
    %245 = vmatpush.msra.mxu0 0.0
    %246 = vmatpush.msra.mxu0 0.0
    %247 = vmatpush.msra.mxu0 0.0
    %248 = vmatpush.msra.mxu0 0.0
    %v249 = vand.u32 %v62, 4294901760
    %250 = vmatpush.msra.mxu0 %v249
    %v251 = vand.u32 %v61, 4294901760
    %252 = vmatpush.msra.mxu0 %v251
    %v253 = vand.u32 %v67, 4294901760
    %254 = vmatmul.f32.gmra.mxu0 %v253
    %v255 = vpop.f32.mrf.mxu0
    %v256 = vadd.f32 %v229, %v255
    %v257 = vand.u32 %v70, 4294901760
    %258 = vmatmul.f32.gmra.mxu0 %v257
    %v259 = vpop.f32.mrf.mxu0
    %v260 = vadd.f32 %v233, %v259
    %261 = vdwg.mxu0
    %262 = vadd.xlane.f32.xlu0 %v256
    %v263 = vpop.xlane.xlu0 %262
    %264 = vadd.xlane.f32.xlu0 %v260
    %v265 = vpop.xlane.xlu0 %264
    %v266 = vrcp.pop 128.0
    %v267 = vmul.f32 128.0, %v266
    %v268 = vsub.f32 1.0, %v267
    %v269 = vmul.f32 %v266, %v268
    %v270 = vadd.f32 %v266, %v269
    %vm271 = vweird.f32 %v266
    %v272 = vsel %vm271, %v266, %v270
    %v273 = vmul.f32 %v263, %v272
    %v274 = vmul.f32 %v265, %v272
    %v275 = vsub.f32 %v256, %v273
    %v276 = vsub.f32 %v260, %v274
    %v277 = vmul.f32 %v275, %v275
    %v278 = vmul.f32 %v276, %v276
    %279 = vadd.xlane.f32.xlu0 %v277
    %v280 = vpop.xlane.xlu0 %279
    %281 = vadd.xlane.f32.xlu0 %v278
    %v282 = vpop.xlane.xlu0 %281
    %v283 = vmul.f32 %v280, %v272
    %v284 = vmul.f32 %v282, %v272
    %v285 = vadd.f32 %v283, 1e-05
    %v286 = vadd.f32 %v284, 1e-05
    %v287 = vrsqrt.pop %v285
    %v288 = vmul.f32 %v287, %v285
    %v289 = vmul.f32 %v288, %v287
    %v290 = vmul.f32 0.5, %v289
    %v291 = vsub.f32 1.5, %v290
    %v292 = vmul.f32 %v287, %v291
    %vm293 = vweird.f32 %v285
    %vm294 = vweird.f32 %v287
    %vm295 = vmor %vm293, %vm294
    %v296 = vsel %vm295, %v287, %v292
    %v297 = vrsqrt.pop %v286
    %v298 = vmul.f32 %v297, %v286
    %v299 = vmul.f32 %v298, %v297
    %v300 = vmul.f32 0.5, %v299
    %v301 = vsub.f32 1.5, %v300
    %v302 = vmul.f32 %v297, %v301
    %vm303 = vweird.f32 %v286
    %vm304 = vweird.f32 %v297
    %vm305 = vmor %vm303, %vm304
    %v306 = vsel %vm305, %v297, %v302
    %v307 = vmul.f32 %v275, %v296
    %v308 = vmul.f32 %v276, %v306
    %v309 = vld [vmem:[#allocation2] sm:$0xff]
    %v310 = vld [vmem:[#allocation2 + $0x8] sm:$0xff]
    %v311 = vld [vmem:[#allocation2 + $0x10] sm:$0xff]
    %v312 = vld [vmem:[#allocation2 + $0x18] sm:$0xff]
    %v313 = vld [vmem:[#allocation2 + $0x20] sm:$0xff]
    %v314 = vld [vmem:[#allocation2 + $0x28] sm:$0xff]
    %v315 = vld [vmem:[#allocation2 + $0x30] sm:$0xff]
    %v316 = vld [vmem:[#allocation2 + $0x38] sm:$0xff]
    %v317 = vld [vmem:[#allocation2 + $0x40] sm:$0xff]
    %v318 = vld [vmem:[#allocation2 + $0x48] sm:$0xff]
    %v319 = vld [vmem:[#allocation2 + $0x50] sm:$0xff]
    %v320 = vld [vmem:[#allocation2 + $0x58] sm:$0xff]
    %v321 = vld [vmem:[#allocation2 + $0x60] sm:$0xff]
    %v322 = vld [vmem:[#allocation2 + $0x68] sm:$0xff]
    %v323 = vld [vmem:[#allocation2 + $0x70] sm:$0xff]
    %v324 = vld [vmem:[#allocation2 + $0x78] sm:$0xff]
    %v325 = vld [vmem:[%s5 + $0x1] sm:$0x1]
    %v326 = vperm.slane %v325, 0
    %v327 = vand.u32 %v324, 4294901760
    %328 = vmatpush.msra.mxu0 %v327
    %v329 = vand.u32 %v323, 4294901760
    %330 = vmatpush.msra.mxu0 %v329
    %v331 = vand.u32 %v322, 4294901760
    %332 = vmatpush.msra.mxu0 %v331
    %v333 = vand.u32 %v321, 4294901760
    %334 = vmatpush.msra.mxu0 %v333
    %v335 = vand.u32 %v320, 4294901760
    %336 = vmatpush.msra.mxu0 %v335
    %v337 = vand.u32 %v319, 4294901760
    %338 = vmatpush.msra.mxu0 %v337
    %v339 = vand.u32 %v318, 4294901760
    %340 = vmatpush.msra.mxu0 %v339
    %v341 = vand.u32 %v317, 4294901760
    %342 = vmatpush.msra.mxu0 %v341
    %v343 = vand.u32 %v316, 4294901760
    %344 = vmatpush.msra.mxu0 %v343
    %v345 = vand.u32 %v315, 4294901760
    %346 = vmatpush.msra.mxu0 %v345
    %v347 = vand.u32 %v314, 4294901760
    %348 = vmatpush.msra.mxu0 %v347
    %v349 = vand.u32 %v313, 4294901760
    %350 = vmatpush.msra.mxu0 %v349
    %v351 = vand.u32 %v312, 4294901760
    %352 = vmatpush.msra.mxu0 %v351
    %v353 = vand.u32 %v311, 4294901760
    %354 = vmatpush.msra.mxu0 %v353
    %v355 = vand.u32 %v310, 4294901760
    %356 = vmatpush.msra.mxu0 %v355
    %v357 = vand.u32 %v309, 4294901760
    %358 = vmatpush.msra.mxu0 %v357
    %v359 = vand.u32 %v307, 4294901760
    %v360 = vsub.f32 %v307, %v359
    %v361 = vand.u32 %v360, 4294901760
    %v362 = vsub.f32 %v360, %v361
    %v363 = vand.u32 %v362, 4294901760
    %364 = vmatmul.f32.gmra.mxu0 %v363
    %v365 = vpop.f32.mrf.mxu0
    %v366 = vadd.f32 %v326, %v365
    %v367 = vand.u32 %v308, 4294901760
    %v368 = vsub.f32 %v308, %v367
    %v369 = vand.u32 %v368, 4294901760
    %v370 = vsub.f32 %v368, %v369
    %v371 = vand.u32 %v370, 4294901760
    %372 = vmatmul.f32.gmra.mxu0 %v371
    %v373 = vpop.f32.mrf.mxu0
    %v374 = vadd.f32 %v326, %v373
    %375 = vdwg.mxu0
    %v376 = vand.u32 %v324, 4294901760
    %v377 = vsub.f32 %v324, %v376
    %v378 = vand.u32 %v377, 4294901760
    %v379 = vsub.f32 %v377, %v378
    %v380 = vand.u32 %v379, 4294901760
    %381 = vmatpush.msra.mxu0 %v380
    %v382 = vand.u32 %v323, 4294901760
    %v383 = vsub.f32 %v323, %v382
    %v384 = vand.u32 %v383, 4294901760
    %v385 = vsub.f32 %v383, %v384
    %v386 = vand.u32 %v385, 4294901760
    %387 = vmatpush.msra.mxu0 %v386
    %v388 = vand.u32 %v322, 4294901760
    %v389 = vsub.f32 %v322, %v388
    %v390 = vand.u32 %v389, 4294901760
    %v391 = vsub.f32 %v389, %v390
    %v392 = vand.u32 %v391, 4294901760
    %393 = vmatpush.msra.mxu0 %v392
    %v394 = vand.u32 %v321, 4294901760
    %v395 = vsub.f32 %v321, %v394
    %v396 = vand.u32 %v395, 4294901760
    %v397 = vsub.f32 %v395, %v396
    %v398 = vand.u32 %v397, 4294901760
    %399 = vmatpush.msra.mxu0 %v398
    %v400 = vand.u32 %v320, 4294901760
    %v401 = vsub.f32 %v320, %v400
    %v402 = vand.u32 %v401, 4294901760
    %v403 = vsub.f32 %v401, %v402
    %v404 = vand.u32 %v403, 4294901760
    %405 = vmatpush.msra.mxu0 %v404
    %v406 = vand.u32 %v319, 4294901760
    %v407 = vsub.f32 %v319, %v406
    %v408 = vand.u32 %v407, 4294901760
    %v409 = vsub.f32 %v407, %v408
    %v410 = vand.u32 %v409, 4294901760
    %411 = vmatpush.msra.mxu0 %v410
    %v412 = vand.u32 %v318, 4294901760
    %v413 = vsub.f32 %v318, %v412
    %v414 = vand.u32 %v413, 4294901760
    %v415 = vsub.f32 %v413, %v414
    %v416 = vand.u32 %v415, 4294901760
    %417 = vmatpush.msra.mxu0 %v416
    %v418 = vand.u32 %v317, 4294901760
    %v419 = vsub.f32 %v317, %v418
    %v420 = vand.u32 %v419, 4294901760
    %v421 = vsub.f32 %v419, %v420
    %v422 = vand.u32 %v421, 4294901760
    %423 = vmatpush.msra.mxu0 %v422
    %v424 = vand.u32 %v316, 4294901760
    %v425 = vsub.f32 %v316, %v424
    %v426 = vand.u32 %v425, 4294901760
    %v427 = vsub.f32 %v425, %v426
    %v428 = vand.u32 %v427, 4294901760
    %429 = vmatpush.msra.mxu0 %v428
    %v430 = vand.u32 %v315, 4294901760
    %v431 = vsub.f32 %v315, %v430
    %v432 = vand.u32 %v431, 4294901760
    %v433 = vsub.f32 %v431, %v432
    %v434 = vand.u32 %v433, 4294901760
    %435 = vmatpush.msra.mxu0 %v434
    %v436 = vand.u32 %v314, 4294901760
    %v437 = vsub.f32 %v314, %v436
    %v438 = vand.u32 %v437, 4294901760
    %v439 = vsub.f32 %v437, %v438
    %v440 = vand.u32 %v439, 4294901760
    %441 = vmatpush.msra.mxu0 %v440
    %v442 = vand.u32 %v313, 4294901760
    %v443 = vsub.f32 %v313, %v442
    %v444 = vand.u32 %v443, 4294901760
    %v445 = vsub.f32 %v443, %v444
    %v446 = vand.u32 %v445, 4294901760
    %447 = vmatpush.msra.mxu0 %v446
    %v448 = vand.u32 %v312, 4294901760
    %v449 = vsub.f32 %v312, %v448
    %v450 = vand.u32 %v449, 4294901760
    %v451 = vsub.f32 %v449, %v450
    %v452 = vand.u32 %v451, 4294901760
    %453 = vmatpush.msra.mxu0 %v452
    %v454 = vand.u32 %v311, 4294901760
    %v455 = vsub.f32 %v311, %v454
    %v456 = vand.u32 %v455, 4294901760
    %v457 = vsub.f32 %v455, %v456
    %v458 = vand.u32 %v457, 4294901760
    %459 = vmatpush.msra.mxu0 %v458
    %v460 = vand.u32 %v310, 4294901760
    %v461 = vsub.f32 %v310, %v460
    %v462 = vand.u32 %v461, 4294901760
    %v463 = vsub.f32 %v461, %v462
    %v464 = vand.u32 %v463, 4294901760
    %465 = vmatpush.msra.mxu0 %v464
    %v466 = vand.u32 %v309, 4294901760
    %v467 = vsub.f32 %v309, %v466
    %v468 = vand.u32 %v467, 4294901760
    %v469 = vsub.f32 %v467, %v468
    %v470 = vand.u32 %v469, 4294901760
    %471 = vmatpush.msra.mxu0 %v470
    %v472 = vand.u32 %v307, 4294901760
    %473 = vmatmul.f32.gmra.mxu0 %v472
    %v474 = vpop.f32.mrf.mxu0
    %v475 = vadd.f32 %v366, %v474
    %v476 = vand.u32 %v308, 4294901760
    %477 = vmatmul.f32.gmra.mxu0 %v476
    %v478 = vpop.f32.mrf.mxu0
    %v479 = vadd.f32 %v374, %v478
    %480 = vdwg.mxu0
    %v481 = vand.u32 %v324, 4294901760
    %v482 = vsub.f32 %v324, %v481
    %483 = vmatpush.msra.mxu0 %v482
    %v484 = vand.u32 %v323, 4294901760
    %v485 = vsub.f32 %v323, %v484
    %486 = vmatpush.msra.mxu0 %v485
    %v487 = vand.u32 %v322, 4294901760
    %v488 = vsub.f32 %v322, %v487
    %489 = vmatpush.msra.mxu0 %v488
    %v490 = vand.u32 %v321, 4294901760
    %v491 = vsub.f32 %v321, %v490
    %492 = vmatpush.msra.mxu0 %v491
    %v493 = vand.u32 %v320, 4294901760
    %v494 = vsub.f32 %v320, %v493
    %495 = vmatpush.msra.mxu0 %v494
    %v496 = vand.u32 %v319, 4294901760
    %v497 = vsub.f32 %v319, %v496
    %498 = vmatpush.msra.mxu0 %v497
    %v499 = vand.u32 %v318, 4294901760
    %v500 = vsub.f32 %v318, %v499
    %501 = vmatpush.msra.mxu0 %v500
    %v502 = vand.u32 %v317, 4294901760
    %v503 = vsub.f32 %v317, %v502
    %504 = vmatpush.msra.mxu0 %v503
    %v505 = vand.u32 %v316, 4294901760
    %v506 = vsub.f32 %v316, %v505
    %507 = vmatpush.msra.mxu0 %v506
    %v508 = vand.u32 %v315, 4294901760
    %v509 = vsub.f32 %v315, %v508
    %510 = vmatpush.msra.mxu0 %v509
    %v511 = vand.u32 %v314, 4294901760
    %v512 = vsub.f32 %v314, %v511
    %513 = vmatpush.msra.mxu0 %v512
    %v514 = vand.u32 %v313, 4294901760
    %v515 = vsub.f32 %v313, %v514
    %516 = vmatpush.msra.mxu0 %v515
    %v517 = vand.u32 %v312, 4294901760
    %v518 = vsub.f32 %v312, %v517
    %519 = vmatpush.msra.mxu0 %v518
    %v520 = vand.u32 %v311, 4294901760
    %v521 = vsub.f32 %v311, %v520
    %522 = vmatpush.msra.mxu0 %v521
    %v523 = vand.u32 %v310, 4294901760
    %v524 = vsub.f32 %v310, %v523
    %525 = vmatpush.msra.mxu0 %v524
    %v526 = vand.u32 %v309, 4294901760
    %v527 = vsub.f32 %v309, %v526
    %528 = vmatpush.msra.mxu0 %v527
    %v529 = vand.u32 %v307, 4294901760
    %v530 = vsub.f32 %v307, %v529
    %531 = vmatmul.f32.gmra.mxu0 %v530
    %v532 = vpop.f32.mrf.mxu0
    %v533 = vadd.f32 %v475, %v532
    %v534 = vand.u32 %v308, 4294901760
    %v535 = vsub.f32 %v308, %v534
    %536 = vmatmul.f32.gmra.mxu0 %v535
    %v537 = vpop.f32.mrf.mxu0
    %v538 = vadd.f32 %v479, %v537
    %539 = vdwg.mxu0
    %v540 = vand.u32 %v324, 4294901760
    %541 = vmatpush.msra.mxu0 %v540
    %v542 = vand.u32 %v323, 4294901760
    %543 = vmatpush.msra.mxu0 %v542
    %v544 = vand.u32 %v322, 4294901760
    %545 = vmatpush.msra.mxu0 %v544
    %v546 = vand.u32 %v321, 4294901760
    %547 = vmatpush.msra.mxu0 %v546
    %v548 = vand.u32 %v320, 4294901760
    %549 = vmatpush.msra.mxu0 %v548
    %v550 = vand.u32 %v319, 4294901760
    %551 = vmatpush.msra.mxu0 %v550
    %v552 = vand.u32 %v318, 4294901760
    %553 = vmatpush.msra.mxu0 %v552
    %v554 = vand.u32 %v317, 4294901760
    %555 = vmatpush.msra.mxu0 %v554
    %v556 = vand.u32 %v316, 4294901760
    %557 = vmatpush.msra.mxu0 %v556
    %v558 = vand.u32 %v315, 4294901760
    %559 = vmatpush.msra.mxu0 %v558
    %v560 = vand.u32 %v314, 4294901760
    %561 = vmatpush.msra.mxu0 %v560
    %v562 = vand.u32 %v313, 4294901760
    %563 = vmatpush.msra.mxu0 %v562
    %v564 = vand.u32 %v312, 4294901760
    %565 = vmatpush.msra.mxu0 %v564
    %v566 = vand.u32 %v311, 4294901760
    %567 = vmatpush.msra.mxu0 %v566
    %v568 = vand.u32 %v310, 4294901760
    %569 = vmatpush.msra.mxu0 %v568
    %v570 = vand.u32 %v309, 4294901760
    %571 = vmatpush.msra.mxu0 %v570
    %v572 = vand.u32 %v307, 4294901760
    %v573 = vsub.f32 %v307, %v572
    %v574 = vand.u32 %v573, 4294901760
    %575 = vmatmul.f32.gmra.mxu0 %v574
    %v576 = vpop.f32.mrf.mxu0
    %v577 = vadd.f32 %v533, %v576
    %v578 = vand.u32 %v308, 4294901760
    %v579 = vsub.f32 %v308, %v578
    %v580 = vand.u32 %v579, 4294901760
    %581 = vmatmul.f32.gmra.mxu0 %v580
    %v582 = vpop.f32.mrf.mxu0
    %v583 = vadd.f32 %v538, %v582
    %584 = vdwg.mxu0
    %v585 = vand.u32 %v324, 4294901760
    %v586 = vsub.f32 %v324, %v585
    %v587 = vand.u32 %v586, 4294901760
    %588 = vmatpush.msra.mxu0 %v587
    %v589 = vand.u32 %v323, 4294901760
    %v590 = vsub.f32 %v323, %v589
    %v591 = vand.u32 %v590, 4294901760
    %592 = vmatpush.msra.mxu0 %v591
    %v593 = vand.u32 %v322, 4294901760
    %v594 = vsub.f32 %v322, %v593
    %v595 = vand.u32 %v594, 4294901760
    %596 = vmatpush.msra.mxu0 %v595
    %v597 = vand.u32 %v321, 4294901760
    %v598 = vsub.f32 %v321, %v597
    %v599 = vand.u32 %v598, 4294901760
    %600 = vmatpush.msra.mxu0 %v599
    %v601 = vand.u32 %v320, 4294901760
    %v602 = vsub.f32 %v320, %v601
    %v603 = vand.u32 %v602, 4294901760
    %604 = vmatpush.msra.mxu0 %v603
    %v605 = vand.u32 %v319, 4294901760
    %v606 = vsub.f32 %v319, %v605
    %v607 = vand.u32 %v606, 4294901760
    %608 = vmatpush.msra.mxu0 %v607
    %v609 = vand.u32 %v318, 4294901760
    %v610 = vsub.f32 %v318, %v609
    %v611 = vand.u32 %v610, 4294901760
    %612 = vmatpush.msra.mxu0 %v611
    %v613 = vand.u32 %v317, 4294901760
    %v614 = vsub.f32 %v317, %v613
    %v615 = vand.u32 %v614, 4294901760
    %616 = vmatpush.msra.mxu0 %v615
    %v617 = vand.u32 %v316, 4294901760
    %v618 = vsub.f32 %v316, %v617
    %v619 = vand.u32 %v618, 4294901760
    %620 = vmatpush.msra.mxu0 %v619
    %v621 = vand.u32 %v315, 4294901760
    %v622 = vsub.f32 %v315, %v621
    %v623 = vand.u32 %v622, 4294901760
    %624 = vmatpush.msra.mxu0 %v623
    %v625 = vand.u32 %v314, 4294901760
    %v626 = vsub.f32 %v314, %v625
    %v627 = vand.u32 %v626, 4294901760
    %628 = vmatpush.msra.mxu0 %v627
    %v629 = vand.u32 %v313, 4294901760
    %v630 = vsub.f32 %v313, %v629
    %v631 = vand.u32 %v630, 4294901760
    %632 = vmatpush.msra.mxu0 %v631
    %v633 = vand.u32 %v312, 4294901760
    %v634 = vsub.f32 %v312, %v633
    %v635 = vand.u32 %v634, 4294901760
    %636 = vmatpush.msra.mxu0 %v635
    %v637 = vand.u32 %v311, 4294901760
    %v638 = vsub.f32 %v311, %v637
    %v639 = vand.u32 %v638, 4294901760
    %640 = vmatpush.msra.mxu0 %v639
    %v641 = vand.u32 %v310, 4294901760
    %v642 = vsub.f32 %v310, %v641
    %v643 = vand.u32 %v642, 4294901760
    %644 = vmatpush.msra.mxu0 %v643
    %v645 = vand.u32 %v309, 4294901760
    %v646 = vsub.f32 %v309, %v645
    %v647 = vand.u32 %v646, 4294901760
    %648 = vmatpush.msra.mxu0 %v647
    %v649 = vand.u32 %v307, 4294901760
    %650 = vmatmul.f32.gmra.mxu0 %v649
    %v651 = vpop.f32.mrf.mxu0
    %v652 = vadd.f32 %v577, %v651
    %v653 = vand.u32 %v308, 4294901760
    %654 = vmatmul.f32.gmra.mxu0 %v653
    %v655 = vpop.f32.mrf.mxu0
    %v656 = vadd.f32 %v583, %v655
    %657 = vdwg.mxu0
    %v658 = vand.u32 %v324, 4294901760
    %659 = vmatpush.msra.mxu0 %v658
    %v660 = vand.u32 %v323, 4294901760
    %661 = vmatpush.msra.mxu0 %v660
    %v662 = vand.u32 %v322, 4294901760
    %663 = vmatpush.msra.mxu0 %v662
    %v664 = vand.u32 %v321, 4294901760
    %665 = vmatpush.msra.mxu0 %v664
    %v666 = vand.u32 %v320, 4294901760
    %667 = vmatpush.msra.mxu0 %v666
    %v668 = vand.u32 %v319, 4294901760
    %669 = vmatpush.msra.mxu0 %v668
    %v670 = vand.u32 %v318, 4294901760
    %671 = vmatpush.msra.mxu0 %v670
    %v672 = vand.u32 %v317, 4294901760
    %673 = vmatpush.msra.mxu0 %v672
    %v674 = vand.u32 %v316, 4294901760
    %675 = vmatpush.msra.mxu0 %v674
    %v676 = vand.u32 %v315, 4294901760
    %677 = vmatpush.msra.mxu0 %v676
    %v678 = vand.u32 %v314, 4294901760
    %679 = vmatpush.msra.mxu0 %v678
    %v680 = vand.u32 %v313, 4294901760
    %681 = vmatpush.msra.mxu0 %v680
    %v682 = vand.u32 %v312, 4294901760
    %683 = vmatpush.msra.mxu0 %v682
    %v684 = vand.u32 %v311, 4294901760
    %685 = vmatpush.msra.mxu0 %v684
    %v686 = vand.u32 %v310, 4294901760
    %687 = vmatpush.msra.mxu0 %v686
    %v688 = vand.u32 %v309, 4294901760
    %689 = vmatpush.msra.mxu0 %v688
    %v690 = vand.u32 %v307, 4294901760
    %691 = vmatmul.f32.gmra.mxu0 %v690
    %v692 = vpop.f32.mrf.mxu0
    %v693 = vadd.f32 %v652, %v692
    %v694 = vand.u32 %v308, 4294901760
    %695 = vmatmul.f32.gmra.mxu0 %v694
    %v696 = vpop.f32.mrf.mxu0
    %v697 = vadd.f32 %v656, %v696
    %698 = vdwg.mxu0
    %v699 = vxor.u32 %v693, 2147483648
    %v700 = vxor.u32 %v697, 2147483648
    %v701 = vmul.f32 %v699, 1.442695
    %v702 = vpow.pop %v701
    %v703 = vmul.f32 %v700, 1.442695
    %v704 = vpow.pop %v703
    %v705 = vadd.f32 %v702, 1.0
    %v706 = vadd.f32 %v704, 1.0
    %v707 = vrcp.pop %v705
    %v708 = vmul.f32 %v705, %v707
    %v709 = vsub.f32 1.0, %v708
    %v710 = vmul.f32 %v707, %v709
    %v711 = vadd.f32 %v707, %v710
    %vm712 = vweird.f32 %v705
    %vm713 = vweird.f32 %v707
    %vm714 = vmor %vm712, %vm713
    %v715 = vsel %vm714, %v707, %v711
    %v716 = vand.u32 2147483647, %v705
    %vm717 = vcmp.eq.f32.partialorder %v716, 8.507059e+37
    %v718 = vand.u32 %v705, 2147483648
    %v719 = vor.u32 1.1754944e-38, %v718
    %v720 = vsel %vm717, %v719, %v715
    %v721 = vmul.f32 1.0, %v720
    %v722 = vrcp.pop %v706
    %v723 = vmul.f32 %v706, %v722
    %v724 = vsub.f32 1.0, %v723
    %v725 = vmul.f32 %v722, %v724
    %v726 = vadd.f32 %v722, %v725
    %vm727 = vweird.f32 %v706
    %vm728 = vweird.f32 %v722
    %vm729 = vmor %vm727, %vm728
    %v730 = vsel %vm729, %v722, %v726
    %v731 = vand.u32 2147483647, %v706
    %vm732 = vcmp.eq.f32.partialorder %v731, 8.507059e+37
    %v733 = vand.u32 %v706, 2147483648
    %v734 = vor.u32 1.1754944e-38, %v733
    %v735 = vsel %vm732, %v734, %v730
    %v736 = vmul.f32 1.0, %v735
    %v737 = vmul.f32 %v693, %v721
    %v738 = vmul.f32 %v697, %v736
    %739 = vadd.xlane.f32.xlu0 %v737
    %v740 = vpop.xlane.xlu0 %739
    %741 = vadd.xlane.f32.xlu0 %v738
    %v742 = vpop.xlane.xlu0 %741
    %v743 = vmul.f32 %v740, %v272
    %v744 = vmul.f32 %v742, %v272
    %v745 = vsub.f32 %v737, %v743
    %v746 = vsub.f32 %v738, %v744
    %v747 = vmul.f32 %v745, %v745
    %v748 = vmul.f32 %v746, %v746
    %749 = vadd.xlane.f32.xlu0 %v747
    %v750 = vpop.xlane.xlu0 %749
    %751 = vadd.xlane.f32.xlu0 %v748
    %v752 = vpop.xlane.xlu0 %751
    %v753 = vmul.f32 %v750, %v272
    %v754 = vmul.f32 %v752, %v272
    %v755 = vadd.f32 %v753, 1e-05
    %v756 = vadd.f32 %v754, 1e-05
    %v757 = vrsqrt.pop %v755
    %v758 = vmul.f32 %v757, %v755
    %v759 = vmul.f32 %v758, %v757
    %v760 = vmul.f32 0.5, %v759
    %v761 = vsub.f32 1.5, %v760
    %v762 = vmul.f32 %v757, %v761
    %vm763 = vweird.f32 %v755
    %vm764 = vweird.f32 %v757
    %vm765 = vmor %vm763, %vm764
    %v766 = vsel %vm765, %v757, %v762
    %v767 = vrsqrt.pop %v756
    %v768 = vmul.f32 %v767, %v756
    %v769 = vmul.f32 %v768, %v767
    %v770 = vmul.f32 0.5, %v769
    %v771 = vsub.f32 1.5, %v770
    %v772 = vmul.f32 %v767, %v771
    %vm773 = vweird.f32 %v756
    %vm774 = vweird.f32 %v767
    %vm775 = vmor %vm773, %vm774
    %v776 = vsel %vm775, %v767, %v772
    %v777 = vmul.f32 %v745, %v766
    %v778 = vmul.f32 %v746, %v776
    %v779 = vld [vmem:[#allocation5] sm:$0xff]
    %v780 = vld [vmem:[#allocation5 + $0x8] sm:$0xff]
    %v781 = vld [vmem:[#allocation5 + $0x10] sm:$0xff]
    %v782 = vld [vmem:[#allocation5 + $0x18] sm:$0xff]
    %v783 = vld [vmem:[#allocation5 + $0x20] sm:$0xff]
    %v784 = vld [vmem:[#allocation5 + $0x28] sm:$0xff]
    %v785 = vld [vmem:[#allocation5 + $0x30] sm:$0xff]
    %v786 = vld [vmem:[#allocation5 + $0x38] sm:$0xff]
    %v787 = vld [vmem:[#allocation5 + $0x40] sm:$0xff]
    %v788 = vld [vmem:[#allocation5 + $0x48] sm:$0xff]
    %v789 = vld [vmem:[#allocation5 + $0x50] sm:$0xff]
    %v790 = vld [vmem:[#allocation5 + $0x58] sm:$0xff]
    %v791 = vld [vmem:[#allocation5 + $0x60] sm:$0xff]
    %v792 = vld [vmem:[#allocation5 + $0x68] sm:$0xff]
    %v793 = vld [vmem:[#allocation5 + $0x70] sm:$0xff]
    %v794 = vld [vmem:[#allocation5 + $0x78] sm:$0xff]
    %v795 = vld [vmem:[%s5 + $0x4] sm:$0x1]
    %v796 = vperm.slane %v795, 0
    %v797 = vand.u32 %v794, 4294901760
    %798 = vmatpush.msra.mxu0 %v797
    %v799 = vand.u32 %v793, 4294901760
    %800 = vmatpush.msra.mxu0 %v799
    %v801 = vand.u32 %v792, 4294901760
    %802 = vmatpush.msra.mxu0 %v801
    %v803 = vand.u32 %v791, 4294901760
    %804 = vmatpush.msra.mxu0 %v803
    %v805 = vand.u32 %v790, 4294901760
    %806 = vmatpush.msra.mxu0 %v805
    %v807 = vand.u32 %v789, 4294901760
    %808 = vmatpush.msra.mxu0 %v807
    %v809 = vand.u32 %v788, 4294901760
    %810 = vmatpush.msra.mxu0 %v809
    %v811 = vand.u32 %v787, 4294901760
    %812 = vmatpush.msra.mxu0 %v811
    %v813 = vand.u32 %v786, 4294901760
    %814 = vmatpush.msra.mxu0 %v813
    %v815 = vand.u32 %v785, 4294901760
    %816 = vmatpush.msra.mxu0 %v815
    %v817 = vand.u32 %v784, 4294901760
    %818 = vmatpush.msra.mxu0 %v817
    %v819 = vand.u32 %v783, 4294901760
    %820 = vmatpush.msra.mxu0 %v819
    %v821 = vand.u32 %v782, 4294901760
    %822 = vmatpush.msra.mxu0 %v821
    %v823 = vand.u32 %v781, 4294901760
    %824 = vmatpush.msra.mxu0 %v823
    %v825 = vand.u32 %v780, 4294901760
    %826 = vmatpush.msra.mxu0 %v825
    %v827 = vand.u32 %v779, 4294901760
    %828 = vmatpush.msra.mxu0 %v827
    %v829 = vand.u32 %v777, 4294901760
    %v830 = vsub.f32 %v777, %v829
    %v831 = vand.u32 %v830, 4294901760
    %v832 = vsub.f32 %v830, %v831
    %v833 = vand.u32 %v832, 4294901760
    %834 = vmatmul.f32.gmra.mxu0 %v833
    %v835 = vpop.f32.mrf.mxu0
    %v836 = vadd.f32 %v796, %v835
    %v837 = vand.u32 %v778, 4294901760
    %v838 = vsub.f32 %v778, %v837
    %v839 = vand.u32 %v838, 4294901760
    %v840 = vsub.f32 %v838, %v839
    %v841 = vand.u32 %v840, 4294901760
    %842 = vmatmul.f32.gmra.mxu0 %v841
    %v843 = vpop.f32.mrf.mxu0
    %v844 = vadd.f32 %v796, %v843
    %845 = vdwg.mxu0
    %v846 = vand.u32 %v794, 4294901760
    %v847 = vsub.f32 %v794, %v846
    %v848 = vand.u32 %v847, 4294901760
    %v849 = vsub.f32 %v847, %v848
    %v850 = vand.u32 %v849, 4294901760
    %851 = vmatpush.msra.mxu0 %v850
    %v852 = vand.u32 %v793, 4294901760
    %v853 = vsub.f32 %v793, %v852
    %v854 = vand.u32 %v853, 4294901760
    %v855 = vsub.f32 %v853, %v854
    %v856 = vand.u32 %v855, 4294901760
    %857 = vmatpush.msra.mxu0 %v856
    %v858 = vand.u32 %v792, 4294901760
    %v859 = vsub.f32 %v792, %v858
    %v860 = vand.u32 %v859, 4294901760
    %v861 = vsub.f32 %v859, %v860
    %v862 = vand.u32 %v861, 4294901760
    %863 = vmatpush.msra.mxu0 %v862
    %v864 = vand.u32 %v791, 4294901760
    %v865 = vsub.f32 %v791, %v864
    %v866 = vand.u32 %v865, 4294901760
    %v867 = vsub.f32 %v865, %v866
    %v868 = vand.u32 %v867, 4294901760
    %869 = vmatpush.msra.mxu0 %v868
    %v870 = vand.u32 %v790, 4294901760
    %v871 = vsub.f32 %v790, %v870
    %v872 = vand.u32 %v871, 4294901760
    %v873 = vsub.f32 %v871, %v872
    %v874 = vand.u32 %v873, 4294901760
    %875 = vmatpush.msra.mxu0 %v874
    %v876 = vand.u32 %v789, 4294901760
    %v877 = vsub.f32 %v789, %v876
    %v878 = vand.u32 %v877, 4294901760
    %v879 = vsub.f32 %v877, %v878
    %v880 = vand.u32 %v879, 4294901760
    %881 = vmatpush.msra.mxu0 %v880
    %v882 = vand.u32 %v788, 4294901760
    %v883 = vsub.f32 %v788, %v882
    %v884 = vand.u32 %v883, 4294901760
    %v885 = vsub.f32 %v883, %v884
    %v886 = vand.u32 %v885, 4294901760
    %887 = vmatpush.msra.mxu0 %v886
    %v888 = vand.u32 %v787, 4294901760
    %v889 = vsub.f32 %v787, %v888
    %v890 = vand.u32 %v889, 4294901760
    %v891 = vsub.f32 %v889, %v890
    %v892 = vand.u32 %v891, 4294901760
    %893 = vmatpush.msra.mxu0 %v892
    %v894 = vand.u32 %v786, 4294901760
    %v895 = vsub.f32 %v786, %v894
    %v896 = vand.u32 %v895, 4294901760
    %v897 = vsub.f32 %v895, %v896
    %v898 = vand.u32 %v897, 4294901760
    %899 = vmatpush.msra.mxu0 %v898
    %v900 = vand.u32 %v785, 4294901760
    %v901 = vsub.f32 %v785, %v900
    %v902 = vand.u32 %v901, 4294901760
    %v903 = vsub.f32 %v901, %v902
    %v904 = vand.u32 %v903, 4294901760
    %905 = vmatpush.msra.mxu0 %v904
    %v906 = vand.u32 %v784, 4294901760
    %v907 = vsub.f32 %v784, %v906
    %v908 = vand.u32 %v907, 4294901760
    %v909 = vsub.f32 %v907, %v908
    %v910 = vand.u32 %v909, 4294901760
    %911 = vmatpush.msra.mxu0 %v910
    %v912 = vand.u32 %v783, 4294901760
    %v913 = vsub.f32 %v783, %v912
    %v914 = vand.u32 %v913, 4294901760
    %v915 = vsub.f32 %v913, %v914
    %v916 = vand.u32 %v915, 4294901760
    %917 = vmatpush.msra.mxu0 %v916
    %v918 = vand.u32 %v782, 4294901760
    %v919 = vsub.f32 %v782, %v918
    %v920 = vand.u32 %v919, 4294901760
    %v921 = vsub.f32 %v919, %v920
    %v922 = vand.u32 %v921, 4294901760
    %923 = vmatpush.msra.mxu0 %v922
    %v924 = vand.u32 %v781, 4294901760
    %v925 = vsub.f32 %v781, %v924
    %v926 = vand.u32 %v925, 4294901760
    %v927 = vsub.f32 %v925, %v926
    %v928 = vand.u32 %v927, 4294901760
    %929 = vmatpush.msra.mxu0 %v928
    %v930 = vand.u32 %v780, 4294901760
    %v931 = vsub.f32 %v780, %v930
    %v932 = vand.u32 %v931, 4294901760
    %v933 = vsub.f32 %v931, %v932
    %v934 = vand.u32 %v933, 4294901760
    %935 = vmatpush.msra.mxu0 %v934
    %v936 = vand.u32 %v779, 4294901760
    %v937 = vsub.f32 %v779, %v936
    %v938 = vand.u32 %v937, 4294901760
    %v939 = vsub.f32 %v937, %v938
    %v940 = vand.u32 %v939, 4294901760
    %941 = vmatpush.msra.mxu0 %v940
    %v942 = vand.u32 %v777, 4294901760
    %943 = vmatmul.f32.gmra.mxu0 %v942
    %v944 = vpop.f32.mrf.mxu0
    %v945 = vadd.f32 %v836, %v944
    %v946 = vand.u32 %v778, 4294901760
    %947 = vmatmul.f32.gmra.mxu0 %v946
    %v948 = vpop.f32.mrf.mxu0
    %v949 = vadd.f32 %v844, %v948
    %950 = vdwg.mxu0
    %v951 = vand.u32 %v794, 4294901760
    %v952 = vsub.f32 %v794, %v951
    %953 = vmatpush.msra.mxu0 %v952
    %v954 = vand.u32 %v793, 4294901760
    %v955 = vsub.f32 %v793, %v954
    %956 = vmatpush.msra.mxu0 %v955
    %v957 = vand.u32 %v792, 4294901760
    %v958 = vsub.f32 %v792, %v957
    %959 = vmatpush.msra.mxu0 %v958
    %v960 = vand.u32 %v791, 4294901760
    %v961 = vsub.f32 %v791, %v960
    %962 = vmatpush.msra.mxu0 %v961
    %v963 = vand.u32 %v790, 4294901760
    %v964 = vsub.f32 %v790, %v963
    %965 = vmatpush.msra.mxu0 %v964
    %v966 = vand.u32 %v789, 4294901760
    %v967 = vsub.f32 %v789, %v966
    %968 = vmatpush.msra.mxu0 %v967
    %v969 = vand.u32 %v788, 4294901760
    %v970 = vsub.f32 %v788, %v969
    %971 = vmatpush.msra.mxu0 %v970
    %v972 = vand.u32 %v787, 4294901760
    %v973 = vsub.f32 %v787, %v972
    %974 = vmatpush.msra.mxu0 %v973
    %v975 = vand.u32 %v786, 4294901760
    %v976 = vsub.f32 %v786, %v975
    %977 = vmatpush.msra.mxu0 %v976
    %v978 = vand.u32 %v785, 4294901760
    %v979 = vsub.f32 %v785, %v978
    %980 = vmatpush.msra.mxu0 %v979
    %v981 = vand.u32 %v784, 4294901760
    %v982 = vsub.f32 %v784, %v981
    %983 = vmatpush.msra.mxu0 %v982
    %v984 = vand.u32 %v783, 4294901760
    %v985 = vsub.f32 %v783, %v984
    %986 = vmatpush.msra.mxu0 %v985
    %v987 = vand.u32 %v782, 4294901760
    %v988 = vsub.f32 %v782, %v987
    %989 = vmatpush.msra.mxu0 %v988
    %v990 = vand.u32 %v781, 4294901760
    %v991 = vsub.f32 %v781, %v990
    %992 = vmatpush.msra.mxu0 %v991
    %v993 = vand.u32 %v780, 4294901760
    %v994 = vsub.f32 %v780, %v993
    %995 = vmatpush.msra.mxu0 %v994
    %v996 = vand.u32 %v779, 4294901760
    %v997 = vsub.f32 %v779, %v996
    %998 = vmatpush.msra.mxu0 %v997
    %v999 = vand.u32 %v777, 4294901760
    %v1000 = vsub.f32 %v777, %v999
    %1001 = vmatmul.f32.gmra.mxu0 %v1000
    %v1002 = vpop.f32.mrf.mxu0
    %v1003 = vadd.f32 %v945, %v1002
    %v1004 = vand.u32 %v778, 4294901760
    %v1005 = vsub.f32 %v778, %v1004
    %1006 = vmatmul.f32.gmra.mxu0 %v1005
    %v1007 = vpop.f32.mrf.mxu0
    %v1008 = vadd.f32 %v949, %v1007
    %1009 = vdwg.mxu0
    %v1010 = vand.u32 %v794, 4294901760
    %1011 = vmatpush.msra.mxu0 %v1010
    %v1012 = vand.u32 %v793, 4294901760
    %1013 = vmatpush.msra.mxu0 %v1012
    %v1014 = vand.u32 %v792, 4294901760
    %1015 = vmatpush.msra.mxu0 %v1014
    %v1016 = vand.u32 %v791, 4294901760
    %1017 = vmatpush.msra.mxu0 %v1016
    %v1018 = vand.u32 %v790, 4294901760
    %1019 = vmatpush.msra.mxu0 %v1018
    %v1020 = vand.u32 %v789, 4294901760
    %1021 = vmatpush.msra.mxu0 %v1020
    %v1022 = vand.u32 %v788, 4294901760
    %1023 = vmatpush.msra.mxu0 %v1022
    %v1024 = vand.u32 %v787, 4294901760
    %1025 = vmatpush.msra.mxu0 %v1024
    %v1026 = vand.u32 %v786, 4294901760
    %1027 = vmatpush.msra.mxu0 %v1026
    %v1028 = vand.u32 %v785, 4294901760
    %1029 = vmatpush.msra.mxu0 %v1028
    %v1030 = vand.u32 %v784, 4294901760
    %1031 = vmatpush.msra.mxu0 %v1030
    %v1032 = vand.u32 %v783, 4294901760
    %1033 = vmatpush.msra.mxu0 %v1032
    %v1034 = vand.u32 %v782, 4294901760
    %1035 = vmatpush.msra.mxu0 %v1034
    %v1036 = vand.u32 %v781, 4294901760
    %1037 = vmatpush.msra.mxu0 %v1036
    %v1038 = vand.u32 %v780, 4294901760
    %1039 = vmatpush.msra.mxu0 %v1038
    %v1040 = vand.u32 %v779, 4294901760
    %1041 = vmatpush.msra.mxu0 %v1040
    %v1042 = vand.u32 %v777, 4294901760
    %v1043 = vsub.f32 %v777, %v1042
    %v1044 = vand.u32 %v1043, 4294901760
    %1045 = vmatmul.f32.gmra.mxu0 %v1044
    %v1046 = vpop.f32.mrf.mxu0
    %v1047 = vadd.f32 %v1003, %v1046
    %v1048 = vand.u32 %v778, 4294901760
    %v1049 = vsub.f32 %v778, %v1048
    %v1050 = vand.u32 %v1049, 4294901760
    %1051 = vmatmul.f32.gmra.mxu0 %v1050
    %v1052 = vpop.f32.mrf.mxu0
    %v1053 = vadd.f32 %v1008, %v1052
    %1054 = vdwg.mxu0
    %v1055 = vand.u32 %v794, 4294901760
    %v1056 = vsub.f32 %v794, %v1055
    %v1057 = vand.u32 %v1056, 4294901760
    %1058 = vmatpush.msra.mxu0 %v1057
    %v1059 = vand.u32 %v793, 4294901760
    %v1060 = vsub.f32 %v793, %v1059
    %v1061 = vand.u32 %v1060, 4294901760
    %1062 = vmatpush.msra.mxu0 %v1061
    %v1063 = vand.u32 %v792, 4294901760
    %v1064 = vsub.f32 %v792, %v1063
    %v1065 = vand.u32 %v1064, 4294901760
    %1066 = vmatpush.msra.mxu0 %v1065
    %v1067 = vand.u32 %v791, 4294901760
    %v1068 = vsub.f32 %v791, %v1067
    %v1069 = vand.u32 %v1068, 4294901760
    %1070 = vmatpush.msra.mxu0 %v1069
    %v1071 = vand.u32 %v790, 4294901760
    %v1072 = vsub.f32 %v790, %v1071
    %v1073 = vand.u32 %v1072, 4294901760
    %1074 = vmatpush.msra.mxu0 %v1073
    %v1075 = vand.u32 %v789, 4294901760
    %v1076 = vsub.f32 %v789, %v1075
    %v1077 = vand.u32 %v1076, 4294901760
    %1078 = vmatpush.msra.mxu0 %v1077
    %v1079 = vand.u32 %v788, 4294901760
    %v1080 = vsub.f32 %v788, %v1079
    %v1081 = vand.u32 %v1080, 4294901760
    %1082 = vmatpush.msra.mxu0 %v1081
    %v1083 = vand.u32 %v787, 4294901760
    %v1084 = vsub.f32 %v787, %v1083
    %v1085 = vand.u32 %v1084, 4294901760
    %1086 = vmatpush.msra.mxu0 %v1085
    %v1087 = vand.u32 %v786, 4294901760
    %v1088 = vsub.f32 %v786, %v1087
    %v1089 = vand.u32 %v1088, 4294901760
    %1090 = vmatpush.msra.mxu0 %v1089
    %v1091 = vand.u32 %v785, 4294901760
    %v1092 = vsub.f32 %v785, %v1091
    %v1093 = vand.u32 %v1092, 4294901760
    %1094 = vmatpush.msra.mxu0 %v1093
    %v1095 = vand.u32 %v784, 4294901760
    %v1096 = vsub.f32 %v784, %v1095
    %v1097 = vand.u32 %v1096, 4294901760
    %1098 = vmatpush.msra.mxu0 %v1097
    %v1099 = vand.u32 %v783, 4294901760
    %v1100 = vsub.f32 %v783, %v1099
    %v1101 = vand.u32 %v1100, 4294901760
    %1102 = vmatpush.msra.mxu0 %v1101
    %v1103 = vand.u32 %v782, 4294901760
    %v1104 = vsub.f32 %v782, %v1103
    %v1105 = vand.u32 %v1104, 4294901760
    %1106 = vmatpush.msra.mxu0 %v1105
    %v1107 = vand.u32 %v781, 4294901760
    %v1108 = vsub.f32 %v781, %v1107
    %v1109 = vand.u32 %v1108, 4294901760
    %1110 = vmatpush.msra.mxu0 %v1109
    %v1111 = vand.u32 %v780, 4294901760
    %v1112 = vsub.f32 %v780, %v1111
    %v1113 = vand.u32 %v1112, 4294901760
    %1114 = vmatpush.msra.mxu0 %v1113
    %v1115 = vand.u32 %v779, 4294901760
    %v1116 = vsub.f32 %v779, %v1115
    %v1117 = vand.u32 %v1116, 4294901760
    %1118 = vmatpush.msra.mxu0 %v1117
    %v1119 = vand.u32 %v777, 4294901760
    %1120 = vmatmul.f32.gmra.mxu0 %v1119
    %v1121 = vpop.f32.mrf.mxu0
    %v1122 = vadd.f32 %v1047, %v1121
    %v1123 = vand.u32 %v778, 4294901760
    %1124 = vmatmul.f32.gmra.mxu0 %v1123
    %v1125 = vpop.f32.mrf.mxu0
    %v1126 = vadd.f32 %v1053, %v1125
    %1127 = vdwg.mxu0
    %v1128 = vand.u32 %v794, 4294901760
    %1129 = vmatpush.msra.mxu0 %v1128
    %v1130 = vand.u32 %v793, 4294901760
    %1131 = vmatpush.msra.mxu0 %v1130
    %v1132 = vand.u32 %v792, 4294901760
    %1133 = vmatpush.msra.mxu0 %v1132
    %v1134 = vand.u32 %v791, 4294901760
    %1135 = vmatpush.msra.mxu0 %v1134
    %v1136 = vand.u32 %v790, 4294901760
    %1137 = vmatpush.msra.mxu0 %v1136
    %v1138 = vand.u32 %v789, 4294901760
    %1139 = vmatpush.msra.mxu0 %v1138
    %v1140 = vand.u32 %v788, 4294901760
    %1141 = vmatpush.msra.mxu0 %v1140
    %v1142 = vand.u32 %v787, 4294901760
    %1143 = vmatpush.msra.mxu0 %v1142
    %v1144 = vand.u32 %v786, 4294901760
    %1145 = vmatpush.msra.mxu0 %v1144
    %v1146 = vand.u32 %v785, 4294901760
    %1147 = vmatpush.msra.mxu0 %v1146
    %v1148 = vand.u32 %v784, 4294901760
    %1149 = vmatpush.msra.mxu0 %v1148
    %v1150 = vand.u32 %v783, 4294901760
    %1151 = vmatpush.msra.mxu0 %v1150
    %v1152 = vand.u32 %v782, 4294901760
    %1153 = vmatpush.msra.mxu0 %v1152
    %v1154 = vand.u32 %v781, 4294901760
    %1155 = vmatpush.msra.mxu0 %v1154
    %v1156 = vand.u32 %v780, 4294901760
    %1157 = vmatpush.msra.mxu0 %v1156
    %v1158 = vand.u32 %v779, 4294901760
    %1159 = vmatpush.msra.mxu0 %v1158
    %v1160 = vand.u32 %v777, 4294901760
    %1161 = vmatmul.f32.gmra.mxu0 %v1160
    %v1162 = vpop.f32.mrf.mxu0
    %v1163 = vadd.f32 %v1122, %v1162
    %v1164 = vand.u32 %v778, 4294901760
    %1165 = vmatmul.f32.gmra.mxu0 %v1164
    %v1166 = vpop.f32.mrf.mxu0
    %v1167 = vadd.f32 %v1126, %v1166
    %1168 = vdwg.mxu0
    %v1169 = vadd.f32 %v256, %v1163
    %v1170 = vadd.f32 %v260, %v1167
    %v1171 = vxor.u32 %v1169, 2147483648
    %v1172 = vxor.u32 %v1170, 2147483648
    %v1173 = vmul.f32 %v1171, 1.442695
    %v1174 = vpow.pop %v1173
    %v1175 = vmul.f32 %v1172, 1.442695
    %v1176 = vpow.pop %v1175
    %v1177 = vadd.f32 %v1174, 1.0
    %v1178 = vadd.f32 %v1176, 1.0
    %v1179 = vrcp.pop %v1177
    %v1180 = vmul.f32 %v1177, %v1179
    %v1181 = vsub.f32 1.0, %v1180
    %v1182 = vmul.f32 %v1179, %v1181
    %v1183 = vadd.f32 %v1179, %v1182
    %vm1184 = vweird.f32 %v1177
    %vm1185 = vweird.f32 %v1179
    %vm1186 = vmor %vm1184, %vm1185
    %v1187 = vsel %vm1186, %v1179, %v1183
    %v1188 = vand.u32 2147483647, %v1177
    %vm1189 = vcmp.eq.f32.partialorder %v1188, 8.507059e+37
    %v1190 = vand.u32 %v1177, 2147483648
    %v1191 = vor.u32 1.1754944e-38, %v1190
    %v1192 = vsel %vm1189, %v1191, %v1187
    %v1193 = vmul.f32 1.0, %v1192
    %v1194 = vrcp.pop %v1178
    %v1195 = vmul.f32 %v1178, %v1194
    %v1196 = vsub.f32 1.0, %v1195
    %v1197 = vmul.f32 %v1194, %v1196
    %v1198 = vadd.f32 %v1194, %v1197
    %vm1199 = vweird.f32 %v1178
    %vm1200 = vweird.f32 %v1194
    %vm1201 = vmor %vm1199, %vm1200
    %v1202 = vsel %vm1201, %v1194, %v1198
    %v1203 = vand.u32 2147483647, %v1178
    %vm1204 = vcmp.eq.f32.partialorder %v1203, 8.507059e+37
    %v1205 = vand.u32 %v1178, 2147483648
    %v1206 = vor.u32 1.1754944e-38, %v1205
    %v1207 = vsel %vm1204, %v1206, %v1202
    %v1208 = vmul.f32 1.0, %v1207
    %v1209 = vmul.f32 %v1169, %v1193
    %v1210 = vmul.f32 %v1170, %v1208
    %1211 = vadd.xlane.f32.xlu0 %v1209
    %v1212 = vpop.xlane.xlu0 %1211
    %1213 = vadd.xlane.f32.xlu0 %v1210
    %v1214 = vpop.xlane.xlu0 %1213
    %v1215 = vmul.f32 %v1212, %v272
    %v1216 = vmul.f32 %v1214, %v272
    %v1217 = vsub.f32 %v1209, %v1215
    %v1218 = vsub.f32 %v1210, %v1216
    %v1219 = vmul.f32 %v1217, %v1217
    %v1220 = vmul.f32 %v1218, %v1218
    %1221 = vadd.xlane.f32.xlu0 %v1219
    %v1222 = vpop.xlane.xlu0 %1221
    %1223 = vadd.xlane.f32.xlu0 %v1220
    %v1224 = vpop.xlane.xlu0 %1223
    %v1225 = vmul.f32 %v1222, %v272
    %v1226 = vmul.f32 %v1224, %v272
    %v1227 = vadd.f32 %v1225, 1e-05
    %v1228 = vadd.f32 %v1226, 1e-05
    %v1229 = vrsqrt.pop %v1227
    %v1230 = vmul.f32 %v1229, %v1227
    %v1231 = vmul.f32 %v1230, %v1229
    %v1232 = vmul.f32 0.5, %v1231
    %v1233 = vsub.f32 1.5, %v1232
    %v1234 = vmul.f32 %v1229, %v1233
    %vm1235 = vweird.f32 %v1227
    %vm1236 = vweird.f32 %v1229
    %vm1237 = vmor %vm1235, %vm1236
    %v1238 = vsel %vm1237, %v1229, %v1234
    %v1239 = vrsqrt.pop %v1228
    %v1240 = vmul.f32 %v1239, %v1228
    %v1241 = vmul.f32 %v1240, %v1239
    %v1242 = vmul.f32 0.5, %v1241
    %v1243 = vsub.f32 1.5, %v1242
    %v1244 = vmul.f32 %v1239, %v1243
    %vm1245 = vweird.f32 %v1228
    %vm1246 = vweird.f32 %v1239
    %vm1247 = vmor %vm1245, %vm1246
    %v1248 = vsel %vm1247, %v1239, %v1244
    %v1249 = vmul.f32 %v1217, %v1238
    %v1250 = vmul.f32 %v1218, %v1248
    %s1251 = scalar_lea.vmem [#allocation2], 128
    %v1252 = vld [vmem:[%s1251] sm:$0xff]
    %v1253 = vld [vmem:[%s1251 + $0x8] sm:$0xff]
    %v1254 = vld [vmem:[%s1251 + $0x10] sm:$0xff]
    %v1255 = vld [vmem:[%s1251 + $0x18] sm:$0xff]
    %v1256 = vld [vmem:[%s1251 + $0x20] sm:$0xff]
    %v1257 = vld [vmem:[%s1251 + $0x28] sm:$0xff]
    %v1258 = vld [vmem:[%s1251 + $0x30] sm:$0xff]
    %v1259 = vld [vmem:[%s1251 + $0x38] sm:$0xff]
    %v1260 = vld [vmem:[%s1251 + $0x40] sm:$0xff]
    %v1261 = vld [vmem:[%s1251 + $0x48] sm:$0xff]
    %v1262 = vld [vmem:[%s1251 + $0x50] sm:$0xff]
    %v1263 = vld [vmem:[%s1251 + $0x58] sm:$0xff]
    %v1264 = vld [vmem:[%s1251 + $0x60] sm:$0xff]
    %v1265 = vld [vmem:[%s1251 + $0x68] sm:$0xff]
    %v1266 = vld [vmem:[%s1251 + $0x70] sm:$0xff]
    %v1267 = vld [vmem:[%s1251 + $0x78] sm:$0xff]
    %v1268 = vld [vmem:[%s5 + $0x2] sm:$0x1]
    %v1269 = vperm.slane %v1268, 0
    %v1270 = vand.u32 %v1267, 4294901760
    %1271 = vmatpush.msra.mxu0 %v1270
    %v1272 = vand.u32 %v1266, 4294901760
    %1273 = vmatpush.msra.mxu0 %v1272
    %v1274 = vand.u32 %v1265, 4294901760
    %1275 = vmatpush.msra.mxu0 %v1274
    %v1276 = vand.u32 %v1264, 4294901760
    %1277 = vmatpush.msra.mxu0 %v1276
    %v1278 = vand.u32 %v1263, 4294901760
    %1279 = vmatpush.msra.mxu0 %v1278
    %v1280 = vand.u32 %v1262, 4294901760
    %1281 = vmatpush.msra.mxu0 %v1280
    %v1282 = vand.u32 %v1261, 4294901760
    %1283 = vmatpush.msra.mxu0 %v1282
    %v1284 = vand.u32 %v1260, 4294901760
    %1285 = vmatpush.msra.mxu0 %v1284
    %v1286 = vand.u32 %v1259, 4294901760
    %1287 = vmatpush.msra.mxu0 %v1286
    %v1288 = vand.u32 %v1258, 4294901760
    %1289 = vmatpush.msra.mxu0 %v1288
    %v1290 = vand.u32 %v1257, 4294901760
    %1291 = vmatpush.msra.mxu0 %v1290
    %v1292 = vand.u32 %v1256, 4294901760
    %1293 = vmatpush.msra.mxu0 %v1292
    %v1294 = vand.u32 %v1255, 4294901760
    %1295 = vmatpush.msra.mxu0 %v1294
    %v1296 = vand.u32 %v1254, 4294901760
    %1297 = vmatpush.msra.mxu0 %v1296
    %v1298 = vand.u32 %v1253, 4294901760
    %1299 = vmatpush.msra.mxu0 %v1298
    %v1300 = vand.u32 %v1252, 4294901760
    %1301 = vmatpush.msra.mxu0 %v1300
    %v1302 = vand.u32 %v1249, 4294901760
    %v1303 = vsub.f32 %v1249, %v1302
    %v1304 = vand.u32 %v1303, 4294901760
    %v1305 = vsub.f32 %v1303, %v1304
    %v1306 = vand.u32 %v1305, 4294901760
    %1307 = vmatmul.f32.gmra.mxu0 %v1306
    %v1308 = vpop.f32.mrf.mxu0
    %v1309 = vadd.f32 %v1269, %v1308
    %v1310 = vand.u32 %v1250, 4294901760
    %v1311 = vsub.f32 %v1250, %v1310
    %v1312 = vand.u32 %v1311, 4294901760
    %v1313 = vsub.f32 %v1311, %v1312
    %v1314 = vand.u32 %v1313, 4294901760
    %1315 = vmatmul.f32.gmra.mxu0 %v1314
    %v1316 = vpop.f32.mrf.mxu0
    %v1317 = vadd.f32 %v1269, %v1316
    %1318 = vdwg.mxu0
    %v1319 = vand.u32 %v1267, 4294901760
    %v1320 = vsub.f32 %v1267, %v1319
    %v1321 = vand.u32 %v1320, 4294901760
    %v1322 = vsub.f32 %v1320, %v1321
    %v1323 = vand.u32 %v1322, 4294901760
    %1324 = vmatpush.msra.mxu0 %v1323
    %v1325 = vand.u32 %v1266, 4294901760
    %v1326 = vsub.f32 %v1266, %v1325
    %v1327 = vand.u32 %v1326, 4294901760
    %v1328 = vsub.f32 %v1326, %v1327
    %v1329 = vand.u32 %v1328, 4294901760
    %1330 = vmatpush.msra.mxu0 %v1329
    %v1331 = vand.u32 %v1265, 4294901760
    %v1332 = vsub.f32 %v1265, %v1331
    %v1333 = vand.u32 %v1332, 4294901760
    %v1334 = vsub.f32 %v1332, %v1333
    %v1335 = vand.u32 %v1334, 4294901760
    %1336 = vmatpush.msra.mxu0 %v1335
    %v1337 = vand.u32 %v1264, 4294901760
    %v1338 = vsub.f32 %v1264, %v1337
    %v1339 = vand.u32 %v1338, 4294901760
    %v1340 = vsub.f32 %v1338, %v1339
    %v1341 = vand.u32 %v1340, 4294901760
    %1342 = vmatpush.msra.mxu0 %v1341
    %v1343 = vand.u32 %v1263, 4294901760
    %v1344 = vsub.f32 %v1263, %v1343
    %v1345 = vand.u32 %v1344, 4294901760
    %v1346 = vsub.f32 %v1344, %v1345
    %v1347 = vand.u32 %v1346, 4294901760
    %1348 = vmatpush.msra.mxu0 %v1347
    %v1349 = vand.u32 %v1262, 4294901760
    %v1350 = vsub.f32 %v1262, %v1349
    %v1351 = vand.u32 %v1350, 4294901760
    %v1352 = vsub.f32 %v1350, %v1351
    %v1353 = vand.u32 %v1352, 4294901760
    %1354 = vmatpush.msra.mxu0 %v1353
    %v1355 = vand.u32 %v1261, 4294901760
    %v1356 = vsub.f32 %v1261, %v1355
    %v1357 = vand.u32 %v1356, 4294901760
    %v1358 = vsub.f32 %v1356, %v1357
    %v1359 = vand.u32 %v1358, 4294901760
    %1360 = vmatpush.msra.mxu0 %v1359
    %v1361 = vand.u32 %v1260, 4294901760
    %v1362 = vsub.f32 %v1260, %v1361
    %v1363 = vand.u32 %v1362, 4294901760
    %v1364 = vsub.f32 %v1362, %v1363
    %v1365 = vand.u32 %v1364, 4294901760
    %1366 = vmatpush.msra.mxu0 %v1365
    %v1367 = vand.u32 %v1259, 4294901760
    %v1368 = vsub.f32 %v1259, %v1367
    %v1369 = vand.u32 %v1368, 4294901760
    %v1370 = vsub.f32 %v1368, %v1369
    %v1371 = vand.u32 %v1370, 4294901760
    %1372 = vmatpush.msra.mxu0 %v1371
    %v1373 = vand.u32 %v1258, 4294901760
    %v1374 = vsub.f32 %v1258, %v1373
    %v1375 = vand.u32 %v1374, 4294901760
    %v1376 = vsub.f32 %v1374, %v1375
    %v1377 = vand.u32 %v1376, 4294901760
    %1378 = vmatpush.msra.mxu0 %v1377
    %v1379 = vand.u32 %v1257, 4294901760
    %v1380 = vsub.f32 %v1257, %v1379
    %v1381 = vand.u32 %v1380, 4294901760
    %v1382 = vsub.f32 %v1380, %v1381
    %v1383 = vand.u32 %v1382, 4294901760
    %1384 = vmatpush.msra.mxu0 %v1383
    %v1385 = vand.u32 %v1256, 4294901760
    %v1386 = vsub.f32 %v1256, %v1385
    %v1387 = vand.u32 %v1386, 4294901760
    %v1388 = vsub.f32 %v1386, %v1387
    %v1389 = vand.u32 %v1388, 4294901760
    %1390 = vmatpush.msra.mxu0 %v1389
    %v1391 = vand.u32 %v1255, 4294901760
    %v1392 = vsub.f32 %v1255, %v1391
    %v1393 = vand.u32 %v1392, 4294901760
    %v1394 = vsub.f32 %v1392, %v1393
    %v1395 = vand.u32 %v1394, 4294901760
    %1396 = vmatpush.msra.mxu0 %v1395
    %v1397 = vand.u32 %v1254, 4294901760
    %v1398 = vsub.f32 %v1254, %v1397
    %v1399 = vand.u32 %v1398, 4294901760
    %v1400 = vsub.f32 %v1398, %v1399
    %v1401 = vand.u32 %v1400, 4294901760
    %1402 = vmatpush.msra.mxu0 %v1401
    %v1403 = vand.u32 %v1253, 4294901760
    %v1404 = vsub.f32 %v1253, %v1403
    %v1405 = vand.u32 %v1404, 4294901760
    %v1406 = vsub.f32 %v1404, %v1405
    %v1407 = vand.u32 %v1406, 4294901760
    %1408 = vmatpush.msra.mxu0 %v1407
    %v1409 = vand.u32 %v1252, 4294901760
    %v1410 = vsub.f32 %v1252, %v1409
    %v1411 = vand.u32 %v1410, 4294901760
    %v1412 = vsub.f32 %v1410, %v1411
    %v1413 = vand.u32 %v1412, 4294901760
    %1414 = vmatpush.msra.mxu0 %v1413
    %v1415 = vand.u32 %v1249, 4294901760
    %1416 = vmatmul.f32.gmra.mxu0 %v1415
    %v1417 = vpop.f32.mrf.mxu0
    %v1418 = vadd.f32 %v1309, %v1417
    %v1419 = vand.u32 %v1250, 4294901760
    %1420 = vmatmul.f32.gmra.mxu0 %v1419
    %v1421 = vpop.f32.mrf.mxu0
    %v1422 = vadd.f32 %v1317, %v1421
    %1423 = vdwg.mxu0
    %v1424 = vand.u32 %v1267, 4294901760
    %v1425 = vsub.f32 %v1267, %v1424
    %1426 = vmatpush.msra.mxu0 %v1425
    %v1427 = vand.u32 %v1266, 4294901760
    %v1428 = vsub.f32 %v1266, %v1427
    %1429 = vmatpush.msra.mxu0 %v1428
    %v1430 = vand.u32 %v1265, 4294901760
    %v1431 = vsub.f32 %v1265, %v1430
    %1432 = vmatpush.msra.mxu0 %v1431
    %v1433 = vand.u32 %v1264, 4294901760
    %v1434 = vsub.f32 %v1264, %v1433
    %1435 = vmatpush.msra.mxu0 %v1434
    %v1436 = vand.u32 %v1263, 4294901760
    %v1437 = vsub.f32 %v1263, %v1436
    %1438 = vmatpush.msra.mxu0 %v1437
    %v1439 = vand.u32 %v1262, 4294901760
    %v1440 = vsub.f32 %v1262, %v1439
    %1441 = vmatpush.msra.mxu0 %v1440
    %v1442 = vand.u32 %v1261, 4294901760
    %v1443 = vsub.f32 %v1261, %v1442
    %1444 = vmatpush.msra.mxu0 %v1443
    %v1445 = vand.u32 %v1260, 4294901760
    %v1446 = vsub.f32 %v1260, %v1445
    %1447 = vmatpush.msra.mxu0 %v1446
    %v1448 = vand.u32 %v1259, 4294901760
    %v1449 = vsub.f32 %v1259, %v1448
    %1450 = vmatpush.msra.mxu0 %v1449
    %v1451 = vand.u32 %v1258, 4294901760
    %v1452 = vsub.f32 %v1258, %v1451
    %1453 = vmatpush.msra.mxu0 %v1452
    %v1454 = vand.u32 %v1257, 4294901760
    %v1455 = vsub.f32 %v1257, %v1454
    %1456 = vmatpush.msra.mxu0 %v1455
    %v1457 = vand.u32 %v1256, 4294901760
    %v1458 = vsub.f32 %v1256, %v1457
    %1459 = vmatpush.msra.mxu0 %v1458
    %v1460 = vand.u32 %v1255, 4294901760
    %v1461 = vsub.f32 %v1255, %v1460
    %1462 = vmatpush.msra.mxu0 %v1461
    %v1463 = vand.u32 %v1254, 4294901760
    %v1464 = vsub.f32 %v1254, %v1463
    %1465 = vmatpush.msra.mxu0 %v1464
    %v1466 = vand.u32 %v1253, 4294901760
    %v1467 = vsub.f32 %v1253, %v1466
    %1468 = vmatpush.msra.mxu0 %v1467
    %v1469 = vand.u32 %v1252, 4294901760
    %v1470 = vsub.f32 %v1252, %v1469
    %1471 = vmatpush.msra.mxu0 %v1470
    %v1472 = vand.u32 %v1249, 4294901760
    %v1473 = vsub.f32 %v1249, %v1472
    %1474 = vmatmul.f32.gmra.mxu0 %v1473
    %v1475 = vpop.f32.mrf.mxu0
    %v1476 = vadd.f32 %v1418, %v1475
    %v1477 = vand.u32 %v1250, 4294901760
    %v1478 = vsub.f32 %v1250, %v1477
    %1479 = vmatmul.f32.gmra.mxu0 %v1478
    %v1480 = vpop.f32.mrf.mxu0
    %v1481 = vadd.f32 %v1422, %v1480
    %1482 = vdwg.mxu0
    %v1483 = vand.u32 %v1267, 4294901760
    %1484 = vmatpush.msra.mxu0 %v1483
    %v1485 = vand.u32 %v1266, 4294901760
    %1486 = vmatpush.msra.mxu0 %v1485
    %v1487 = vand.u32 %v1265, 4294901760
    %1488 = vmatpush.msra.mxu0 %v1487
    %v1489 = vand.u32 %v1264, 4294901760
    %1490 = vmatpush.msra.mxu0 %v1489
    %v1491 = vand.u32 %v1263, 4294901760
    %1492 = vmatpush.msra.mxu0 %v1491
    %v1493 = vand.u32 %v1262, 4294901760
    %1494 = vmatpush.msra.mxu0 %v1493
    %v1495 = vand.u32 %v1261, 4294901760
    %1496 = vmatpush.msra.mxu0 %v1495
    %v1497 = vand.u32 %v1260, 4294901760
    %1498 = vmatpush.msra.mxu0 %v1497
    %v1499 = vand.u32 %v1259, 4294901760
    %1500 = vmatpush.msra.mxu0 %v1499
    %v1501 = vand.u32 %v1258, 4294901760
    %1502 = vmatpush.msra.mxu0 %v1501
    %v1503 = vand.u32 %v1257, 4294901760
    %1504 = vmatpush.msra.mxu0 %v1503
    %v1505 = vand.u32 %v1256, 4294901760
    %1506 = vmatpush.msra.mxu0 %v1505
    %v1507 = vand.u32 %v1255, 4294901760
    %1508 = vmatpush.msra.mxu0 %v1507
    %v1509 = vand.u32 %v1254, 4294901760
    %1510 = vmatpush.msra.mxu0 %v1509
    %v1511 = vand.u32 %v1253, 4294901760
    %1512 = vmatpush.msra.mxu0 %v1511
    %v1513 = vand.u32 %v1252, 4294901760
    %1514 = vmatpush.msra.mxu0 %v1513
    %v1515 = vand.u32 %v1249, 4294901760
    %v1516 = vsub.f32 %v1249, %v1515
    %v1517 = vand.u32 %v1516, 4294901760
    %1518 = vmatmul.f32.gmra.mxu0 %v1517
    %v1519 = vpop.f32.mrf.mxu0
    %v1520 = vadd.f32 %v1476, %v1519
    %v1521 = vand.u32 %v1250, 4294901760
    %v1522 = vsub.f32 %v1250, %v1521
    %v1523 = vand.u32 %v1522, 4294901760
    %1524 = vmatmul.f32.gmra.mxu0 %v1523
    %v1525 = vpop.f32.mrf.mxu0
    %v1526 = vadd.f32 %v1481, %v1525
    %1527 = vdwg.mxu0
    %v1528 = vand.u32 %v1267, 4294901760
    %v1529 = vsub.f32 %v1267, %v1528
    %v1530 = vand.u32 %v1529, 4294901760
    %1531 = vmatpush.msra.mxu0 %v1530
    %v1532 = vand.u32 %v1266, 4294901760
    %v1533 = vsub.f32 %v1266, %v1532
    %v1534 = vand.u32 %v1533, 4294901760
    %1535 = vmatpush.msra.mxu0 %v1534
    %v1536 = vand.u32 %v1265, 4294901760
    %v1537 = vsub.f32 %v1265, %v1536
    %v1538 = vand.u32 %v1537, 4294901760
    %1539 = vmatpush.msra.mxu0 %v1538
    %v1540 = vand.u32 %v1264, 4294901760
    %v1541 = vsub.f32 %v1264, %v1540
    %v1542 = vand.u32 %v1541, 4294901760
    %1543 = vmatpush.msra.mxu0 %v1542
    %v1544 = vand.u32 %v1263, 4294901760
    %v1545 = vsub.f32 %v1263, %v1544
    %v1546 = vand.u32 %v1545, 4294901760
    %1547 = vmatpush.msra.mxu0 %v1546
    %v1548 = vand.u32 %v1262, 4294901760
    %v1549 = vsub.f32 %v1262, %v1548
    %v1550 = vand.u32 %v1549, 4294901760
    %1551 = vmatpush.msra.mxu0 %v1550
    %v1552 = vand.u32 %v1261, 4294901760
    %v1553 = vsub.f32 %v1261, %v1552
    %v1554 = vand.u32 %v1553, 4294901760
    %1555 = vmatpush.msra.mxu0 %v1554
    %v1556 = vand.u32 %v1260, 4294901760
    %v1557 = vsub.f32 %v1260, %v1556
    %v1558 = vand.u32 %v1557, 4294901760
    %1559 = vmatpush.msra.mxu0 %v1558
    %v1560 = vand.u32 %v1259, 4294901760
    %v1561 = vsub.f32 %v1259, %v1560
    %v1562 = vand.u32 %v1561, 4294901760
    %1563 = vmatpush.msra.mxu0 %v1562
    %v1564 = vand.u32 %v1258, 4294901760
    %v1565 = vsub.f32 %v1258, %v1564
    %v1566 = vand.u32 %v1565, 4294901760
    %1567 = vmatpush.msra.mxu0 %v1566
    %v1568 = vand.u32 %v1257, 4294901760
    %v1569 = vsub.f32 %v1257, %v1568
    %v1570 = vand.u32 %v1569, 4294901760
    %1571 = vmatpush.msra.mxu0 %v1570
    %v1572 = vand.u32 %v1256, 4294901760
    %v1573 = vsub.f32 %v1256, %v1572
    %v1574 = vand.u32 %v1573, 4294901760
    %1575 = vmatpush.msra.mxu0 %v1574
    %v1576 = vand.u32 %v1255, 4294901760
    %v1577 = vsub.f32 %v1255, %v1576
    %v1578 = vand.u32 %v1577, 4294901760
    %1579 = vmatpush.msra.mxu0 %v1578
    %v1580 = vand.u32 %v1254, 4294901760
    %v1581 = vsub.f32 %v1254, %v1580
    %v1582 = vand.u32 %v1581, 4294901760
    %1583 = vmatpush.msra.mxu0 %v1582
    %v1584 = vand.u32 %v1253, 4294901760
    %v1585 = vsub.f32 %v1253, %v1584
    %v1586 = vand.u32 %v1585, 4294901760
    %1587 = vmatpush.msra.mxu0 %v1586
    %v1588 = vand.u32 %v1252, 4294901760
    %v1589 = vsub.f32 %v1252, %v1588
    %v1590 = vand.u32 %v1589, 4294901760
    %1591 = vmatpush.msra.mxu0 %v1590
    %v1592 = vand.u32 %v1249, 4294901760
    %1593 = vmatmul.f32.gmra.mxu0 %v1592
    %v1594 = vpop.f32.mrf.mxu0
    %v1595 = vadd.f32 %v1520, %v1594
    %v1596 = vand.u32 %v1250, 4294901760
    %1597 = vmatmul.f32.gmra.mxu0 %v1596
    %v1598 = vpop.f32.mrf.mxu0
    %v1599 = vadd.f32 %v1526, %v1598
    %1600 = vdwg.mxu0
    %v1601 = vand.u32 %v1267, 4294901760
    %1602 = vmatpush.msra.mxu0 %v1601
    %v1603 = vand.u32 %v1266, 4294901760
    %1604 = vmatpush.msra.mxu0 %v1603
    %v1605 = vand.u32 %v1265, 4294901760
    %1606 = vmatpush.msra.mxu0 %v1605
    %v1607 = vand.u32 %v1264, 4294901760
    %1608 = vmatpush.msra.mxu0 %v1607
    %v1609 = vand.u32 %v1263, 4294901760
    %1610 = vmatpush.msra.mxu0 %v1609
    %v1611 = vand.u32 %v1262, 4294901760
    %1612 = vmatpush.msra.mxu0 %v1611
    %v1613 = vand.u32 %v1261, 4294901760
    %1614 = vmatpush.msra.mxu0 %v1613
    %v1615 = vand.u32 %v1260, 4294901760
    %1616 = vmatpush.msra.mxu0 %v1615
    %v1617 = vand.u32 %v1259, 4294901760
    %1618 = vmatpush.msra.mxu0 %v1617
    %v1619 = vand.u32 %v1258, 4294901760
    %1620 = vmatpush.msra.mxu0 %v1619
    %v1621 = vand.u32 %v1257, 4294901760
    %1622 = vmatpush.msra.mxu0 %v1621
    %v1623 = vand.u32 %v1256, 4294901760
    %1624 = vmatpush.msra.mxu0 %v1623
    %v1625 = vand.u32 %v1255, 4294901760
    %1626 = vmatpush.msra.mxu0 %v1625
    %v1627 = vand.u32 %v1254, 4294901760
    %1628 = vmatpush.msra.mxu0 %v1627
    %v1629 = vand.u32 %v1253, 4294901760
    %1630 = vmatpush.msra.mxu0 %v1629
    %v1631 = vand.u32 %v1252, 4294901760
    %1632 = vmatpush.msra.mxu0 %v1631
    %v1633 = vand.u32 %v1249, 4294901760
    %1634 = vmatmul.f32.gmra.mxu0 %v1633
    %v1635 = vpop.f32.mrf.mxu0
    %v1636 = vadd.f32 %v1595, %v1635
    %v1637 = vand.u32 %v1250, 4294901760
    %1638 = vmatmul.f32.gmra.mxu0 %v1637
    %v1639 = vpop.f32.mrf.mxu0
    %v1640 = vadd.f32 %v1599, %v1639
    %1641 = vdwg.mxu0
    %v1642 = vxor.u32 %v1636, 2147483648
    %v1643 = vxor.u32 %v1640, 2147483648
    %v1644 = vmul.f32 %v1642, 1.442695
    %v1645 = vpow.pop %v1644
    %v1646 = vmul.f32 %v1643, 1.442695
    %v1647 = vpow.pop %v1646
    %v1648 = vadd.f32 %v1645, 1.0
    %v1649 = vadd.f32 %v1647, 1.0
    %v1650 = vrcp.pop %v1648
    %v1651 = vmul.f32 %v1648, %v1650
    %v1652 = vsub.f32 1.0, %v1651
    %v1653 = vmul.f32 %v1650, %v1652
    %v1654 = vadd.f32 %v1650, %v1653
    %vm1655 = vweird.f32 %v1648
    %vm1656 = vweird.f32 %v1650
    %vm1657 = vmor %vm1655, %vm1656
    %v1658 = vsel %vm1657, %v1650, %v1654
    %v1659 = vand.u32 2147483647, %v1648
    %vm1660 = vcmp.eq.f32.partialorder %v1659, 8.507059e+37
    %v1661 = vand.u32 %v1648, 2147483648
    %v1662 = vor.u32 1.1754944e-38, %v1661
    %v1663 = vsel %vm1660, %v1662, %v1658
    %v1664 = vmul.f32 1.0, %v1663
    %v1665 = vrcp.pop %v1649
    %v1666 = vmul.f32 %v1649, %v1665
    %v1667 = vsub.f32 1.0, %v1666
    %v1668 = vmul.f32 %v1665, %v1667
    %v1669 = vadd.f32 %v1665, %v1668
    %vm1670 = vweird.f32 %v1649
    %vm1671 = vweird.f32 %v1665
    %vm1672 = vmor %vm1670, %vm1671
    %v1673 = vsel %vm1672, %v1665, %v1669
    %v1674 = vand.u32 2147483647, %v1649
    %vm1675 = vcmp.eq.f32.partialorder %v1674, 8.507059e+37
    %v1676 = vand.u32 %v1649, 2147483648
    %v1677 = vor.u32 1.1754944e-38, %v1676
    %v1678 = vsel %vm1675, %v1677, %v1673
    %v1679 = vmul.f32 1.0, %v1678
    %v1680 = vmul.f32 %v1636, %v1664
    %v1681 = vmul.f32 %v1640, %v1679
    %1682 = vadd.xlane.f32.xlu0 %v1680
    %v1683 = vpop.xlane.xlu0 %1682
    %1684 = vadd.xlane.f32.xlu0 %v1681
    %v1685 = vpop.xlane.xlu0 %1684
    %v1686 = vmul.f32 %v1683, %v272
    %v1687 = vmul.f32 %v1685, %v272
    %v1688 = vsub.f32 %v1680, %v1686
    %v1689 = vsub.f32 %v1681, %v1687
    %v1690 = vmul.f32 %v1688, %v1688
    %v1691 = vmul.f32 %v1689, %v1689
    %1692 = vadd.xlane.f32.xlu0 %v1690
    %v1693 = vpop.xlane.xlu0 %1692
    %1694 = vadd.xlane.f32.xlu0 %v1691
    %v1695 = vpop.xlane.xlu0 %1694
    %v1696 = vmul.f32 %v1693, %v272
    %v1697 = vmul.f32 %v1695, %v272
    %v1698 = vadd.f32 %v1696, 1e-05
    %v1699 = vadd.f32 %v1697, 1e-05
    %v1700 = vrsqrt.pop %v1698
    %v1701 = vmul.f32 %v1700, %v1698
    %v1702 = vmul.f32 %v1701, %v1700
    %v1703 = vmul.f32 0.5, %v1702
    %v1704 = vsub.f32 1.5, %v1703
    %v1705 = vmul.f32 %v1700, %v1704
    %vm1706 = vweird.f32 %v1698
    %vm1707 = vweird.f32 %v1700
    %vm1708 = vmor %vm1706, %vm1707
    %v1709 = vsel %vm1708, %v1700, %v1705
    %v1710 = vrsqrt.pop %v1699
    %v1711 = vmul.f32 %v1710, %v1699
    %v1712 = vmul.f32 %v1711, %v1710
    %v1713 = vmul.f32 0.5, %v1712
    %v1714 = vsub.f32 1.5, %v1713
    %v1715 = vmul.f32 %v1710, %v1714
    %vm1716 = vweird.f32 %v1699
    %vm1717 = vweird.f32 %v1710
    %vm1718 = vmor %vm1716, %vm1717
    %v1719 = vsel %vm1718, %v1710, %v1715
    %v1720 = vmul.f32 %v1688, %v1709
    %v1721 = vmul.f32 %v1689, %v1719
    %s1722 = scalar_lea.vmem [#allocation5], 128
    %v1723 = vld [vmem:[%s1722] sm:$0xff]
    %v1724 = vld [vmem:[%s1722 + $0x8] sm:$0xff]
    %v1725 = vld [vmem:[%s1722 + $0x10] sm:$0xff]
    %v1726 = vld [vmem:[%s1722 + $0x18] sm:$0xff]
    %v1727 = vld [vmem:[%s1722 + $0x20] sm:$0xff]
    %v1728 = vld [vmem:[%s1722 + $0x28] sm:$0xff]
    %v1729 = vld [vmem:[%s1722 + $0x30] sm:$0xff]
    %v1730 = vld [vmem:[%s1722 + $0x38] sm:$0xff]
    %v1731 = vld [vmem:[%s1722 + $0x40] sm:$0xff]
    %v1732 = vld [vmem:[%s1722 + $0x48] sm:$0xff]
    %v1733 = vld [vmem:[%s1722 + $0x50] sm:$0xff]
    %v1734 = vld [vmem:[%s1722 + $0x58] sm:$0xff]
    %v1735 = vld [vmem:[%s1722 + $0x60] sm:$0xff]
    %v1736 = vld [vmem:[%s1722 + $0x68] sm:$0xff]
    %v1737 = vld [vmem:[%s1722 + $0x70] sm:$0xff]
    %v1738 = vld [vmem:[%s1722 + $0x78] sm:$0xff]
    %v1739 = vld [vmem:[%s5 + $0x5] sm:$0x1]
    %v1740 = vperm.slane %v1739, 0
    %v1741 = vand.u32 %v1738, 4294901760
    %1742 = vmatpush.msra.mxu0 %v1741
    %v1743 = vand.u32 %v1737, 4294901760
    %1744 = vmatpush.msra.mxu0 %v1743
    %v1745 = vand.u32 %v1736, 4294901760
    %1746 = vmatpush.msra.mxu0 %v1745
    %v1747 = vand.u32 %v1735, 4294901760
    %1748 = vmatpush.msra.mxu0 %v1747
    %v1749 = vand.u32 %v1734, 4294901760
    %1750 = vmatpush.msra.mxu0 %v1749
    %v1751 = vand.u32 %v1733, 4294901760
    %1752 = vmatpush.msra.mxu0 %v1751
    %v1753 = vand.u32 %v1732, 4294901760
    %1754 = vmatpush.msra.mxu0 %v1753
    %v1755 = vand.u32 %v1731, 4294901760
    %1756 = vmatpush.msra.mxu0 %v1755
    %v1757 = vand.u32 %v1730, 4294901760
    %1758 = vmatpush.msra.mxu0 %v1757
    %v1759 = vand.u32 %v1729, 4294901760
    %1760 = vmatpush.msra.mxu0 %v1759
    %v1761 = vand.u32 %v1728, 4294901760
    %1762 = vmatpush.msra.mxu0 %v1761
    %v1763 = vand.u32 %v1727, 4294901760
    %1764 = vmatpush.msra.mxu0 %v1763
    %v1765 = vand.u32 %v1726, 4294901760
    %1766 = vmatpush.msra.mxu0 %v1765
    %v1767 = vand.u32 %v1725, 4294901760
    %1768 = vmatpush.msra.mxu0 %v1767
    %v1769 = vand.u32 %v1724, 4294901760
    %1770 = vmatpush.msra.mxu0 %v1769
    %v1771 = vand.u32 %v1723, 4294901760
    %1772 = vmatpush.msra.mxu0 %v1771
    %v1773 = vand.u32 %v1720, 4294901760
    %v1774 = vsub.f32 %v1720, %v1773
    %v1775 = vand.u32 %v1774, 4294901760
    %v1776 = vsub.f32 %v1774, %v1775
    %v1777 = vand.u32 %v1776, 4294901760
    %1778 = vmatmul.f32.gmra.mxu0 %v1777
    %v1779 = vpop.f32.mrf.mxu0
    %v1780 = vadd.f32 %v1740, %v1779
    %v1781 = vand.u32 %v1721, 4294901760
    %v1782 = vsub.f32 %v1721, %v1781
    %v1783 = vand.u32 %v1782, 4294901760
    %v1784 = vsub.f32 %v1782, %v1783
    %v1785 = vand.u32 %v1784, 4294901760
    %1786 = vmatmul.f32.gmra.mxu0 %v1785
    %v1787 = vpop.f32.mrf.mxu0
    %v1788 = vadd.f32 %v1740, %v1787
    %1789 = vdwg.mxu0
    %v1790 = vand.u32 %v1738, 4294901760
    %v1791 = vsub.f32 %v1738, %v1790
    %v1792 = vand.u32 %v1791, 4294901760
    %v1793 = vsub.f32 %v1791, %v1792
    %v1794 = vand.u32 %v1793, 4294901760
    %1795 = vmatpush.msra.mxu0 %v1794
    %v1796 = vand.u32 %v1737, 4294901760
    %v1797 = vsub.f32 %v1737, %v1796
    %v1798 = vand.u32 %v1797, 4294901760
    %v1799 = vsub.f32 %v1797, %v1798
    %v1800 = vand.u32 %v1799, 4294901760
    %1801 = vmatpush.msra.mxu0 %v1800
    %v1802 = vand.u32 %v1736, 4294901760
    %v1803 = vsub.f32 %v1736, %v1802
    %v1804 = vand.u32 %v1803, 4294901760
    %v1805 = vsub.f32 %v1803, %v1804
    %v1806 = vand.u32 %v1805, 4294901760
    %1807 = vmatpush.msra.mxu0 %v1806
    %v1808 = vand.u32 %v1735, 4294901760
    %v1809 = vsub.f32 %v1735, %v1808
    %v1810 = vand.u32 %v1809, 4294901760
    %v1811 = vsub.f32 %v1809, %v1810
    %v1812 = vand.u32 %v1811, 4294901760
    %1813 = vmatpush.msra.mxu0 %v1812
    %v1814 = vand.u32 %v1734, 4294901760
    %v1815 = vsub.f32 %v1734, %v1814
    %v1816 = vand.u32 %v1815, 4294901760
    %v1817 = vsub.f32 %v1815, %v1816
    %v1818 = vand.u32 %v1817, 4294901760
    %1819 = vmatpush.msra.mxu0 %v1818
    %v1820 = vand.u32 %v1733, 4294901760
    %v1821 = vsub.f32 %v1733, %v1820
    %v1822 = vand.u32 %v1821, 4294901760
    %v1823 = vsub.f32 %v1821, %v1822
    %v1824 = vand.u32 %v1823, 4294901760
    %1825 = vmatpush.msra.mxu0 %v1824
    %v1826 = vand.u32 %v1732, 4294901760
    %v1827 = vsub.f32 %v1732, %v1826
    %v1828 = vand.u32 %v1827, 4294901760
    %v1829 = vsub.f32 %v1827, %v1828
    %v1830 = vand.u32 %v1829, 4294901760
    %1831 = vmatpush.msra.mxu0 %v1830
    %v1832 = vand.u32 %v1731, 4294901760
    %v1833 = vsub.f32 %v1731, %v1832
    %v1834 = vand.u32 %v1833, 4294901760
    %v1835 = vsub.f32 %v1833, %v1834
    %v1836 = vand.u32 %v1835, 4294901760
    %1837 = vmatpush.msra.mxu0 %v1836
    %v1838 = vand.u32 %v1730, 4294901760
    %v1839 = vsub.f32 %v1730, %v1838
    %v1840 = vand.u32 %v1839, 4294901760
    %v1841 = vsub.f32 %v1839, %v1840
    %v1842 = vand.u32 %v1841, 4294901760
    %1843 = vmatpush.msra.mxu0 %v1842
    %v1844 = vand.u32 %v1729, 4294901760
    %v1845 = vsub.f32 %v1729, %v1844
    %v1846 = vand.u32 %v1845, 4294901760
    %v1847 = vsub.f32 %v1845, %v1846
    %v1848 = vand.u32 %v1847, 4294901760
    %1849 = vmatpush.msra.mxu0 %v1848
    %v1850 = vand.u32 %v1728, 4294901760
    %v1851 = vsub.f32 %v1728, %v1850
    %v1852 = vand.u32 %v1851, 4294901760
    %v1853 = vsub.f32 %v1851, %v1852
    %v1854 = vand.u32 %v1853, 4294901760
    %1855 = vmatpush.msra.mxu0 %v1854
    %v1856 = vand.u32 %v1727, 4294901760
    %v1857 = vsub.f32 %v1727, %v1856
    %v1858 = vand.u32 %v1857, 4294901760
    %v1859 = vsub.f32 %v1857, %v1858
    %v1860 = vand.u32 %v1859, 4294901760
    %1861 = vmatpush.msra.mxu0 %v1860
    %v1862 = vand.u32 %v1726, 4294901760
    %v1863 = vsub.f32 %v1726, %v1862
    %v1864 = vand.u32 %v1863, 4294901760
    %v1865 = vsub.f32 %v1863, %v1864
    %v1866 = vand.u32 %v1865, 4294901760
    %1867 = vmatpush.msra.mxu0 %v1866
    %v1868 = vand.u32 %v1725, 4294901760
    %v1869 = vsub.f32 %v1725, %v1868
    %v1870 = vand.u32 %v1869, 4294901760
    %v1871 = vsub.f32 %v1869, %v1870
    %v1872 = vand.u32 %v1871, 4294901760
    %1873 = vmatpush.msra.mxu0 %v1872
    %v1874 = vand.u32 %v1724, 4294901760
    %v1875 = vsub.f32 %v1724, %v1874
    %v1876 = vand.u32 %v1875, 4294901760
    %v1877 = vsub.f32 %v1875, %v1876
    %v1878 = vand.u32 %v1877, 4294901760
    %1879 = vmatpush.msra.mxu0 %v1878
    %v1880 = vand.u32 %v1723, 4294901760
    %v1881 = vsub.f32 %v1723, %v1880
    %v1882 = vand.u32 %v1881, 4294901760
    %v1883 = vsub.f32 %v1881, %v1882
    %v1884 = vand.u32 %v1883, 4294901760
    %1885 = vmatpush.msra.mxu0 %v1884
    %v1886 = vand.u32 %v1720, 4294901760
    %1887 = vmatmul.f32.gmra.mxu0 %v1886
    %v1888 = vpop.f32.mrf.mxu0
    %v1889 = vadd.f32 %v1780, %v1888
    %v1890 = vand.u32 %v1721, 4294901760
    %1891 = vmatmul.f32.gmra.mxu0 %v1890
    %v1892 = vpop.f32.mrf.mxu0
    %v1893 = vadd.f32 %v1788, %v1892
    %1894 = vdwg.mxu0
    %v1895 = vand.u32 %v1738, 4294901760
    %v1896 = vsub.f32 %v1738, %v1895
    %1897 = vmatpush.msra.mxu0 %v1896
    %v1898 = vand.u32 %v1737, 4294901760
    %v1899 = vsub.f32 %v1737, %v1898
    %1900 = vmatpush.msra.mxu0 %v1899
    %v1901 = vand.u32 %v1736, 4294901760
    %v1902 = vsub.f32 %v1736, %v1901
    %1903 = vmatpush.msra.mxu0 %v1902
    %v1904 = vand.u32 %v1735, 4294901760
    %v1905 = vsub.f32 %v1735, %v1904
    %1906 = vmatpush.msra.mxu0 %v1905
    %v1907 = vand.u32 %v1734, 4294901760
    %v1908 = vsub.f32 %v1734, %v1907
    %1909 = vmatpush.msra.mxu0 %v1908
    %v1910 = vand.u32 %v1733, 4294901760
    %v1911 = vsub.f32 %v1733, %v1910
    %1912 = vmatpush.msra.mxu0 %v1911
    %v1913 = vand.u32 %v1732, 4294901760
    %v1914 = vsub.f32 %v1732, %v1913
    %1915 = vmatpush.msra.mxu0 %v1914
    %v1916 = vand.u32 %v1731, 4294901760
    %v1917 = vsub.f32 %v1731, %v1916
    %1918 = vmatpush.msra.mxu0 %v1917
    %v1919 = vand.u32 %v1730, 4294901760
    %v1920 = vsub.f32 %v1730, %v1919
    %1921 = vmatpush.msra.mxu0 %v1920
    %v1922 = vand.u32 %v1729, 4294901760
    %v1923 = vsub.f32 %v1729, %v1922
    %1924 = vmatpush.msra.mxu0 %v1923
    %v1925 = vand.u32 %v1728, 4294901760
    %v1926 = vsub.f32 %v1728, %v1925
    %1927 = vmatpush.msra.mxu0 %v1926
    %v1928 = vand.u32 %v1727, 4294901760
    %v1929 = vsub.f32 %v1727, %v1928
    %1930 = vmatpush.msra.mxu0 %v1929
    %v1931 = vand.u32 %v1726, 4294901760
    %v1932 = vsub.f32 %v1726, %v1931
    %1933 = vmatpush.msra.mxu0 %v1932
    %v1934 = vand.u32 %v1725, 4294901760
    %v1935 = vsub.f32 %v1725, %v1934
    %1936 = vmatpush.msra.mxu0 %v1935
    %v1937 = vand.u32 %v1724, 4294901760
    %v1938 = vsub.f32 %v1724, %v1937
    %1939 = vmatpush.msra.mxu0 %v1938
    %v1940 = vand.u32 %v1723, 4294901760
    %v1941 = vsub.f32 %v1723, %v1940
    %1942 = vmatpush.msra.mxu0 %v1941
    %v1943 = vand.u32 %v1720, 4294901760
    %v1944 = vsub.f32 %v1720, %v1943
    %1945 = vmatmul.f32.gmra.mxu0 %v1944
    %v1946 = vpop.f32.mrf.mxu0
    %v1947 = vadd.f32 %v1889, %v1946
    %v1948 = vand.u32 %v1721, 4294901760
    %v1949 = vsub.f32 %v1721, %v1948
    %1950 = vmatmul.f32.gmra.mxu0 %v1949
    %v1951 = vpop.f32.mrf.mxu0
    %v1952 = vadd.f32 %v1893, %v1951
    %1953 = vdwg.mxu0
    %v1954 = vand.u32 %v1738, 4294901760
    %1955 = vmatpush.msra.mxu0 %v1954
    %v1956 = vand.u32 %v1737, 4294901760
    %1957 = vmatpush.msra.mxu0 %v1956
    %v1958 = vand.u32 %v1736, 4294901760
    %1959 = vmatpush.msra.mxu0 %v1958
    %v1960 = vand.u32 %v1735, 4294901760
    %1961 = vmatpush.msra.mxu0 %v1960
    %v1962 = vand.u32 %v1734, 4294901760
    %1963 = vmatpush.msra.mxu0 %v1962
    %v1964 = vand.u32 %v1733, 4294901760
    %1965 = vmatpush.msra.mxu0 %v1964
    %v1966 = vand.u32 %v1732, 4294901760
    %1967 = vmatpush.msra.mxu0 %v1966
    %v1968 = vand.u32 %v1731, 4294901760
    %1969 = vmatpush.msra.mxu0 %v1968
    %v1970 = vand.u32 %v1730, 4294901760
    %1971 = vmatpush.msra.mxu0 %v1970
    %v1972 = vand.u32 %v1729, 4294901760
    %1973 = vmatpush.msra.mxu0 %v1972
    %v1974 = vand.u32 %v1728, 4294901760
    %1975 = vmatpush.msra.mxu0 %v1974
    %v1976 = vand.u32 %v1727, 4294901760
    %1977 = vmatpush.msra.mxu0 %v1976
    %v1978 = vand.u32 %v1726, 4294901760
    %1979 = vmatpush.msra.mxu0 %v1978
    %v1980 = vand.u32 %v1725, 4294901760
    %1981 = vmatpush.msra.mxu0 %v1980
    %v1982 = vand.u32 %v1724, 4294901760
    %1983 = vmatpush.msra.mxu0 %v1982
    %v1984 = vand.u32 %v1723, 4294901760
    %1985 = vmatpush.msra.mxu0 %v1984
    %v1986 = vand.u32 %v1720, 4294901760
    %v1987 = vsub.f32 %v1720, %v1986
    %v1988 = vand.u32 %v1987, 4294901760
    %1989 = vmatmul.f32.gmra.mxu0 %v1988
    %v1990 = vpop.f32.mrf.mxu0
    %v1991 = vadd.f32 %v1947, %v1990
    %v1992 = vand.u32 %v1721, 4294901760
    %v1993 = vsub.f32 %v1721, %v1992
    %v1994 = vand.u32 %v1993, 4294901760
    %1995 = vmatmul.f32.gmra.mxu0 %v1994
    %v1996 = vpop.f32.mrf.mxu0
    %v1997 = vadd.f32 %v1952, %v1996
    %1998 = vdwg.mxu0
    %v1999 = vand.u32 %v1738, 4294901760
    %v2000 = vsub.f32 %v1738, %v1999
    %v2001 = vand.u32 %v2000, 4294901760
    %2002 = vmatpush.msra.mxu0 %v2001
    %v2003 = vand.u32 %v1737, 4294901760
    %v2004 = vsub.f32 %v1737, %v2003
    %v2005 = vand.u32 %v2004, 4294901760
    %2006 = vmatpush.msra.mxu0 %v2005
    %v2007 = vand.u32 %v1736, 4294901760
    %v2008 = vsub.f32 %v1736, %v2007
    %v2009 = vand.u32 %v2008, 4294901760
    %2010 = vmatpush.msra.mxu0 %v2009
    %v2011 = vand.u32 %v1735, 4294901760
    %v2012 = vsub.f32 %v1735, %v2011
    %v2013 = vand.u32 %v2012, 4294901760
    %2014 = vmatpush.msra.mxu0 %v2013
    %v2015 = vand.u32 %v1734, 4294901760
    %v2016 = vsub.f32 %v1734, %v2015
    %v2017 = vand.u32 %v2016, 4294901760
    %2018 = vmatpush.msra.mxu0 %v2017
    %v2019 = vand.u32 %v1733, 4294901760
    %v2020 = vsub.f32 %v1733, %v2019
    %v2021 = vand.u32 %v2020, 4294901760
    %2022 = vmatpush.msra.mxu0 %v2021
    %v2023 = vand.u32 %v1732, 4294901760
    %v2024 = vsub.f32 %v1732, %v2023
    %v2025 = vand.u32 %v2024, 4294901760
    %2026 = vmatpush.msra.mxu0 %v2025
    %v2027 = vand.u32 %v1731, 4294901760
    %v2028 = vsub.f32 %v1731, %v2027
    %v2029 = vand.u32 %v2028, 4294901760
    %2030 = vmatpush.msra.mxu0 %v2029
    %v2031 = vand.u32 %v1730, 4294901760
    %v2032 = vsub.f32 %v1730, %v2031
    %v2033 = vand.u32 %v2032, 4294901760
    %2034 = vmatpush.msra.mxu0 %v2033
    %v2035 = vand.u32 %v1729, 4294901760
    %v2036 = vsub.f32 %v1729, %v2035
    %v2037 = vand.u32 %v2036, 4294901760
    %2038 = vmatpush.msra.mxu0 %v2037
    %v2039 = vand.u32 %v1728, 4294901760
    %v2040 = vsub.f32 %v1728, %v2039
    %v2041 = vand.u32 %v2040, 4294901760
    %2042 = vmatpush.msra.mxu0 %v2041
    %v2043 = vand.u32 %v1727, 4294901760
    %v2044 = vsub.f32 %v1727, %v2043
    %v2045 = vand.u32 %v2044, 4294901760
    %2046 = vmatpush.msra.mxu0 %v2045
    %v2047 = vand.u32 %v1726, 4294901760
    %v2048 = vsub.f32 %v1726, %v2047
    %v2049 = vand.u32 %v2048, 4294901760
    %2050 = vmatpush.msra.mxu0 %v2049
    %v2051 = vand.u32 %v1725, 4294901760
    %v2052 = vsub.f32 %v1725, %v2051
    %v2053 = vand.u32 %v2052, 4294901760
    %2054 = vmatpush.msra.mxu0 %v2053
    %v2055 = vand.u32 %v1724, 4294901760
    %v2056 = vsub.f32 %v1724, %v2055
    %v2057 = vand.u32 %v2056, 4294901760
    %2058 = vmatpush.msra.mxu0 %v2057
    %v2059 = vand.u32 %v1723, 4294901760
    %v2060 = vsub.f32 %v1723, %v2059
    %v2061 = vand.u32 %v2060, 4294901760
    %2062 = vmatpush.msra.mxu0 %v2061
    %v2063 = vand.u32 %v1720, 4294901760
    %2064 = vmatmul.f32.gmra.mxu0 %v2063
    %v2065 = vpop.f32.mrf.mxu0
    %v2066 = vadd.f32 %v1991, %v2065
    %v2067 = vand.u32 %v1721, 4294901760
    %2068 = vmatmul.f32.gmra.mxu0 %v2067
    %v2069 = vpop.f32.mrf.mxu0
    %v2070 = vadd.f32 %v1997, %v2069
    %2071 = vdwg.mxu0
    %v2072 = vand.u32 %v1738, 4294901760
    %2073 = vmatpush.msra.mxu0 %v2072
    %v2074 = vand.u32 %v1737, 4294901760
    %2075 = vmatpush.msra.mxu0 %v2074
    %v2076 = vand.u32 %v1736, 4294901760
    %2077 = vmatpush.msra.mxu0 %v2076
    %v2078 = vand.u32 %v1735, 4294901760
    %2079 = vmatpush.msra.mxu0 %v2078
    %v2080 = vand.u32 %v1734, 4294901760
    %2081 = vmatpush.msra.mxu0 %v2080
    %v2082 = vand.u32 %v1733, 4294901760
    %2083 = vmatpush.msra.mxu0 %v2082
    %v2084 = vand.u32 %v1732, 4294901760
    %2085 = vmatpush.msra.mxu0 %v2084
    %v2086 = vand.u32 %v1731, 4294901760
    %2087 = vmatpush.msra.mxu0 %v2086
    %v2088 = vand.u32 %v1730, 4294901760
    %2089 = vmatpush.msra.mxu0 %v2088
    %v2090 = vand.u32 %v1729, 4294901760
    %2091 = vmatpush.msra.mxu0 %v2090
    %v2092 = vand.u32 %v1728, 4294901760
    %2093 = vmatpush.msra.mxu0 %v2092
    %v2094 = vand.u32 %v1727, 4294901760
    %2095 = vmatpush.msra.mxu0 %v2094
    %v2096 = vand.u32 %v1726, 4294901760
    %2097 = vmatpush.msra.mxu0 %v2096
    %v2098 = vand.u32 %v1725, 4294901760
    %2099 = vmatpush.msra.mxu0 %v2098
    %v2100 = vand.u32 %v1724, 4294901760
    %2101 = vmatpush.msra.mxu0 %v2100
    %v2102 = vand.u32 %v1723, 4294901760
    %2103 = vmatpush.msra.mxu0 %v2102
    %v2104 = vand.u32 %v1720, 4294901760
    %2105 = vmatmul.f32.gmra.mxu0 %v2104
    %v2106 = vpop.f32.mrf.mxu0
    %v2107 = vadd.f32 %v2066, %v2106
    %v2108 = vand.u32 %v1721, 4294901760
    %2109 = vmatmul.f32.gmra.mxu0 %v2108
    %v2110 = vpop.f32.mrf.mxu0
    %v2111 = vadd.f32 %v2070, %v2110
    %2112 = vdwg.mxu0
    %v2113 = vadd.f32 %v1209, %v2107
    %v2114 = vadd.f32 %v1210, %v2111
    %v2115 = vxor.u32 %v2113, 2147483648
    %v2116 = vxor.u32 %v2114, 2147483648
    %v2117 = vmul.f32 %v2115, 1.442695
    %v2118 = vpow.pop %v2117
    %v2119 = vmul.f32 %v2116, 1.442695
    %v2120 = vpow.pop %v2119
    %v2121 = vadd.f32 %v2118, 1.0
    %v2122 = vadd.f32 %v2120, 1.0
    %v2123 = vrcp.pop %v2121
    %v2124 = vmul.f32 %v2121, %v2123
    %v2125 = vsub.f32 1.0, %v2124
    %v2126 = vmul.f32 %v2123, %v2125
    %v2127 = vadd.f32 %v2123, %v2126
    %vm2128 = vweird.f32 %v2121
    %vm2129 = vweird.f32 %v2123
    %vm2130 = vmor %vm2128, %vm2129
    %v2131 = vsel %vm2130, %v2123, %v2127
    %v2132 = vand.u32 2147483647, %v2121
    %vm2133 = vcmp.eq.f32.partialorder %v2132, 8.507059e+37
    %v2134 = vand.u32 %v2121, 2147483648
    %v2135 = vor.u32 1.1754944e-38, %v2134
    %v2136 = vsel %vm2133, %v2135, %v2131
    %v2137 = vmul.f32 1.0, %v2136
    %v2138 = vrcp.pop %v2122
    %v2139 = vmul.f32 %v2122, %v2138
    %v2140 = vsub.f32 1.0, %v2139
    %v2141 = vmul.f32 %v2138, %v2140
    %v2142 = vadd.f32 %v2138, %v2141
    %vm2143 = vweird.f32 %v2122
    %vm2144 = vweird.f32 %v2138
    %vm2145 = vmor %vm2143, %vm2144
    %v2146 = vsel %vm2145, %v2138, %v2142
    %v2147 = vand.u32 2147483647, %v2122
    %vm2148 = vcmp.eq.f32.partialorder %v2147, 8.507059e+37
    %v2149 = vand.u32 %v2122, 2147483648
    %v2150 = vor.u32 1.1754944e-38, %v2149
    %v2151 = vsel %vm2148, %v2150, %v2146
    %v2152 = vmul.f32 1.0, %v2151
    %v2153 = vmul.f32 %v2113, %v2137
    %v2154 = vmul.f32 %v2114, %v2152
    %2155 = vadd.xlane.f32.xlu0 %v2153
    %v2156 = vpop.xlane.xlu0 %2155
    %2157 = vadd.xlane.f32.xlu0 %v2154
    %v2158 = vpop.xlane.xlu0 %2157
    %v2159 = vmul.f32 %v2156, %v272
    %v2160 = vmul.f32 %v2158, %v272
    %v2161 = vsub.f32 %v2153, %v2159
    %v2162 = vsub.f32 %v2154, %v2160
    %v2163 = vmul.f32 %v2161, %v2161
    %v2164 = vmul.f32 %v2162, %v2162
    %2165 = vadd.xlane.f32.xlu0 %v2163
    %v2166 = vpop.xlane.xlu0 %2165
    %2167 = vadd.xlane.f32.xlu0 %v2164
    %v2168 = vpop.xlane.xlu0 %2167
    %v2169 = vmul.f32 %v2166, %v272
    %v2170 = vmul.f32 %v2168, %v272
    %v2171 = vadd.f32 %v2169, 1e-05
    %v2172 = vadd.f32 %v2170, 1e-05
    %v2173 = vrsqrt.pop %v2171
    %v2174 = vmul.f32 %v2173, %v2171
    %v2175 = vmul.f32 %v2174, %v2173
    %v2176 = vmul.f32 0.5, %v2175
    %v2177 = vsub.f32 1.5, %v2176
    %v2178 = vmul.f32 %v2173, %v2177
    %vm2179 = vweird.f32 %v2171
    %vm2180 = vweird.f32 %v2173
    %vm2181 = vmor %vm2179, %vm2180
    %v2182 = vsel %vm2181, %v2173, %v2178
    %v2183 = vrsqrt.pop %v2172
    %v2184 = vmul.f32 %v2183, %v2172
    %v2185 = vmul.f32 %v2184, %v2183
    %v2186 = vmul.f32 0.5, %v2185
    %v2187 = vsub.f32 1.5, %v2186
    %v2188 = vmul.f32 %v2183, %v2187
    %vm2189 = vweird.f32 %v2172
    %vm2190 = vweird.f32 %v2183
    %vm2191 = vmor %vm2189, %vm2190
    %v2192 = vsel %vm2191, %v2183, %v2188
    %v2193 = vmul.f32 %v2161, %v2182
    %v2194 = vmul.f32 %v2162, %v2192
    %s2195 = scalar_lea.vmem [#allocation2], 256
    %v2196 = vld [vmem:[%s2195] sm:$0xff]
    %v2197 = vld [vmem:[%s2195 + $0x8] sm:$0xff]
    %v2198 = vld [vmem:[%s2195 + $0x10] sm:$0xff]
    %v2199 = vld [vmem:[%s2195 + $0x18] sm:$0xff]
    %v2200 = vld [vmem:[%s2195 + $0x20] sm:$0xff]
    %v2201 = vld [vmem:[%s2195 + $0x28] sm:$0xff]
    %v2202 = vld [vmem:[%s2195 + $0x30] sm:$0xff]
    %v2203 = vld [vmem:[%s2195 + $0x38] sm:$0xff]
    %v2204 = vld [vmem:[%s2195 + $0x40] sm:$0xff]
    %v2205 = vld [vmem:[%s2195 + $0x48] sm:$0xff]
    %v2206 = vld [vmem:[%s2195 + $0x50] sm:$0xff]
    %v2207 = vld [vmem:[%s2195 + $0x58] sm:$0xff]
    %v2208 = vld [vmem:[%s2195 + $0x60] sm:$0xff]
    %v2209 = vld [vmem:[%s2195 + $0x68] sm:$0xff]
    %v2210 = vld [vmem:[%s2195 + $0x70] sm:$0xff]
    %v2211 = vld [vmem:[%s2195 + $0x78] sm:$0xff]
    %v2212 = vld [vmem:[%s5 + $0x3] sm:$0x1]
    %v2213 = vperm.slane %v2212, 0
    %v2214 = vand.u32 %v2211, 4294901760
    %2215 = vmatpush.msra.mxu0 %v2214
    %v2216 = vand.u32 %v2210, 4294901760
    %2217 = vmatpush.msra.mxu0 %v2216
    %v2218 = vand.u32 %v2209, 4294901760
    %2219 = vmatpush.msra.mxu0 %v2218
    %v2220 = vand.u32 %v2208, 4294901760
    %2221 = vmatpush.msra.mxu0 %v2220
    %v2222 = vand.u32 %v2207, 4294901760
    %2223 = vmatpush.msra.mxu0 %v2222
    %v2224 = vand.u32 %v2206, 4294901760
    %2225 = vmatpush.msra.mxu0 %v2224
    %v2226 = vand.u32 %v2205, 4294901760
    %2227 = vmatpush.msra.mxu0 %v2226
    %v2228 = vand.u32 %v2204, 4294901760
    %2229 = vmatpush.msra.mxu0 %v2228
    %v2230 = vand.u32 %v2203, 4294901760
    %2231 = vmatpush.msra.mxu0 %v2230
    %v2232 = vand.u32 %v2202, 4294901760
    %2233 = vmatpush.msra.mxu0 %v2232
    %v2234 = vand.u32 %v2201, 4294901760
    %2235 = vmatpush.msra.mxu0 %v2234
    %v2236 = vand.u32 %v2200, 4294901760
    %2237 = vmatpush.msra.mxu0 %v2236
    %v2238 = vand.u32 %v2199, 4294901760
    %2239 = vmatpush.msra.mxu0 %v2238
    %v2240 = vand.u32 %v2198, 4294901760
    %2241 = vmatpush.msra.mxu0 %v2240
    %v2242 = vand.u32 %v2197, 4294901760
    %2243 = vmatpush.msra.mxu0 %v2242
    %v2244 = vand.u32 %v2196, 4294901760
    %2245 = vmatpush.msra.mxu0 %v2244
    %v2246 = vand.u32 %v2193, 4294901760
    %v2247 = vsub.f32 %v2193, %v2246
    %v2248 = vand.u32 %v2247, 4294901760
    %v2249 = vsub.f32 %v2247, %v2248
    %v2250 = vand.u32 %v2249, 4294901760
    %2251 = vmatmul.f32.gmra.mxu0 %v2250
    %v2252 = vpop.f32.mrf.mxu0
    %v2253 = vadd.f32 %v2213, %v2252
    %v2254 = vand.u32 %v2194, 4294901760
    %v2255 = vsub.f32 %v2194, %v2254
    %v2256 = vand.u32 %v2255, 4294901760
    %v2257 = vsub.f32 %v2255, %v2256
    %v2258 = vand.u32 %v2257, 4294901760
    %2259 = vmatmul.f32.gmra.mxu0 %v2258
    %v2260 = vpop.f32.mrf.mxu0
    %v2261 = vadd.f32 %v2213, %v2260
    %2262 = vdwg.mxu0
    %v2263 = vand.u32 %v2211, 4294901760
    %v2264 = vsub.f32 %v2211, %v2263
    %v2265 = vand.u32 %v2264, 4294901760
    %v2266 = vsub.f32 %v2264, %v2265
    %v2267 = vand.u32 %v2266, 4294901760
    %2268 = vmatpush.msra.mxu0 %v2267
    %v2269 = vand.u32 %v2210, 4294901760
    %v2270 = vsub.f32 %v2210, %v2269
    %v2271 = vand.u32 %v2270, 4294901760
    %v2272 = vsub.f32 %v2270, %v2271
    %v2273 = vand.u32 %v2272, 4294901760
    %2274 = vmatpush.msra.mxu0 %v2273
    %v2275 = vand.u32 %v2209, 4294901760
    %v2276 = vsub.f32 %v2209, %v2275
    %v2277 = vand.u32 %v2276, 4294901760
    %v2278 = vsub.f32 %v2276, %v2277
    %v2279 = vand.u32 %v2278, 4294901760
    %2280 = vmatpush.msra.mxu0 %v2279
    %v2281 = vand.u32 %v2208, 4294901760
    %v2282 = vsub.f32 %v2208, %v2281
    %v2283 = vand.u32 %v2282, 4294901760
    %v2284 = vsub.f32 %v2282, %v2283
    %v2285 = vand.u32 %v2284, 4294901760
    %2286 = vmatpush.msra.mxu0 %v2285
    %v2287 = vand.u32 %v2207, 4294901760
    %v2288 = vsub.f32 %v2207, %v2287
    %v2289 = vand.u32 %v2288, 4294901760
    %v2290 = vsub.f32 %v2288, %v2289
    %v2291 = vand.u32 %v2290, 4294901760
    %2292 = vmatpush.msra.mxu0 %v2291
    %v2293 = vand.u32 %v2206, 4294901760
    %v2294 = vsub.f32 %v2206, %v2293
    %v2295 = vand.u32 %v2294, 4294901760
    %v2296 = vsub.f32 %v2294, %v2295
    %v2297 = vand.u32 %v2296, 4294901760
    %2298 = vmatpush.msra.mxu0 %v2297
    %v2299 = vand.u32 %v2205, 4294901760
    %v2300 = vsub.f32 %v2205, %v2299
    %v2301 = vand.u32 %v2300, 4294901760
    %v2302 = vsub.f32 %v2300, %v2301
    %v2303 = vand.u32 %v2302, 4294901760
    %2304 = vmatpush.msra.mxu0 %v2303
    %v2305 = vand.u32 %v2204, 4294901760
    %v2306 = vsub.f32 %v2204, %v2305
    %v2307 = vand.u32 %v2306, 4294901760
    %v2308 = vsub.f32 %v2306, %v2307
    %v2309 = vand.u32 %v2308, 4294901760
    %2310 = vmatpush.msra.mxu0 %v2309
    %v2311 = vand.u32 %v2203, 4294901760
    %v2312 = vsub.f32 %v2203, %v2311
    %v2313 = vand.u32 %v2312, 4294901760
    %v2314 = vsub.f32 %v2312, %v2313
    %v2315 = vand.u32 %v2314, 4294901760
    %2316 = vmatpush.msra.mxu0 %v2315
    %v2317 = vand.u32 %v2202, 4294901760
    %v2318 = vsub.f32 %v2202, %v2317
    %v2319 = vand.u32 %v2318, 4294901760
    %v2320 = vsub.f32 %v2318, %v2319
    %v2321 = vand.u32 %v2320, 4294901760
    %2322 = vmatpush.msra.mxu0 %v2321
    %v2323 = vand.u32 %v2201, 4294901760
    %v2324 = vsub.f32 %v2201, %v2323
    %v2325 = vand.u32 %v2324, 4294901760
    %v2326 = vsub.f32 %v2324, %v2325
    %v2327 = vand.u32 %v2326, 4294901760
    %2328 = vmatpush.msra.mxu0 %v2327
    %v2329 = vand.u32 %v2200, 4294901760
    %v2330 = vsub.f32 %v2200, %v2329
    %v2331 = vand.u32 %v2330, 4294901760
    %v2332 = vsub.f32 %v2330, %v2331
    %v2333 = vand.u32 %v2332, 4294901760
    %2334 = vmatpush.msra.mxu0 %v2333
    %v2335 = vand.u32 %v2199, 4294901760
    %v2336 = vsub.f32 %v2199, %v2335
    %v2337 = vand.u32 %v2336, 4294901760
    %v2338 = vsub.f32 %v2336, %v2337
    %v2339 = vand.u32 %v2338, 4294901760
    %2340 = vmatpush.msra.mxu0 %v2339
    %v2341 = vand.u32 %v2198, 4294901760
    %v2342 = vsub.f32 %v2198, %v2341
    %v2343 = vand.u32 %v2342, 4294901760
    %v2344 = vsub.f32 %v2342, %v2343
    %v2345 = vand.u32 %v2344, 4294901760
    %2346 = vmatpush.msra.mxu0 %v2345
    %v2347 = vand.u32 %v2197, 4294901760
    %v2348 = vsub.f32 %v2197, %v2347
    %v2349 = vand.u32 %v2348, 4294901760
    %v2350 = vsub.f32 %v2348, %v2349
    %v2351 = vand.u32 %v2350, 4294901760
    %2352 = vmatpush.msra.mxu0 %v2351
    %v2353 = vand.u32 %v2196, 4294901760
    %v2354 = vsub.f32 %v2196, %v2353
    %v2355 = vand.u32 %v2354, 4294901760
    %v2356 = vsub.f32 %v2354, %v2355
    %v2357 = vand.u32 %v2356, 4294901760
    %2358 = vmatpush.msra.mxu0 %v2357
    %v2359 = vand.u32 %v2193, 4294901760
    %2360 = vmatmul.f32.gmra.mxu0 %v2359
    %v2361 = vpop.f32.mrf.mxu0
    %v2362 = vadd.f32 %v2253, %v2361
    %v2363 = vand.u32 %v2194, 4294901760
    %2364 = vmatmul.f32.gmra.mxu0 %v2363
    %v2365 = vpop.f32.mrf.mxu0
    %v2366 = vadd.f32 %v2261, %v2365
    %2367 = vdwg.mxu0
    %v2368 = vand.u32 %v2211, 4294901760
    %v2369 = vsub.f32 %v2211, %v2368
    %2370 = vmatpush.msra.mxu0 %v2369
    %v2371 = vand.u32 %v2210, 4294901760
    %v2372 = vsub.f32 %v2210, %v2371
    %2373 = vmatpush.msra.mxu0 %v2372
    %v2374 = vand.u32 %v2209, 4294901760
    %v2375 = vsub.f32 %v2209, %v2374
    %2376 = vmatpush.msra.mxu0 %v2375
    %v2377 = vand.u32 %v2208, 4294901760
    %v2378 = vsub.f32 %v2208, %v2377
    %2379 = vmatpush.msra.mxu0 %v2378
    %v2380 = vand.u32 %v2207, 4294901760
    %v2381 = vsub.f32 %v2207, %v2380
    %2382 = vmatpush.msra.mxu0 %v2381
    %v2383 = vand.u32 %v2206, 4294901760
    %v2384 = vsub.f32 %v2206, %v2383
    %2385 = vmatpush.msra.mxu0 %v2384
    %v2386 = vand.u32 %v2205, 4294901760
    %v2387 = vsub.f32 %v2205, %v2386
    %2388 = vmatpush.msra.mxu0 %v2387
    %v2389 = vand.u32 %v2204, 4294901760
    %v2390 = vsub.f32 %v2204, %v2389
    %2391 = vmatpush.msra.mxu0 %v2390
    %v2392 = vand.u32 %v2203, 4294901760
    %v2393 = vsub.f32 %v2203, %v2392
    %2394 = vmatpush.msra.mxu0 %v2393
    %v2395 = vand.u32 %v2202, 4294901760
    %v2396 = vsub.f32 %v2202, %v2395
    %2397 = vmatpush.msra.mxu0 %v2396
    %v2398 = vand.u32 %v2201, 4294901760
    %v2399 = vsub.f32 %v2201, %v2398
    %2400 = vmatpush.msra.mxu0 %v2399
    %v2401 = vand.u32 %v2200, 4294901760
    %v2402 = vsub.f32 %v2200, %v2401
    %2403 = vmatpush.msra.mxu0 %v2402
    %v2404 = vand.u32 %v2199, 4294901760
    %v2405 = vsub.f32 %v2199, %v2404
    %2406 = vmatpush.msra.mxu0 %v2405
    %v2407 = vand.u32 %v2198, 4294901760
    %v2408 = vsub.f32 %v2198, %v2407
    %2409 = vmatpush.msra.mxu0 %v2408
    %v2410 = vand.u32 %v2197, 4294901760
    %v2411 = vsub.f32 %v2197, %v2410
    %2412 = vmatpush.msra.mxu0 %v2411
    %v2413 = vand.u32 %v2196, 4294901760
    %v2414 = vsub.f32 %v2196, %v2413
    %2415 = vmatpush.msra.mxu0 %v2414
    %v2416 = vand.u32 %v2193, 4294901760
    %v2417 = vsub.f32 %v2193, %v2416
    %2418 = vmatmul.f32.gmra.mxu0 %v2417
    %v2419 = vpop.f32.mrf.mxu0
    %v2420 = vadd.f32 %v2362, %v2419
    %v2421 = vand.u32 %v2194, 4294901760
    %v2422 = vsub.f32 %v2194, %v2421
    %2423 = vmatmul.f32.gmra.mxu0 %v2422
    %v2424 = vpop.f32.mrf.mxu0
    %v2425 = vadd.f32 %v2366, %v2424
    %2426 = vdwg.mxu0
    %v2427 = vand.u32 %v2211, 4294901760
    %2428 = vmatpush.msra.mxu0 %v2427
    %v2429 = vand.u32 %v2210, 4294901760
    %2430 = vmatpush.msra.mxu0 %v2429
    %v2431 = vand.u32 %v2209, 4294901760
    %2432 = vmatpush.msra.mxu0 %v2431
    %v2433 = vand.u32 %v2208, 4294901760
    %2434 = vmatpush.msra.mxu0 %v2433
    %v2435 = vand.u32 %v2207, 4294901760
    %2436 = vmatpush.msra.mxu0 %v2435
    %v2437 = vand.u32 %v2206, 4294901760
    %2438 = vmatpush.msra.mxu0 %v2437
    %v2439 = vand.u32 %v2205, 4294901760
    %2440 = vmatpush.msra.mxu0 %v2439
    %v2441 = vand.u32 %v2204, 4294901760
    %2442 = vmatpush.msra.mxu0 %v2441
    %v2443 = vand.u32 %v2203, 4294901760
    %2444 = vmatpush.msra.mxu0 %v2443
    %v2445 = vand.u32 %v2202, 4294901760
    %2446 = vmatpush.msra.mxu0 %v2445
    %v2447 = vand.u32 %v2201, 4294901760
    %2448 = vmatpush.msra.mxu0 %v2447
    %v2449 = vand.u32 %v2200, 4294901760
    %2450 = vmatpush.msra.mxu0 %v2449
    %v2451 = vand.u32 %v2199, 4294901760
    %2452 = vmatpush.msra.mxu0 %v2451
    %v2453 = vand.u32 %v2198, 4294901760
    %2454 = vmatpush.msra.mxu0 %v2453
    %v2455 = vand.u32 %v2197, 4294901760
    %2456 = vmatpush.msra.mxu0 %v2455
    %v2457 = vand.u32 %v2196, 4294901760
    %2458 = vmatpush.msra.mxu0 %v2457
    %v2459 = vand.u32 %v2193, 4294901760
    %v2460 = vsub.f32 %v2193, %v2459
    %v2461 = vand.u32 %v2460, 4294901760
    %2462 = vmatmul.f32.gmra.mxu0 %v2461
    %v2463 = vpop.f32.mrf.mxu0
    %v2464 = vadd.f32 %v2420, %v2463
    %v2465 = vand.u32 %v2194, 4294901760
    %v2466 = vsub.f32 %v2194, %v2465
    %v2467 = vand.u32 %v2466, 4294901760
    %2468 = vmatmul.f32.gmra.mxu0 %v2467
    %v2469 = vpop.f32.mrf.mxu0
    %v2470 = vadd.f32 %v2425, %v2469
    %2471 = vdwg.mxu0
    %v2472 = vand.u32 %v2211, 4294901760
    %v2473 = vsub.f32 %v2211, %v2472
    %v2474 = vand.u32 %v2473, 4294901760
    %2475 = vmatpush.msra.mxu0 %v2474
    %v2476 = vand.u32 %v2210, 4294901760
    %v2477 = vsub.f32 %v2210, %v2476
    %v2478 = vand.u32 %v2477, 4294901760
    %2479 = vmatpush.msra.mxu0 %v2478
    %v2480 = vand.u32 %v2209, 4294901760
    %v2481 = vsub.f32 %v2209, %v2480
    %v2482 = vand.u32 %v2481, 4294901760
    %2483 = vmatpush.msra.mxu0 %v2482
    %v2484 = vand.u32 %v2208, 4294901760
    %v2485 = vsub.f32 %v2208, %v2484
    %v2486 = vand.u32 %v2485, 4294901760
    %2487 = vmatpush.msra.mxu0 %v2486
    %v2488 = vand.u32 %v2207, 4294901760
    %v2489 = vsub.f32 %v2207, %v2488
    %v2490 = vand.u32 %v2489, 4294901760
    %2491 = vmatpush.msra.mxu0 %v2490
    %v2492 = vand.u32 %v2206, 4294901760
    %v2493 = vsub.f32 %v2206, %v2492
    %v2494 = vand.u32 %v2493, 4294901760
    %2495 = vmatpush.msra.mxu0 %v2494
    %v2496 = vand.u32 %v2205, 4294901760
    %v2497 = vsub.f32 %v2205, %v2496
    %v2498 = vand.u32 %v2497, 4294901760
    %2499 = vmatpush.msra.mxu0 %v2498
    %v2500 = vand.u32 %v2204, 4294901760
    %v2501 = vsub.f32 %v2204, %v2500
    %v2502 = vand.u32 %v2501, 4294901760
    %2503 = vmatpush.msra.mxu0 %v2502
    %v2504 = vand.u32 %v2203, 4294901760
    %v2505 = vsub.f32 %v2203, %v2504
    %v2506 = vand.u32 %v2505, 4294901760
    %2507 = vmatpush.msra.mxu0 %v2506
    %v2508 = vand.u32 %v2202, 4294901760
    %v2509 = vsub.f32 %v2202, %v2508
    %v2510 = vand.u32 %v2509, 4294901760
    %2511 = vmatpush.msra.mxu0 %v2510
    %v2512 = vand.u32 %v2201, 4294901760
    %v2513 = vsub.f32 %v2201, %v2512
    %v2514 = vand.u32 %v2513, 4294901760
    %2515 = vmatpush.msra.mxu0 %v2514
    %v2516 = vand.u32 %v2200, 4294901760
    %v2517 = vsub.f32 %v2200, %v2516
    %v2518 = vand.u32 %v2517, 4294901760
    %2519 = vmatpush.msra.mxu0 %v2518
    %v2520 = vand.u32 %v2199, 4294901760
    %v2521 = vsub.f32 %v2199, %v2520
    %v2522 = vand.u32 %v2521, 4294901760
    %2523 = vmatpush.msra.mxu0 %v2522
    %v2524 = vand.u32 %v2198, 4294901760
    %v2525 = vsub.f32 %v2198, %v2524
    %v2526 = vand.u32 %v2525, 4294901760
    %2527 = vmatpush.msra.mxu0 %v2526
    %v2528 = vand.u32 %v2197, 4294901760
    %v2529 = vsub.f32 %v2197, %v2528
    %v2530 = vand.u32 %v2529, 4294901760
    %2531 = vmatpush.msra.mxu0 %v2530
    %v2532 = vand.u32 %v2196, 4294901760
    %v2533 = vsub.f32 %v2196, %v2532
    %v2534 = vand.u32 %v2533, 4294901760
    %2535 = vmatpush.msra.mxu0 %v2534
    %v2536 = vand.u32 %v2193, 4294901760
    %2537 = vmatmul.f32.gmra.mxu0 %v2536
    %v2538 = vpop.f32.mrf.mxu0
    %v2539 = vadd.f32 %v2464, %v2538
    %v2540 = vand.u32 %v2194, 4294901760
    %2541 = vmatmul.f32.gmra.mxu0 %v2540
    %v2542 = vpop.f32.mrf.mxu0
    %v2543 = vadd.f32 %v2470, %v2542
    %2544 = vdwg.mxu0
    %v2545 = vand.u32 %v2211, 4294901760
    %2546 = vmatpush.msra.mxu0 %v2545
    %v2547 = vand.u32 %v2210, 4294901760
    %2548 = vmatpush.msra.mxu0 %v2547
    %v2549 = vand.u32 %v2209, 4294901760
    %2550 = vmatpush.msra.mxu0 %v2549
    %v2551 = vand.u32 %v2208, 4294901760
    %2552 = vmatpush.msra.mxu0 %v2551
    %v2553 = vand.u32 %v2207, 4294901760
    %2554 = vmatpush.msra.mxu0 %v2553
    %v2555 = vand.u32 %v2206, 4294901760
    %2556 = vmatpush.msra.mxu0 %v2555
    %v2557 = vand.u32 %v2205, 4294901760
    %2558 = vmatpush.msra.mxu0 %v2557
    %v2559 = vand.u32 %v2204, 4294901760
    %2560 = vmatpush.msra.mxu0 %v2559
    %v2561 = vand.u32 %v2203, 4294901760
    %2562 = vmatpush.msra.mxu0 %v2561
    %v2563 = vand.u32 %v2202, 4294901760
    %2564 = vmatpush.msra.mxu0 %v2563
    %v2565 = vand.u32 %v2201, 4294901760
    %2566 = vmatpush.msra.mxu0 %v2565
    %v2567 = vand.u32 %v2200, 4294901760
    %2568 = vmatpush.msra.mxu0 %v2567
    %v2569 = vand.u32 %v2199, 4294901760
    %2570 = vmatpush.msra.mxu0 %v2569
    %v2571 = vand.u32 %v2198, 4294901760
    %2572 = vmatpush.msra.mxu0 %v2571
    %v2573 = vand.u32 %v2197, 4294901760
    %2574 = vmatpush.msra.mxu0 %v2573
    %v2575 = vand.u32 %v2196, 4294901760
    %2576 = vmatpush.msra.mxu0 %v2575
    %v2577 = vand.u32 %v2193, 4294901760
    %2578 = vmatmul.f32.gmra.mxu0 %v2577
    %v2579 = vpop.f32.mrf.mxu0
    %v2580 = vadd.f32 %v2539, %v2579
    %v2581 = vand.u32 %v2194, 4294901760
    %2582 = vmatmul.f32.gmra.mxu0 %v2581
    %v2583 = vpop.f32.mrf.mxu0
    %v2584 = vadd.f32 %v2543, %v2583
    %2585 = vdwg.mxu0
    %v2586 = vxor.u32 %v2580, 2147483648
    %v2587 = vxor.u32 %v2584, 2147483648
    %v2588 = vmul.f32 %v2586, 1.442695
    %v2589 = vpow.pop %v2588
    %v2590 = vmul.f32 %v2587, 1.442695
    %v2591 = vpow.pop %v2590
    %v2592 = vadd.f32 %v2589, 1.0
    %v2593 = vadd.f32 %v2591, 1.0
    %v2594 = vrcp.pop %v2592
    %v2595 = vmul.f32 %v2592, %v2594
    %v2596 = vsub.f32 1.0, %v2595
    %v2597 = vmul.f32 %v2594, %v2596
    %v2598 = vadd.f32 %v2594, %v2597
    %vm2599 = vweird.f32 %v2592
    %vm2600 = vweird.f32 %v2594
    %vm2601 = vmor %vm2599, %vm2600
    %v2602 = vsel %vm2601, %v2594, %v2598
    %v2603 = vand.u32 2147483647, %v2592
    %vm2604 = vcmp.eq.f32.partialorder %v2603, 8.507059e+37
    %v2605 = vand.u32 %v2592, 2147483648
    %v2606 = vor.u32 1.1754944e-38, %v2605
    %v2607 = vsel %vm2604, %v2606, %v2602
    %v2608 = vmul.f32 1.0, %v2607
    %v2609 = vrcp.pop %v2593
    %v2610 = vmul.f32 %v2593, %v2609
    %v2611 = vsub.f32 1.0, %v2610
    %v2612 = vmul.f32 %v2609, %v2611
    %v2613 = vadd.f32 %v2609, %v2612
    %vm2614 = vweird.f32 %v2593
    %vm2615 = vweird.f32 %v2609
    %vm2616 = vmor %vm2614, %vm2615
    %v2617 = vsel %vm2616, %v2609, %v2613
    %v2618 = vand.u32 2147483647, %v2593
    %vm2619 = vcmp.eq.f32.partialorder %v2618, 8.507059e+37
    %v2620 = vand.u32 %v2593, 2147483648
    %v2621 = vor.u32 1.1754944e-38, %v2620
    %v2622 = vsel %vm2619, %v2621, %v2617
    %v2623 = vmul.f32 1.0, %v2622
    %v2624 = vmul.f32 %v2580, %v2608
    %v2625 = vmul.f32 %v2584, %v2623
    %2626 = vadd.xlane.f32.xlu0 %v2624
    %v2627 = vpop.xlane.xlu0 %2626
    %2628 = vadd.xlane.f32.xlu0 %v2625
    %v2629 = vpop.xlane.xlu0 %2628
    %v2630 = vmul.f32 %v2627, %v272
    %v2631 = vmul.f32 %v2629, %v272
    %v2632 = vsub.f32 %v2624, %v2630
    %v2633 = vsub.f32 %v2625, %v2631
    %v2634 = vmul.f32 %v2632, %v2632
    %v2635 = vmul.f32 %v2633, %v2633
    %2636 = vadd.xlane.f32.xlu0 %v2634
    %v2637 = vpop.xlane.xlu0 %2636
    %2638 = vadd.xlane.f32.xlu0 %v2635
    %v2639 = vpop.xlane.xlu0 %2638
    %v2640 = vmul.f32 %v2637, %v272
    %v2641 = vmul.f32 %v2639, %v272
    %v2642 = vadd.f32 %v2640, 1e-05
    %v2643 = vadd.f32 %v2641, 1e-05
    %v2644 = vrsqrt.pop %v2642
    %v2645 = vmul.f32 %v2644, %v2642
    %v2646 = vmul.f32 %v2645, %v2644
    %v2647 = vmul.f32 0.5, %v2646
    %v2648 = vsub.f32 1.5, %v2647
    %v2649 = vmul.f32 %v2644, %v2648
    %vm2650 = vweird.f32 %v2642
    %vm2651 = vweird.f32 %v2644
    %vm2652 = vmor %vm2650, %vm2651
    %v2653 = vsel %vm2652, %v2644, %v2649
    %v2654 = vrsqrt.pop %v2643
    %v2655 = vmul.f32 %v2654, %v2643
    %v2656 = vmul.f32 %v2655, %v2654
    %v2657 = vmul.f32 0.5, %v2656
    %v2658 = vsub.f32 1.5, %v2657
    %v2659 = vmul.f32 %v2654, %v2658
    %vm2660 = vweird.f32 %v2643
    %vm2661 = vweird.f32 %v2654
    %vm2662 = vmor %vm2660, %vm2661
    %v2663 = vsel %vm2662, %v2654, %v2659
    %v2664 = vmul.f32 %v2632, %v2653
    %v2665 = vmul.f32 %v2633, %v2663
    %s2666 = scalar_lea.vmem [#allocation5], 256
    %v2667 = vld [vmem:[%s2666] sm:$0xff]
    %v2668 = vld [vmem:[%s2666 + $0x8] sm:$0xff]
    %v2669 = vld [vmem:[%s2666 + $0x10] sm:$0xff]
    %v2670 = vld [vmem:[%s2666 + $0x18] sm:$0xff]
    %v2671 = vld [vmem:[%s2666 + $0x20] sm:$0xff]
    %v2672 = vld [vmem:[%s2666 + $0x28] sm:$0xff]
    %v2673 = vld [vmem:[%s2666 + $0x30] sm:$0xff]
    %v2674 = vld [vmem:[%s2666 + $0x38] sm:$0xff]
    %v2675 = vld [vmem:[%s2666 + $0x40] sm:$0xff]
    %v2676 = vld [vmem:[%s2666 + $0x48] sm:$0xff]
    %v2677 = vld [vmem:[%s2666 + $0x50] sm:$0xff]
    %v2678 = vld [vmem:[%s2666 + $0x58] sm:$0xff]
    %v2679 = vld [vmem:[%s2666 + $0x60] sm:$0xff]
    %v2680 = vld [vmem:[%s2666 + $0x68] sm:$0xff]
    %v2681 = vld [vmem:[%s2666 + $0x70] sm:$0xff]
    %v2682 = vld [vmem:[%s2666 + $0x78] sm:$0xff]
    %v2683 = vld [vmem:[%s5 + $0x6] sm:$0x1]
    %v2684 = vperm.slane %v2683, 0
    %v2685 = vand.u32 %v2682, 4294901760
    %2686 = vmatpush.msra.mxu0 %v2685
    %v2687 = vand.u32 %v2681, 4294901760
    %2688 = vmatpush.msra.mxu0 %v2687
    %v2689 = vand.u32 %v2680, 4294901760
    %2690 = vmatpush.msra.mxu0 %v2689
    %v2691 = vand.u32 %v2679, 4294901760
    %2692 = vmatpush.msra.mxu0 %v2691
    %v2693 = vand.u32 %v2678, 4294901760
    %2694 = vmatpush.msra.mxu0 %v2693
    %v2695 = vand.u32 %v2677, 4294901760
    %2696 = vmatpush.msra.mxu0 %v2695
    %v2697 = vand.u32 %v2676, 4294901760
    %2698 = vmatpush.msra.mxu0 %v2697
    %v2699 = vand.u32 %v2675, 4294901760
    %2700 = vmatpush.msra.mxu0 %v2699
    %v2701 = vand.u32 %v2674, 4294901760
    %2702 = vmatpush.msra.mxu0 %v2701
    %v2703 = vand.u32 %v2673, 4294901760
    %2704 = vmatpush.msra.mxu0 %v2703
    %v2705 = vand.u32 %v2672, 4294901760
    %2706 = vmatpush.msra.mxu0 %v2705
    %v2707 = vand.u32 %v2671, 4294901760
    %2708 = vmatpush.msra.mxu0 %v2707
    %v2709 = vand.u32 %v2670, 4294901760
    %2710 = vmatpush.msra.mxu0 %v2709
    %v2711 = vand.u32 %v2669, 4294901760
    %2712 = vmatpush.msra.mxu0 %v2711
    %v2713 = vand.u32 %v2668, 4294901760
    %2714 = vmatpush.msra.mxu0 %v2713
    %v2715 = vand.u32 %v2667, 4294901760
    %2716 = vmatpush.msra.mxu0 %v2715
    %v2717 = vand.u32 %v2664, 4294901760
    %v2718 = vsub.f32 %v2664, %v2717
    %v2719 = vand.u32 %v2718, 4294901760
    %v2720 = vsub.f32 %v2718, %v2719
    %v2721 = vand.u32 %v2720, 4294901760
    %2722 = vmatmul.f32.gmra.mxu0 %v2721
    %v2723 = vpop.f32.mrf.mxu0
    %v2724 = vadd.f32 %v2684, %v2723
    %v2725 = vand.u32 %v2665, 4294901760
    %v2726 = vsub.f32 %v2665, %v2725
    %v2727 = vand.u32 %v2726, 4294901760
    %v2728 = vsub.f32 %v2726, %v2727
    %v2729 = vand.u32 %v2728, 4294901760
    %2730 = vmatmul.f32.gmra.mxu0 %v2729
    %v2731 = vpop.f32.mrf.mxu0
    %v2732 = vadd.f32 %v2684, %v2731
    %2733 = vdwg.mxu0
    %v2734 = vand.u32 %v2682, 4294901760
    %v2735 = vsub.f32 %v2682, %v2734
    %v2736 = vand.u32 %v2735, 4294901760
    %v2737 = vsub.f32 %v2735, %v2736
    %v2738 = vand.u32 %v2737, 4294901760
    %2739 = vmatpush.msra.mxu0 %v2738
    %v2740 = vand.u32 %v2681, 4294901760
    %v2741 = vsub.f32 %v2681, %v2740
    %v2742 = vand.u32 %v2741, 4294901760
    %v2743 = vsub.f32 %v2741, %v2742
    %v2744 = vand.u32 %v2743, 4294901760
    %2745 = vmatpush.msra.mxu0 %v2744
    %v2746 = vand.u32 %v2680, 4294901760
    %v2747 = vsub.f32 %v2680, %v2746
    %v2748 = vand.u32 %v2747, 4294901760
    %v2749 = vsub.f32 %v2747, %v2748
    %v2750 = vand.u32 %v2749, 4294901760
    %2751 = vmatpush.msra.mxu0 %v2750
    %v2752 = vand.u32 %v2679, 4294901760
    %v2753 = vsub.f32 %v2679, %v2752
    %v2754 = vand.u32 %v2753, 4294901760
    %v2755 = vsub.f32 %v2753, %v2754
    %v2756 = vand.u32 %v2755, 4294901760
    %2757 = vmatpush.msra.mxu0 %v2756
    %v2758 = vand.u32 %v2678, 4294901760
    %v2759 = vsub.f32 %v2678, %v2758
    %v2760 = vand.u32 %v2759, 4294901760
    %v2761 = vsub.f32 %v2759, %v2760
    %v2762 = vand.u32 %v2761, 4294901760
    %2763 = vmatpush.msra.mxu0 %v2762
    %v2764 = vand.u32 %v2677, 4294901760
    %v2765 = vsub.f32 %v2677, %v2764
    %v2766 = vand.u32 %v2765, 4294901760
    %v2767 = vsub.f32 %v2765, %v2766
    %v2768 = vand.u32 %v2767, 4294901760
    %2769 = vmatpush.msra.mxu0 %v2768
    %v2770 = vand.u32 %v2676, 4294901760
    %v2771 = vsub.f32 %v2676, %v2770
    %v2772 = vand.u32 %v2771, 4294901760
    %v2773 = vsub.f32 %v2771, %v2772
    %v2774 = vand.u32 %v2773, 4294901760
    %2775 = vmatpush.msra.mxu0 %v2774
    %v2776 = vand.u32 %v2675, 4294901760
    %v2777 = vsub.f32 %v2675, %v2776
    %v2778 = vand.u32 %v2777, 4294901760
    %v2779 = vsub.f32 %v2777, %v2778
    %v2780 = vand.u32 %v2779, 4294901760
    %2781 = vmatpush.msra.mxu0 %v2780
    %v2782 = vand.u32 %v2674, 4294901760
    %v2783 = vsub.f32 %v2674, %v2782
    %v2784 = vand.u32 %v2783, 4294901760
    %v2785 = vsub.f32 %v2783, %v2784
    %v2786 = vand.u32 %v2785, 4294901760
    %2787 = vmatpush.msra.mxu0 %v2786
    %v2788 = vand.u32 %v2673, 4294901760
    %v2789 = vsub.f32 %v2673, %v2788
    %v2790 = vand.u32 %v2789, 4294901760
    %v2791 = vsub.f32 %v2789, %v2790
    %v2792 = vand.u32 %v2791, 4294901760
    %2793 = vmatpush.msra.mxu0 %v2792
    %v2794 = vand.u32 %v2672, 4294901760
    %v2795 = vsub.f32 %v2672, %v2794
    %v2796 = vand.u32 %v2795, 4294901760
    %v2797 = vsub.f32 %v2795, %v2796
    %v2798 = vand.u32 %v2797, 4294901760
    %2799 = vmatpush.msra.mxu0 %v2798
    %v2800 = vand.u32 %v2671, 4294901760
    %v2801 = vsub.f32 %v2671, %v2800
    %v2802 = vand.u32 %v2801, 4294901760
    %v2803 = vsub.f32 %v2801, %v2802
    %v2804 = vand.u32 %v2803, 4294901760
    %2805 = vmatpush.msra.mxu0 %v2804
    %v2806 = vand.u32 %v2670, 4294901760
    %v2807 = vsub.f32 %v2670, %v2806
    %v2808 = vand.u32 %v2807, 4294901760
    %v2809 = vsub.f32 %v2807, %v2808
    %v2810 = vand.u32 %v2809, 4294901760
    %2811 = vmatpush.msra.mxu0 %v2810
    %v2812 = vand.u32 %v2669, 4294901760
    %v2813 = vsub.f32 %v2669, %v2812
    %v2814 = vand.u32 %v2813, 4294901760
    %v2815 = vsub.f32 %v2813, %v2814
    %v2816 = vand.u32 %v2815, 4294901760
    %2817 = vmatpush.msra.mxu0 %v2816
    %v2818 = vand.u32 %v2668, 4294901760
    %v2819 = vsub.f32 %v2668, %v2818
    %v2820 = vand.u32 %v2819, 4294901760
    %v2821 = vsub.f32 %v2819, %v2820
    %v2822 = vand.u32 %v2821, 4294901760
    %2823 = vmatpush.msra.mxu0 %v2822
    %v2824 = vand.u32 %v2667, 4294901760
    %v2825 = vsub.f32 %v2667, %v2824
    %v2826 = vand.u32 %v2825, 4294901760
    %v2827 = vsub.f32 %v2825, %v2826
    %v2828 = vand.u32 %v2827, 4294901760
    %2829 = vmatpush.msra.mxu0 %v2828
    %v2830 = vand.u32 %v2664, 4294901760
    %2831 = vmatmul.f32.gmra.mxu0 %v2830
    %v2832 = vpop.f32.mrf.mxu0
    %v2833 = vadd.f32 %v2724, %v2832
    %v2834 = vand.u32 %v2665, 4294901760
    %2835 = vmatmul.f32.gmra.mxu0 %v2834
    %v2836 = vpop.f32.mrf.mxu0
    %v2837 = vadd.f32 %v2732, %v2836
    %2838 = vdwg.mxu0
    %v2839 = vand.u32 %v2682, 4294901760
    %v2840 = vsub.f32 %v2682, %v2839
    %2841 = vmatpush.msra.mxu0 %v2840
    %v2842 = vand.u32 %v2681, 4294901760
    %v2843 = vsub.f32 %v2681, %v2842
    %2844 = vmatpush.msra.mxu0 %v2843
    %v2845 = vand.u32 %v2680, 4294901760
    %v2846 = vsub.f32 %v2680, %v2845
    %2847 = vmatpush.msra.mxu0 %v2846
    %v2848 = vand.u32 %v2679, 4294901760
    %v2849 = vsub.f32 %v2679, %v2848
    %2850 = vmatpush.msra.mxu0 %v2849
    %v2851 = vand.u32 %v2678, 4294901760
    %v2852 = vsub.f32 %v2678, %v2851
    %2853 = vmatpush.msra.mxu0 %v2852
    %v2854 = vand.u32 %v2677, 4294901760
    %v2855 = vsub.f32 %v2677, %v2854
    %2856 = vmatpush.msra.mxu0 %v2855
    %v2857 = vand.u32 %v2676, 4294901760
    %v2858 = vsub.f32 %v2676, %v2857
    %2859 = vmatpush.msra.mxu0 %v2858
    %v2860 = vand.u32 %v2675, 4294901760
    %v2861 = vsub.f32 %v2675, %v2860
    %2862 = vmatpush.msra.mxu0 %v2861
    %v2863 = vand.u32 %v2674, 4294901760
    %v2864 = vsub.f32 %v2674, %v2863
    %2865 = vmatpush.msra.mxu0 %v2864
    %v2866 = vand.u32 %v2673, 4294901760
    %v2867 = vsub.f32 %v2673, %v2866
    %2868 = vmatpush.msra.mxu0 %v2867
    %v2869 = vand.u32 %v2672, 4294901760
    %v2870 = vsub.f32 %v2672, %v2869
    %2871 = vmatpush.msra.mxu0 %v2870
    %v2872 = vand.u32 %v2671, 4294901760
    %v2873 = vsub.f32 %v2671, %v2872
    %2874 = vmatpush.msra.mxu0 %v2873
    %v2875 = vand.u32 %v2670, 4294901760
    %v2876 = vsub.f32 %v2670, %v2875
    %2877 = vmatpush.msra.mxu0 %v2876
    %v2878 = vand.u32 %v2669, 4294901760
    %v2879 = vsub.f32 %v2669, %v2878
    %2880 = vmatpush.msra.mxu0 %v2879
    %v2881 = vand.u32 %v2668, 4294901760
    %v2882 = vsub.f32 %v2668, %v2881
    %2883 = vmatpush.msra.mxu0 %v2882
    %v2884 = vand.u32 %v2667, 4294901760
    %v2885 = vsub.f32 %v2667, %v2884
    %2886 = vmatpush.msra.mxu0 %v2885
    %v2887 = vand.u32 %v2664, 4294901760
    %v2888 = vsub.f32 %v2664, %v2887
    %2889 = vmatmul.f32.gmra.mxu0 %v2888
    %v2890 = vpop.f32.mrf.mxu0
    %v2891 = vadd.f32 %v2833, %v2890
    %v2892 = vand.u32 %v2665, 4294901760
    %v2893 = vsub.f32 %v2665, %v2892
    %2894 = vmatmul.f32.gmra.mxu0 %v2893
    %v2895 = vpop.f32.mrf.mxu0
    %v2896 = vadd.f32 %v2837, %v2895
    %2897 = vdwg.mxu0
    %v2898 = vand.u32 %v2682, 4294901760
    %2899 = vmatpush.msra.mxu0 %v2898
    %v2900 = vand.u32 %v2681, 4294901760
    %2901 = vmatpush.msra.mxu0 %v2900
    %v2902 = vand.u32 %v2680, 4294901760
    %2903 = vmatpush.msra.mxu0 %v2902
    %v2904 = vand.u32 %v2679, 4294901760
    %2905 = vmatpush.msra.mxu0 %v2904
    %v2906 = vand.u32 %v2678, 4294901760
    %2907 = vmatpush.msra.mxu0 %v2906
    %v2908 = vand.u32 %v2677, 4294901760
    %2909 = vmatpush.msra.mxu0 %v2908
    %v2910 = vand.u32 %v2676, 4294901760
    %2911 = vmatpush.msra.mxu0 %v2910
    %v2912 = vand.u32 %v2675, 4294901760
    %2913 = vmatpush.msra.mxu0 %v2912
    %v2914 = vand.u32 %v2674, 4294901760
    %2915 = vmatpush.msra.mxu0 %v2914
    %v2916 = vand.u32 %v2673, 4294901760
    %2917 = vmatpush.msra.mxu0 %v2916
    %v2918 = vand.u32 %v2672, 4294901760
    %2919 = vmatpush.msra.mxu0 %v2918
    %v2920 = vand.u32 %v2671, 4294901760
    %2921 = vmatpush.msra.mxu0 %v2920
    %v2922 = vand.u32 %v2670, 4294901760
    %2923 = vmatpush.msra.mxu0 %v2922
    %v2924 = vand.u32 %v2669, 4294901760
    %2925 = vmatpush.msra.mxu0 %v2924
    %v2926 = vand.u32 %v2668, 4294901760
    %2927 = vmatpush.msra.mxu0 %v2926
    %v2928 = vand.u32 %v2667, 4294901760
    %2929 = vmatpush.msra.mxu0 %v2928
    %v2930 = vand.u32 %v2664, 4294901760
    %v2931 = vsub.f32 %v2664, %v2930
    %v2932 = vand.u32 %v2931, 4294901760
    %2933 = vmatmul.f32.gmra.mxu0 %v2932
    %v2934 = vpop.f32.mrf.mxu0
    %v2935 = vadd.f32 %v2891, %v2934
    %v2936 = vand.u32 %v2665, 4294901760
    %v2937 = vsub.f32 %v2665, %v2936
    %v2938 = vand.u32 %v2937, 4294901760
    %2939 = vmatmul.f32.gmra.mxu0 %v2938
    %v2940 = vpop.f32.mrf.mxu0
    %v2941 = vadd.f32 %v2896, %v2940
    %2942 = vdwg.mxu0
    %v2943 = vand.u32 %v2682, 4294901760
    %v2944 = vsub.f32 %v2682, %v2943
    %v2945 = vand.u32 %v2944, 4294901760
    %2946 = vmatpush.msra.mxu0 %v2945
    %v2947 = vand.u32 %v2681, 4294901760
    %v2948 = vsub.f32 %v2681, %v2947
    %v2949 = vand.u32 %v2948, 4294901760
    %2950 = vmatpush.msra.mxu0 %v2949
    %v2951 = vand.u32 %v2680, 4294901760
    %v2952 = vsub.f32 %v2680, %v2951
    %v2953 = vand.u32 %v2952, 4294901760
    %2954 = vmatpush.msra.mxu0 %v2953
    %v2955 = vand.u32 %v2679, 4294901760
    %v2956 = vsub.f32 %v2679, %v2955
    %v2957 = vand.u32 %v2956, 4294901760
    %2958 = vmatpush.msra.mxu0 %v2957
    %v2959 = vand.u32 %v2678, 4294901760
    %v2960 = vsub.f32 %v2678, %v2959
    %v2961 = vand.u32 %v2960, 4294901760
    %2962 = vmatpush.msra.mxu0 %v2961
    %v2963 = vand.u32 %v2677, 4294901760
    %v2964 = vsub.f32 %v2677, %v2963
    %v2965 = vand.u32 %v2964, 4294901760
    %2966 = vmatpush.msra.mxu0 %v2965
    %v2967 = vand.u32 %v2676, 4294901760
    %v2968 = vsub.f32 %v2676, %v2967
    %v2969 = vand.u32 %v2968, 4294901760
    %2970 = vmatpush.msra.mxu0 %v2969
    %v2971 = vand.u32 %v2675, 4294901760
    %v2972 = vsub.f32 %v2675, %v2971
    %v2973 = vand.u32 %v2972, 4294901760
    %2974 = vmatpush.msra.mxu0 %v2973
    %v2975 = vand.u32 %v2674, 4294901760
    %v2976 = vsub.f32 %v2674, %v2975
    %v2977 = vand.u32 %v2976, 4294901760
    %2978 = vmatpush.msra.mxu0 %v2977
    %v2979 = vand.u32 %v2673, 4294901760
    %v2980 = vsub.f32 %v2673, %v2979
    %v2981 = vand.u32 %v2980, 4294901760
    %2982 = vmatpush.msra.mxu0 %v2981
    %v2983 = vand.u32 %v2672, 4294901760
    %v2984 = vsub.f32 %v2672, %v2983
    %v2985 = vand.u32 %v2984, 4294901760
    %2986 = vmatpush.msra.mxu0 %v2985
    %v2987 = vand.u32 %v2671, 4294901760
    %v2988 = vsub.f32 %v2671, %v2987
    %v2989 = vand.u32 %v2988, 4294901760
    %2990 = vmatpush.msra.mxu0 %v2989
    %v2991 = vand.u32 %v2670, 4294901760
    %v2992 = vsub.f32 %v2670, %v2991
    %v2993 = vand.u32 %v2992, 4294901760
    %2994 = vmatpush.msra.mxu0 %v2993
    %v2995 = vand.u32 %v2669, 4294901760
    %v2996 = vsub.f32 %v2669, %v2995
    %v2997 = vand.u32 %v2996, 4294901760
    %2998 = vmatpush.msra.mxu0 %v2997
    %v2999 = vand.u32 %v2668, 4294901760
    %v3000 = vsub.f32 %v2668, %v2999
    %v3001 = vand.u32 %v3000, 4294901760
    %3002 = vmatpush.msra.mxu0 %v3001
    %v3003 = vand.u32 %v2667, 4294901760
    %v3004 = vsub.f32 %v2667, %v3003
    %v3005 = vand.u32 %v3004, 4294901760
    %3006 = vmatpush.msra.mxu0 %v3005
    %v3007 = vand.u32 %v2664, 4294901760
    %3008 = vmatmul.f32.gmra.mxu0 %v3007
    %v3009 = vpop.f32.mrf.mxu0
    %v3010 = vadd.f32 %v2935, %v3009
    %v3011 = vand.u32 %v2665, 4294901760
    %3012 = vmatmul.f32.gmra.mxu0 %v3011
    %v3013 = vpop.f32.mrf.mxu0
    %v3014 = vadd.f32 %v2941, %v3013
    %3015 = vdwg.mxu0
    %v3016 = vand.u32 %v2682, 4294901760
    %3017 = vmatpush.msra.mxu0 %v3016
    %v3018 = vand.u32 %v2681, 4294901760
    %3019 = vmatpush.msra.mxu0 %v3018
    %v3020 = vand.u32 %v2680, 4294901760
    %3021 = vmatpush.msra.mxu0 %v3020
    %v3022 = vand.u32 %v2679, 4294901760
    %3023 = vmatpush.msra.mxu0 %v3022
    %v3024 = vand.u32 %v2678, 4294901760
    %3025 = vmatpush.msra.mxu0 %v3024
    %v3026 = vand.u32 %v2677, 4294901760
    %3027 = vmatpush.msra.mxu0 %v3026
    %v3028 = vand.u32 %v2676, 4294901760
    %3029 = vmatpush.msra.mxu0 %v3028
    %v3030 = vand.u32 %v2675, 4294901760
    %3031 = vmatpush.msra.mxu0 %v3030
    %v3032 = vand.u32 %v2674, 4294901760
    %3033 = vmatpush.msra.mxu0 %v3032
    %v3034 = vand.u32 %v2673, 4294901760
    %3035 = vmatpush.msra.mxu0 %v3034
    %v3036 = vand.u32 %v2672, 4294901760
    %3037 = vmatpush.msra.mxu0 %v3036
    %v3038 = vand.u32 %v2671, 4294901760
    %3039 = vmatpush.msra.mxu0 %v3038
    %v3040 = vand.u32 %v2670, 4294901760
    %3041 = vmatpush.msra.mxu0 %v3040
    %v3042 = vand.u32 %v2669, 4294901760
    %3043 = vmatpush.msra.mxu0 %v3042
    %v3044 = vand.u32 %v2668, 4294901760
    %3045 = vmatpush.msra.mxu0 %v3044
    %v3046 = vand.u32 %v2667, 4294901760
    %3047 = vmatpush.msra.mxu0 %v3046
    %v3048 = vand.u32 %v2664, 4294901760
    %3049 = vmatmul.f32.gmra.mxu0 %v3048
    %v3050 = vpop.f32.mrf.mxu0
    %v3051 = vadd.f32 %v3010, %v3050
    %v3052 = vand.u32 %v2665, 4294901760
    %3053 = vmatmul.f32.gmra.mxu0 %v3052
    %v3054 = vpop.f32.mrf.mxu0
    %v3055 = vadd.f32 %v3014, %v3054
    %3056 = vdwg.mxu0
    %v3057 = vadd.f32 %v2153, %v3051
    %v3058 = vadd.f32 %v2154, %v3055
    %v3059 = vxor.u32 %v3057, 2147483648
    %v3060 = vxor.u32 %v3058, 2147483648
    %v3061 = vmul.f32 %v3059, 1.442695
    %v3062 = vpow.pop %v3061
    %v3063 = vmul.f32 %v3060, 1.442695
    %v3064 = vpow.pop %v3063
    %v3065 = vadd.f32 %v3062, 1.0
    %v3066 = vadd.f32 %v3064, 1.0
    %v3067 = vrcp.pop %v3065
    %v3068 = vmul.f32 %v3065, %v3067
    %v3069 = vsub.f32 1.0, %v3068
    %v3070 = vmul.f32 %v3067, %v3069
    %v3071 = vadd.f32 %v3067, %v3070
    %vm3072 = vweird.f32 %v3065
    %vm3073 = vweird.f32 %v3067
    %vm3074 = vmor %vm3072, %vm3073
    %v3075 = vsel %vm3074, %v3067, %v3071
    %v3076 = vand.u32 2147483647, %v3065
    %vm3077 = vcmp.eq.f32.partialorder %v3076, 8.507059e+37
    %v3078 = vand.u32 %v3065, 2147483648
    %v3079 = vor.u32 1.1754944e-38, %v3078
    %v3080 = vsel %vm3077, %v3079, %v3075
    %v3081 = vmul.f32 1.0, %v3080
    %v3082 = vrcp.pop %v3066
    %v3083 = vmul.f32 %v3066, %v3082
    %v3084 = vsub.f32 1.0, %v3083
    %v3085 = vmul.f32 %v3082, %v3084
    %v3086 = vadd.f32 %v3082, %v3085
    %vm3087 = vweird.f32 %v3066
    %vm3088 = vweird.f32 %v3082
    %vm3089 = vmor %vm3087, %vm3088
    %v3090 = vsel %vm3089, %v3082, %v3086
    %v3091 = vand.u32 2147483647, %v3066
    %vm3092 = vcmp.eq.f32.partialorder %v3091, 8.507059e+37
    %v3093 = vand.u32 %v3066, 2147483648
    %v3094 = vor.u32 1.1754944e-38, %v3093
    %v3095 = vsel %vm3092, %v3094, %v3090
    %v3096 = vmul.f32 1.0, %v3095
    %v3097 = vmul.f32 %v3057, %v3081
    %v3098 = vmul.f32 %v3058, %v3096
    %v3099 = vld [vmem:[%s4] sm:$0xff]
    %v3100 = vld [vmem:[%s4 + $0x8] sm:$0xff]
    %v3101 = vld [vmem:[%s4 + $0x10] sm:$0xff]
    %v3102 = vld [vmem:[%s4 + $0x18] sm:$0xff]
    %v3103 = vld [vmem:[%s4 + $0x20] sm:$0xff]
    %v3104 = vld [vmem:[%s4 + $0x28] sm:$0xff]
    %v3105 = vld [vmem:[%s4 + $0x30] sm:$0xff]
    %v3106 = vld [vmem:[%s4 + $0x38] sm:$0xff]
    %v3107 = vld [vmem:[%s4 + $0x40] sm:$0xff]
    %v3108 = vld [vmem:[%s4 + $0x48] sm:$0xff]
    %v3109 = vld [vmem:[%s4 + $0x50] sm:$0xff]
    %v3110 = vld [vmem:[%s4 + $0x58] sm:$0xff]
    %v3111 = vld [vmem:[%s4 + $0x60] sm:$0xff]
    %v3112 = vld [vmem:[%s4 + $0x68] sm:$0xff]
    %v3113 = vld [vmem:[%s4 + $0x70] sm:$0xff]
    %v3114 = vld [vmem:[%s4 + $0x78] sm:$0xff]
    %v3115 = vld [vmem:[%s6] sm:$0x1]
    %v3117 = vperm.slane %v3115, 0
    %v3119 = vand.u32 %v3114, 4294901760
    %3120 = vmatpush.msra.mxu0 %v3119
    %v3121 = vand.u32 %v3113, 4294901760
    %3122 = vmatpush.msra.mxu0 %v3121
    %v3123 = vand.u32 %v3112, 4294901760
    %3124 = vmatpush.msra.mxu0 %v3123
    %v3125 = vand.u32 %v3111, 4294901760
    %3126 = vmatpush.msra.mxu0 %v3125
    %v3127 = vand.u32 %v3110, 4294901760
    %3128 = vmatpush.msra.mxu0 %v3127
    %v3129 = vand.u32 %v3109, 4294901760
    %3130 = vmatpush.msra.mxu0 %v3129
    %v3131 = vand.u32 %v3108, 4294901760
    %3132 = vmatpush.msra.mxu0 %v3131
    %v3133 = vand.u32 %v3107, 4294901760
    %3134 = vmatpush.msra.mxu0 %v3133
    %v3135 = vand.u32 %v3106, 4294901760
    %3136 = vmatpush.msra.mxu0 %v3135
    %v3137 = vand.u32 %v3105, 4294901760
    %3138 = vmatpush.msra.mxu0 %v3137
    %v3139 = vand.u32 %v3104, 4294901760
    %3140 = vmatpush.msra.mxu0 %v3139
    %v3141 = vand.u32 %v3103, 4294901760
    %3142 = vmatpush.msra.mxu0 %v3141
    %v3143 = vand.u32 %v3102, 4294901760
    %3144 = vmatpush.msra.mxu0 %v3143
    %v3145 = vand.u32 %v3101, 4294901760
    %3146 = vmatpush.msra.mxu0 %v3145
    %v3147 = vand.u32 %v3100, 4294901760
    %3148 = vmatpush.msra.mxu0 %v3147
    %v3149 = vand.u32 %v3099, 4294901760
    %3150 = vmatpush.msra.mxu0 %v3149
    %v3151 = vand.u32 %v3097, 4294901760
    %v3152 = vsub.f32 %v3097, %v3151
    %v3153 = vand.u32 %v3152, 4294901760
    %v3154 = vsub.f32 %v3152, %v3153
    %v3155 = vand.u32 %v3154, 4294901760
    %3156 = vmatmul.f32.gmra.mxu0 %v3155
    %v3157 = vpop.f32.mrf.mxu0
    %v3158 = vadd.f32 %v3117, %v3157
    %v3159 = vand.u32 %v3098, 4294901760
    %v3160 = vsub.f32 %v3098, %v3159
    %v3161 = vand.u32 %v3160, 4294901760
    %v3162 = vsub.f32 %v3160, %v3161
    %v3163 = vand.u32 %v3162, 4294901760
    %3164 = vmatmul.f32.gmra.mxu0 %v3163
    %v3165 = vpop.f32.mrf.mxu0
    %v3166 = vadd.f32 %v3117, %v3165
    %3167 = vdwg.mxu0
    %v3168 = vand.u32 %v3114, 4294901760
    %v3169 = vsub.f32 %v3114, %v3168
    %v3170 = vand.u32 %v3169, 4294901760
    %v3171 = vsub.f32 %v3169, %v3170
    %v3172 = vand.u32 %v3171, 4294901760
    %3173 = vmatpush.msra.mxu0 %v3172
    %v3174 = vand.u32 %v3113, 4294901760
    %v3175 = vsub.f32 %v3113, %v3174
    %v3176 = vand.u32 %v3175, 4294901760
    %v3177 = vsub.f32 %v3175, %v3176
    %v3178 = vand.u32 %v3177, 4294901760
    %3179 = vmatpush.msra.mxu0 %v3178
    %v3180 = vand.u32 %v3112, 4294901760
    %v3181 = vsub.f32 %v3112, %v3180
    %v3182 = vand.u32 %v3181, 4294901760
    %v3183 = vsub.f32 %v3181, %v3182
    %v3184 = vand.u32 %v3183, 4294901760
    %3185 = vmatpush.msra.mxu0 %v3184
    %v3186 = vand.u32 %v3111, 4294901760
    %v3187 = vsub.f32 %v3111, %v3186
    %v3188 = vand.u32 %v3187, 4294901760
    %v3189 = vsub.f32 %v3187, %v3188
    %v3190 = vand.u32 %v3189, 4294901760
    %3191 = vmatpush.msra.mxu0 %v3190
    %v3192 = vand.u32 %v3110, 4294901760
    %v3193 = vsub.f32 %v3110, %v3192
    %v3194 = vand.u32 %v3193, 4294901760
    %v3195 = vsub.f32 %v3193, %v3194
    %v3196 = vand.u32 %v3195, 4294901760
    %3197 = vmatpush.msra.mxu0 %v3196
    %v3198 = vand.u32 %v3109, 4294901760
    %v3199 = vsub.f32 %v3109, %v3198
    %v3200 = vand.u32 %v3199, 4294901760
    %v3201 = vsub.f32 %v3199, %v3200
    %v3202 = vand.u32 %v3201, 4294901760
    %3203 = vmatpush.msra.mxu0 %v3202
    %v3204 = vand.u32 %v3108, 4294901760
    %v3205 = vsub.f32 %v3108, %v3204
    %v3206 = vand.u32 %v3205, 4294901760
    %v3207 = vsub.f32 %v3205, %v3206
    %v3208 = vand.u32 %v3207, 4294901760
    %3209 = vmatpush.msra.mxu0 %v3208
    %v3210 = vand.u32 %v3107, 4294901760
    %v3211 = vsub.f32 %v3107, %v3210
    %v3212 = vand.u32 %v3211, 4294901760
    %v3213 = vsub.f32 %v3211, %v3212
    %v3214 = vand.u32 %v3213, 4294901760
    %3215 = vmatpush.msra.mxu0 %v3214
    %v3216 = vand.u32 %v3106, 4294901760
    %v3217 = vsub.f32 %v3106, %v3216
    %v3218 = vand.u32 %v3217, 4294901760
    %v3219 = vsub.f32 %v3217, %v3218
    %v3220 = vand.u32 %v3219, 4294901760
    %3221 = vmatpush.msra.mxu0 %v3220
    %v3222 = vand.u32 %v3105, 4294901760
    %v3223 = vsub.f32 %v3105, %v3222
    %v3224 = vand.u32 %v3223, 4294901760
    %v3225 = vsub.f32 %v3223, %v3224
    %v3226 = vand.u32 %v3225, 4294901760
    %3227 = vmatpush.msra.mxu0 %v3226
    %v3228 = vand.u32 %v3104, 4294901760
    %v3229 = vsub.f32 %v3104, %v3228
    %v3230 = vand.u32 %v3229, 4294901760
    %v3231 = vsub.f32 %v3229, %v3230
    %v3232 = vand.u32 %v3231, 4294901760
    %3233 = vmatpush.msra.mxu0 %v3232
    %v3234 = vand.u32 %v3103, 4294901760
    %v3235 = vsub.f32 %v3103, %v3234
    %v3236 = vand.u32 %v3235, 4294901760
    %v3237 = vsub.f32 %v3235, %v3236
    %v3238 = vand.u32 %v3237, 4294901760
    %3239 = vmatpush.msra.mxu0 %v3238
    %v3240 = vand.u32 %v3102, 4294901760
    %v3241 = vsub.f32 %v3102, %v3240
    %v3242 = vand.u32 %v3241, 4294901760
    %v3243 = vsub.f32 %v3241, %v3242
    %v3244 = vand.u32 %v3243, 4294901760
    %3245 = vmatpush.msra.mxu0 %v3244
    %v3246 = vand.u32 %v3101, 4294901760
    %v3247 = vsub.f32 %v3101, %v3246
    %v3248 = vand.u32 %v3247, 4294901760
    %v3249 = vsub.f32 %v3247, %v3248
    %v3250 = vand.u32 %v3249, 4294901760
    %3251 = vmatpush.msra.mxu0 %v3250
    %v3252 = vand.u32 %v3100, 4294901760
    %v3253 = vsub.f32 %v3100, %v3252
    %v3254 = vand.u32 %v3253, 4294901760
    %v3255 = vsub.f32 %v3253, %v3254
    %v3256 = vand.u32 %v3255, 4294901760
    %3257 = vmatpush.msra.mxu0 %v3256
    %v3258 = vand.u32 %v3099, 4294901760
    %v3259 = vsub.f32 %v3099, %v3258
    %v3260 = vand.u32 %v3259, 4294901760
    %v3261 = vsub.f32 %v3259, %v3260
    %v3262 = vand.u32 %v3261, 4294901760
    %3263 = vmatpush.msra.mxu0 %v3262
    %v3264 = vand.u32 %v3097, 4294901760
    %3265 = vmatmul.f32.gmra.mxu0 %v3264
    %v3266 = vpop.f32.mrf.mxu0
    %v3267 = vadd.f32 %v3158, %v3266
    %v3268 = vand.u32 %v3098, 4294901760
    %3269 = vmatmul.f32.gmra.mxu0 %v3268
    %v3270 = vpop.f32.mrf.mxu0
    %v3271 = vadd.f32 %v3166, %v3270
    %3272 = vdwg.mxu0
    %v3273 = vand.u32 %v3114, 4294901760
    %v3274 = vsub.f32 %v3114, %v3273
    %3275 = vmatpush.msra.mxu0 %v3274
    %v3276 = vand.u32 %v3113, 4294901760
    %v3277 = vsub.f32 %v3113, %v3276
    %3278 = vmatpush.msra.mxu0 %v3277
    %v3279 = vand.u32 %v3112, 4294901760
    %v3280 = vsub.f32 %v3112, %v3279
    %3281 = vmatpush.msra.mxu0 %v3280
    %v3282 = vand.u32 %v3111, 4294901760
    %v3283 = vsub.f32 %v3111, %v3282
    %3284 = vmatpush.msra.mxu0 %v3283
    %v3285 = vand.u32 %v3110, 4294901760
    %v3286 = vsub.f32 %v3110, %v3285
    %3287 = vmatpush.msra.mxu0 %v3286
    %v3288 = vand.u32 %v3109, 4294901760
    %v3289 = vsub.f32 %v3109, %v3288
    %3290 = vmatpush.msra.mxu0 %v3289
    %v3291 = vand.u32 %v3108, 4294901760
    %v3292 = vsub.f32 %v3108, %v3291
    %3293 = vmatpush.msra.mxu0 %v3292
    %v3294 = vand.u32 %v3107, 4294901760
    %v3295 = vsub.f32 %v3107, %v3294
    %3296 = vmatpush.msra.mxu0 %v3295
    %v3297 = vand.u32 %v3106, 4294901760
    %v3298 = vsub.f32 %v3106, %v3297
    %3299 = vmatpush.msra.mxu0 %v3298
    %v3300 = vand.u32 %v3105, 4294901760
    %v3301 = vsub.f32 %v3105, %v3300
    %3302 = vmatpush.msra.mxu0 %v3301
    %v3303 = vand.u32 %v3104, 4294901760
    %v3304 = vsub.f32 %v3104, %v3303
    %3305 = vmatpush.msra.mxu0 %v3304
    %v3306 = vand.u32 %v3103, 4294901760
    %v3307 = vsub.f32 %v3103, %v3306
    %3308 = vmatpush.msra.mxu0 %v3307
    %v3309 = vand.u32 %v3102, 4294901760
    %v3310 = vsub.f32 %v3102, %v3309
    %3311 = vmatpush.msra.mxu0 %v3310
    %v3312 = vand.u32 %v3101, 4294901760
    %v3313 = vsub.f32 %v3101, %v3312
    %3314 = vmatpush.msra.mxu0 %v3313
    %v3315 = vand.u32 %v3100, 4294901760
    %v3316 = vsub.f32 %v3100, %v3315
    %3317 = vmatpush.msra.mxu0 %v3316
    %v3318 = vand.u32 %v3099, 4294901760
    %v3319 = vsub.f32 %v3099, %v3318
    %3320 = vmatpush.msra.mxu0 %v3319
    %v3321 = vand.u32 %v3097, 4294901760
    %v3322 = vsub.f32 %v3097, %v3321
    %3323 = vmatmul.f32.gmra.mxu0 %v3322
    %v3324 = vpop.f32.mrf.mxu0
    %v3325 = vadd.f32 %v3267, %v3324
    %v3326 = vand.u32 %v3098, 4294901760
    %v3327 = vsub.f32 %v3098, %v3326
    %3328 = vmatmul.f32.gmra.mxu0 %v3327
    %v3329 = vpop.f32.mrf.mxu0
    %v3330 = vadd.f32 %v3271, %v3329
    %3331 = vdwg.mxu0
    %v3332 = vand.u32 %v3114, 4294901760
    %3333 = vmatpush.msra.mxu0 %v3332
    %v3334 = vand.u32 %v3113, 4294901760
    %3335 = vmatpush.msra.mxu0 %v3334
    %v3336 = vand.u32 %v3112, 4294901760
    %3337 = vmatpush.msra.mxu0 %v3336
    %v3338 = vand.u32 %v3111, 4294901760
    %3339 = vmatpush.msra.mxu0 %v3338
    %v3340 = vand.u32 %v3110, 4294901760
    %3341 = vmatpush.msra.mxu0 %v3340
    %v3342 = vand.u32 %v3109, 4294901760
    %3343 = vmatpush.msra.mxu0 %v3342
    %v3344 = vand.u32 %v3108, 4294901760
    %3345 = vmatpush.msra.mxu0 %v3344
    %v3346 = vand.u32 %v3107, 4294901760
    %3347 = vmatpush.msra.mxu0 %v3346
    %v3348 = vand.u32 %v3106, 4294901760
    %3349 = vmatpush.msra.mxu0 %v3348
    %v3350 = vand.u32 %v3105, 4294901760
    %3351 = vmatpush.msra.mxu0 %v3350
    %v3352 = vand.u32 %v3104, 4294901760
    %3353 = vmatpush.msra.mxu0 %v3352
    %v3354 = vand.u32 %v3103, 4294901760
    %3355 = vmatpush.msra.mxu0 %v3354
    %v3356 = vand.u32 %v3102, 4294901760
    %3357 = vmatpush.msra.mxu0 %v3356
    %v3358 = vand.u32 %v3101, 4294901760
    %3359 = vmatpush.msra.mxu0 %v3358
    %v3360 = vand.u32 %v3100, 4294901760
    %3361 = vmatpush.msra.mxu0 %v3360
    %v3362 = vand.u32 %v3099, 4294901760
    %3363 = vmatpush.msra.mxu0 %v3362
    %v3364 = vand.u32 %v3097, 4294901760
    %v3365 = vsub.f32 %v3097, %v3364
    %v3366 = vand.u32 %v3365, 4294901760
    %3367 = vmatmul.f32.gmra.mxu0 %v3366
    %v3368 = vpop.f32.mrf.mxu0
    %v3369 = vadd.f32 %v3325, %v3368
    %v3370 = vand.u32 %v3098, 4294901760
    %v3371 = vsub.f32 %v3098, %v3370
    %v3372 = vand.u32 %v3371, 4294901760
    %3373 = vmatmul.f32.gmra.mxu0 %v3372
    %v3374 = vpop.f32.mrf.mxu0
    %v3375 = vadd.f32 %v3330, %v3374
    %3376 = vdwg.mxu0
    %v3377 = vand.u32 %v3114, 4294901760
    %v3378 = vsub.f32 %v3114, %v3377
    %v3379 = vand.u32 %v3378, 4294901760
    %3380 = vmatpush.msra.mxu0 %v3379
    %v3381 = vand.u32 %v3113, 4294901760
    %v3382 = vsub.f32 %v3113, %v3381
    %v3383 = vand.u32 %v3382, 4294901760
    %3384 = vmatpush.msra.mxu0 %v3383
    %v3385 = vand.u32 %v3112, 4294901760
    %v3386 = vsub.f32 %v3112, %v3385
    %v3387 = vand.u32 %v3386, 4294901760
    %3388 = vmatpush.msra.mxu0 %v3387
    %v3389 = vand.u32 %v3111, 4294901760
    %v3390 = vsub.f32 %v3111, %v3389
    %v3391 = vand.u32 %v3390, 4294901760
    %3392 = vmatpush.msra.mxu0 %v3391
    %v3393 = vand.u32 %v3110, 4294901760
    %v3394 = vsub.f32 %v3110, %v3393
    %v3395 = vand.u32 %v3394, 4294901760
    %3396 = vmatpush.msra.mxu0 %v3395
    %v3397 = vand.u32 %v3109, 4294901760
    %v3398 = vsub.f32 %v3109, %v3397
    %v3399 = vand.u32 %v3398, 4294901760
    %3400 = vmatpush.msra.mxu0 %v3399
    %v3401 = vand.u32 %v3108, 4294901760
    %v3402 = vsub.f32 %v3108, %v3401
    %v3403 = vand.u32 %v3402, 4294901760
    %3404 = vmatpush.msra.mxu0 %v3403
    %v3405 = vand.u32 %v3107, 4294901760
    %v3406 = vsub.f32 %v3107, %v3405
    %v3407 = vand.u32 %v3406, 4294901760
    %3408 = vmatpush.msra.mxu0 %v3407
    %v3409 = vand.u32 %v3106, 4294901760
    %v3410 = vsub.f32 %v3106, %v3409
    %v3411 = vand.u32 %v3410, 4294901760
    %3412 = vmatpush.msra.mxu0 %v3411
    %v3413 = vand.u32 %v3105, 4294901760
    %v3414 = vsub.f32 %v3105, %v3413
    %v3415 = vand.u32 %v3414, 4294901760
    %3416 = vmatpush.msra.mxu0 %v3415
    %v3417 = vand.u32 %v3104, 4294901760
    %v3418 = vsub.f32 %v3104, %v3417
    %v3419 = vand.u32 %v3418, 4294901760
    %3420 = vmatpush.msra.mxu0 %v3419
    %v3421 = vand.u32 %v3103, 4294901760
    %v3422 = vsub.f32 %v3103, %v3421
    %v3423 = vand.u32 %v3422, 4294901760
    %3424 = vmatpush.msra.mxu0 %v3423
    %v3425 = vand.u32 %v3102, 4294901760
    %v3426 = vsub.f32 %v3102, %v3425
    %v3427 = vand.u32 %v3426, 4294901760
    %3428 = vmatpush.msra.mxu0 %v3427
    %v3429 = vand.u32 %v3101, 4294901760
    %v3430 = vsub.f32 %v3101, %v3429
    %v3431 = vand.u32 %v3430, 4294901760
    %3432 = vmatpush.msra.mxu0 %v3431
    %v3433 = vand.u32 %v3100, 4294901760
    %v3434 = vsub.f32 %v3100, %v3433
    %v3435 = vand.u32 %v3434, 4294901760
    %3436 = vmatpush.msra.mxu0 %v3435
    %v3437 = vand.u32 %v3099, 4294901760
    %v3438 = vsub.f32 %v3099, %v3437
    %v3439 = vand.u32 %v3438, 4294901760
    %3440 = vmatpush.msra.mxu0 %v3439
    %v3441 = vand.u32 %v3097, 4294901760
    %3442 = vmatmul.f32.gmra.mxu0 %v3441
    %v3443 = vpop.f32.mrf.mxu0
    %v3444 = vadd.f32 %v3369, %v3443
    %v3445 = vand.u32 %v3098, 4294901760
    %3446 = vmatmul.f32.gmra.mxu0 %v3445
    %v3447 = vpop.f32.mrf.mxu0
    %v3448 = vadd.f32 %v3375, %v3447
    %3449 = vdwg.mxu0
    %v3450 = vand.u32 %v3114, 4294901760
    %3451 = vmatpush.msra.mxu0 %v3450
    %v3452 = vand.u32 %v3113, 4294901760
    %3453 = vmatpush.msra.mxu0 %v3452
    %v3454 = vand.u32 %v3112, 4294901760
    %3455 = vmatpush.msra.mxu0 %v3454
    %v3456 = vand.u32 %v3111, 4294901760
    %3457 = vmatpush.msra.mxu0 %v3456
    %v3458 = vand.u32 %v3110, 4294901760
    %3459 = vmatpush.msra.mxu0 %v3458
    %v3460 = vand.u32 %v3109, 4294901760
    %3461 = vmatpush.msra.mxu0 %v3460
    %v3462 = vand.u32 %v3108, 4294901760
    %3463 = vmatpush.msra.mxu0 %v3462
    %v3464 = vand.u32 %v3107, 4294901760
    %3465 = vmatpush.msra.mxu0 %v3464
    %v3466 = vand.u32 %v3106, 4294901760
    %3467 = vmatpush.msra.mxu0 %v3466
    %v3468 = vand.u32 %v3105, 4294901760
    %3469 = vmatpush.msra.mxu0 %v3468
    %v3470 = vand.u32 %v3104, 4294901760
    %3471 = vmatpush.msra.mxu0 %v3470
    %v3472 = vand.u32 %v3103, 4294901760
    %3473 = vmatpush.msra.mxu0 %v3472
    %v3474 = vand.u32 %v3102, 4294901760
    %3475 = vmatpush.msra.mxu0 %v3474
    %v3476 = vand.u32 %v3101, 4294901760
    %3477 = vmatpush.msra.mxu0 %v3476
    %v3478 = vand.u32 %v3100, 4294901760
    %3479 = vmatpush.msra.mxu0 %v3478
    %v3480 = vand.u32 %v3099, 4294901760
    %3481 = vmatpush.msra.mxu0 %v3480
    %v3482 = vand.u32 %v3097, 4294901760
    %3483 = vmatmul.f32.gmra.mxu0 %v3482
    %v3484 = vpop.f32.mrf.mxu0
    %v3485 = vadd.f32 %v3444, %v3484
    %v3486 = vand.u32 %v3098, 4294901760
    %3487 = vmatmul.f32.gmra.mxu0 %v3486
    %v3488 = vpop.f32.mrf.mxu0
    %v3489 = vadd.f32 %v3448, %v3488
    %3490 = vdwg.mxu0
    %vm3491 = vcmask 261120
    %3492 = vst.msk [vmem:[#allocation7] sm:$0xff] %vm3491, %v3485
    %3493 = vst.msk [vmem:[#allocation7 + $0x8] sm:$0xff] %vm3491, %v3489
    // Predicated region
    $region38: #{tpu_custom_call.1} parent=1 // pred_check
      _
    $region39: #{tpu_custom_call.1} parent=1 // pred_check_branch
      %3495 = sbr.rel (0) target = $region41
    $region40: #{tpu_custom_call.1} parent=1 // pred_region
      %3497 = vsyncadd [#allocation4], 0
      %s3498 = sshll.u32 [#allocation7], 4
      %s3499 = int_to_ptr.vmem [resolvable:$true] %s3498
      %s3500 = sshll.u32 %s7, 4
      %s3501 = int_to_ptr.hbm [resolvable:$true] %s3500
      %3506 = dma.vmem_to_hbm [thread:$0]  %s3499, 256, %s3501, [#allocation4], 128, 128, 8
    $region41: #{tpu_custom_call.1} parent=1 // pred_fallthru
      _
    // Predicated region
    $region42: #{tpu_custom_call.1} parent=1 // pred_check
      _
    $region43: #{tpu_custom_call.1} parent=1 // pred_check_branch
      %3508 = sbr.rel (0) target = $region45
    $region44: #{tpu_custom_call.1} parent=1 // pred_region
      %3510 = dma.done [#allocation4], 256
    $region45: #{tpu_custom_call.1} parent=1 // pred_fallthru
      _
    %3511 = vsyncpa [#allocation3], 1
    %3512 = vsyncpa [#allocation6], 1
    %3513 = vsyncpa [#allocation4], 1

</llo_original>
